<compile_context>
chip_gen: v7x
topology: tpu7x:2x2x1
jax: 0.10.0
libtpu: 0.0.40
codegen_flags: <defaults>
</compile_context>

<pallas_src>
import functools

import jax
import jax.numpy as jnp
from jax import lax
from jax.experimental import pallas as pl
from jax.experimental.pallas import tpu as pltpu


def _pam_kernel(theta_ref, phi_ref, vol_ref, vsum_ref, *, n_c, th, w):
    # theta_ref, phi_ref: (Nc, th, W)   theta <- x_r group slice, phi <- x_l group slice
    # vol_ref:            (W, th*W)     lane-dense slab of the permuted volume
    # vsum_ref:           (th, W)       softmax(f, -1).sum(-1) rows
    #
    # Relay inputs to leading-batch form (th, Nc, W); lane dim (W) stays put.
    t = pltpu.einshape("chw->hcw", theta_ref[...])          # (th, Nc, W)
    p = pltpu.einshape("chw->hcw", phi_ref[...])             # (th, Nc, W)

    # Single batched matmul: batch over h (dim 0), contract Nc (dim 1) -> (th, W, W).
    prod = lax.dot_general(
        t, p,
        dimension_numbers=(((1,), (1,)), ((0,), (0,))),
        preferred_element_type=jnp.float32)

    # torch float `//` is floor division.  Reciprocal-multiply is exact only for
    # power-of-two Nc; otherwise use a true divide to keep floor parity.
    if n_c & (n_c - 1) == 0:
        f = jnp.floor(prod * jnp.float32(1.0 / n_c))
    else:
        f = jnp.floor(prod / jnp.float32(n_c))

    # Fused permute: f[h, w1, w2] -> volume[w1, h, w2], written as one dense
    # lane-packed (W, th*W) store (volume array is (B, G, W, H*W)).
    f_perm = pltpu.einshape("hvw->vhw", f)                   # (W, th, W)
    vol_ref[...] = f_perm.reshape(w, th * w).astype(vol_ref.dtype)

    # M = softmax(f, -1); vsum = M.sum(-1).  Analytically 1 (V is fp noise, as in
    # the reference).  sum(e/s) == s * (1/s); the reciprocal goes to the EUP slot.
    e = jnp.exp(f - jnp.max(f, axis=-1, keepdims=True))      # (th, W, W)
    s = jnp.sum(e, axis=-1)                                  # (th, W)
    vsum_ref[...] = s * pl.reciprocal(s, approx=True)


def _choose_h_tile(H, W, itemsize, want_split, max_vol_block_bytes=8 << 20):
    """Largest legal h tile under the VMEM budget.

    Constraints: th divides H; input/vsum blocks need th % sublane == 0 (or th == H);
    the lane-dense volume block needs (th * W) % 128 == 0 (or th == H, i.e. the
    block equals the full flattened dim).  The 8 MiB cap keeps the double-buffered
    volume block well inside v7x's 64 MiB VMEM as well as v5e/v6e.
    """
    sub = {4: 8, 2: 16, 1: 32}.get(itemsize, 8)

    def valid(t):
        return (H % t == 0
                and (t == H or t % sub == 0)
                and (t == H or (t * W) % 128 == 0))

    cands = sorted((t for t in range(1, H + 1) if valid(t)), reverse=True)
    fitting = [t for t in cands if W * t * W * 4 <= max_vol_block_bytes]
    pool = fitting if fitting else [min(cands)]
    if want_split:  # keep >= 2 grid steps so the second TensorCore has work
        split = [t for t in pool if t < H]
        if split:
            return split[0]
    return pool[0]


def pam_forward(x_l, x_r, num_groups):
    B, C, H, W = x_l.shape
    assert C % num_groups == 0
    G = num_groups
    n_c = C // num_groups

    # Free reshapes (channel groups are contiguous in NCHW) -> no HBM data movement.
    theta_g = x_r.reshape(B, G, n_c, H, W)   # theta_g[b,g,c,h,w] = x_r[b, g*n_c + c, h, w]
    phi_g = x_l.reshape(B, G, n_c, H, W)     # phi_g[b,g,c,h,w]   = x_l[b, g*n_c + c, h, w]

    itemsize = jnp.dtype(x_l.dtype).itemsize
    th = _choose_h_tile(H, W, itemsize, want_split=(B * G == 1))
    grid = (B, G, H // th)

    # VMEM accounting (double-buffered by the pipeline) and scoped-limit raise.
    vol_block_bytes = W * th * W * 4
    in_block_bytes = 2 * n_c * th * W * itemsize
    vsum_block_bytes = th * W * 4
    per_step = vol_block_bytes + in_block_bytes + vsum_block_bytes
    vmem_limit = int(min(max(32 << 20, 3 * per_step), 48 << 20))

    cost = pl.CostEstimate(
        flops=2 * B * G * H * W * W * n_c,
        transcendentals=B * G * H * W * W,
        bytes_accessed=(B * G * H * W * W * 4          # volume writeback (dominant)
                        + 2 * B * C * H * W * itemsize  # both inputs
                        + B * G * H * W * 4),           # vsum
    )

    kernel = functools.partial(_pam_kernel, n_c=n_c, th=th, w=W)
    volume_flat, vsum = pl.pallas_call(
        kernel,
        out_shape=(
            # (B, G, W, H*W): lane-dense store target; free reshape to (B,G,W,H,W) below.
            # TODO(synk): volume kept float32 for parity; bf16/int16 output would halve
            # the dominant HBM writeback if downstream tolerates it.
            jax.ShapeDtypeStruct((B, G, W, H * W), jnp.float32),
            jax.ShapeDtypeStruct((B, G, H, W), jnp.float32),
        ),
        grid_spec=pltpu.PrefetchScalarGridSpec(
            num_scalar_prefetch=0,
            grid=grid,
            in_specs=[
                pl.BlockSpec((None, None, n_c, th, W), lambda b, g, t: (b, g, 0, t, 0)),
                pl.BlockSpec((None, None, n_c, th, W), lambda b, g, t: (b, g, 0, t, 0)),
            ],
            out_specs=[
                pl.BlockSpec((None, None, W, th * W), lambda b, g, t: (b, g, 0, t)),
                pl.BlockSpec((None, None, th, W), lambda b, g, t: (b, g, t, 0)),
            ],
        ),
        compiler_params=pltpu.CompilerParams(
            dimension_semantics=("parallel", "parallel", "parallel"),
            vmem_limit_bytes=vmem_limit),
        cost_estimate=cost,
    )(theta_g, phi_g)

    # Splitting the minor dim back out is a free (layout-preserving) reshape.
    volume = volume_flat.reshape(B, G, W, H, W)

    # TODO(synk): the reference `volume` shift-loop references an undefined tensor
    # (`refimg_fea`) and a stale loop index `i`; only the well-defined branch
    # (volume = f, then permute(0,1,3,2,4)) is reproduced — the permute is fused
    # into the kernel's output layout above.
    V = vsum > 1.0          # (B, G, H, W) bool  (== M.sum(4) > 1)
    return volume, V


class PAM:
    """Thin mirror of the PyTorch module (no learnable parameters)."""

    def __init__(self, in_channels, inter_channels=None, sub_sample=True):
        self.sub_sample = sub_sample
        self.in_channels = in_channels
        self.inter_channels = inter_channels
        if self.inter_channels is None:
            self.inter_channels = in_channels // 2
            if self.inter_channels == 0:
                self.inter_channels = 1

    def __call__(self, x_l, x_r, num_groups):
        return pam_forward(x_l, x_r, num_groups)


if __name__ == "__main__":
    key = jax.random.PRNGKey(0)
    k1, k2 = jax.random.split(key)

    B, C, H, W = 2, 4, 16, 16
    num_groups = 2
    n_c = C // num_groups

    x_l = jax.random.normal(k1, (B, C, H, W), dtype=jnp.float32)
    x_r = jax.random.normal(k2, (B, C, H, W), dtype=jnp.float32)

    module = PAM(in_channels=C)
    fwd = jax.jit(module.__call__, static_argnums=2)
    volume, V = fwd(x_l, x_r, num_groups)
    jax.block_until_ready((volume, V))

    assert volume.shape == (B, num_groups, W, H, W)
    assert volume.dtype == jnp.float32
    assert V.shape == (B, num_groups, H, W)
    assert V.dtype == jnp.bool_

    # Lightweight correctness check against a pure-JAX reference of the
    # well-defined part of the forward (floor-flip-tolerant comparison).
    theta_x = jnp.transpose(x_r, (0, 2, 3, 1))          # (B,H,W,C)
    phi_x = jnp.transpose(x_l, (0, 2, 1, 3))            # (B,H,C,W)
    f_parts = []
    for i in range(num_groups):
        f_parts.append(jnp.floor(
            jnp.matmul(theta_x[..., i * n_c:(i + 1) * n_c],
                       phi_x[:, :, i * n_c:(i + 1) * n_c, :]) / n_c))
    f_ref = jnp.stack(f_parts, axis=1)                  # (B,G,H,W,W)
    vol_ref = jnp.transpose(f_ref, (0, 1, 3, 2, 4))     # (B,G,W,H,W)
    mismatch_frac = jnp.mean((jnp.abs(volume - vol_ref) > 0.5).astype(jnp.float32))
    assert float(mismatch_frac) < 0.01

    print("KERNEL_OK")
</pallas_src>

<mosaic_0001>
module attributes {stable_mosaic.version = 11 : i64} {
  func.func @_pam_kernel(%arg0: i32, %arg1: i32, %arg2: i32, %arg3: memref<1x1x2x16x16xf32, #tpu.memory_space<vmem>>, %arg4: memref<1x1x2x16x16xf32, #tpu.memory_space<vmem>>, %arg5: memref<1x1x16x256xf32, #tpu.memory_space<vmem>>, %arg6: memref<1x1x16x16xf32, #tpu.memory_space<vmem>>) attributes {dimension_semantics = [#tpu.dimension_semantics<parallel>, #tpu.dimension_semantics<parallel>, #tpu.dimension_semantics<parallel>], iteration_bounds = array<i64: 2, 2, 1>, scalar_prefetch = 0 : i64, scratch_operands = 0 : i64, tpu.core_type = #tpu.core_type<tc>, window_params = [{transform_indices = @transform_0, window_bounds = array<i64: 1, 1, 2, 16, 16>}, {transform_indices = @transform_1, window_bounds = array<i64: 1, 1, 2, 16, 16>}, {transform_indices = @transform_2, window_bounds = array<i64: 1, 1, 16, 256>}, {transform_indices = @transform_3, window_bounds = array<i64: 1, 1, 16, 16>}]} {
    %c0 = arith.constant 0 : index
    %c0_0 = arith.constant 0 : index
    %c0_1 = arith.constant 0 : index
    %c0_2 = arith.constant 0 : index
    %c0_3 = arith.constant 0 : index
    %0 = vector.load %arg3[%c0, %c0_0, %c0_1, %c0_2, %c0_3] : memref<1x1x2x16x16xf32, #tpu.memory_space<vmem>>, vector<1x1x2x16x16xf32>
    %1 = vector.shape_cast %0 : vector<1x1x2x16x16xf32> to vector<2x16x16xf32>
    %2 = tpu.transpose %1, [1, 0, 2] : vector<2x16x16xf32> -> vector<16x2x16xf32>
    %c0_4 = arith.constant 0 : index
    %c0_5 = arith.constant 0 : index
    %c0_6 = arith.constant 0 : index
    %c0_7 = arith.constant 0 : index
    %c0_8 = arith.constant 0 : index
    %3 = vector.load %arg4[%c0_4, %c0_5, %c0_6, %c0_7, %c0_8] : memref<1x1x2x16x16xf32, #tpu.memory_space<vmem>>, vector<1x1x2x16x16xf32>
    %4 = vector.shape_cast %3 : vector<1x1x2x16x16xf32> to vector<2x16x16xf32>
    %5 = tpu.transpose %4, [1, 0, 2] : vector<2x16x16xf32> -> vector<16x2x16xf32>
    %cst = arith.constant dense<0.000000e+00> : vector<16x16x16xf32>
    %6 = tpu.matmul %2, %5, %cst {dimension_numbers = #tpu.dot_dimension_numbers<[1], [1], [2], [2], [0, 0, 0, 2, 1, 2], [0], [0]>} : vector<16x2x16xf32>, vector<16x2x16xf32>, vector<16x16x16xf32> -> vector<16x16x16xf32>
    %cst_9 = arith.constant 5.000000e-01 : f32
    %7 = vector.broadcast %cst_9 : f32 to vector<16x16x16xf32>
    %8 = arith.mulf %6, %7 : vector<16x16x16xf32>
    %9 = math.floor %8 : vector<16x16x16xf32>
    %10 = tpu.transpose %9, [1, 0, 2] : vector<16x16x16xf32> -> vector<16x16x16xf32>
    %11 = vector.shape_cast %10 : vector<16x16x16xf32> to vector<16x256xf32>
    %c0_10 = arith.constant 0 : index
    %c0_11 = arith.constant 0 : index
    %c0_12 = arith.constant 0 : index
    %c0_13 = arith.constant 0 : index
    %12 = vector.load %arg5[%c0_10, %c0_11, %c0_12, %c0_13] : memref<1x1x16x256xf32, #tpu.memory_space<vmem>>, vector<1x1x16x256xf32>
    %13 = vector.shape_cast %12 : vector<1x1x16x256xf32> to vector<16x256xf32>
    %14 = vector.shape_cast %11 : vector<16x256xf32> to vector<1x1x16x256xf32>
    tpu.vector_store %arg5[%c0_10, %c0_11, %c0_12, %c0_13], %14 {strides = array<i32>} : memref<1x1x16x256xf32, #tpu.memory_space<vmem>>, vector<1x1x16x256xf32>,
    %cst_14 = arith.constant dense<0xFF800000> : vector<16x16xf32>
    %15 = vector.multi_reduction <maximumf>, %9, %cst_14 [2] : vector<16x16x16xf32> to vector<16x16xf32>
    %16 = vector.shape_cast %15 : vector<16x16xf32> to vector<16x16x1xf32>
    %17 = vector.broadcast %16 : vector<16x16x1xf32> to vector<16x16x16xf32>
    %18 = arith.subf %9, %17 : vector<16x16x16xf32>
    %19 = math.exp %18 : vector<16x16x16xf32>
    %cst_15 = arith.constant dense<0.000000e+00> : vector<16x16xf32>
    %20 = vector.multi_reduction <add>, %19, %cst_15 [2] : vector<16x16x16xf32> to vector<16x16xf32>
    %21 = tpu.reciprocal %20 {approx = true} : vector<16x16xf32> -> vector<16x16xf32>
    %22 = arith.mulf %20, %21 : vector<16x16xf32>
    %c0_16 = arith.constant 0 : index
    %c0_17 = arith.constant 0 : index
    %c0_18 = arith.constant 0 : index
    %c0_19 = arith.constant 0 : index
    %23 = vector.load %arg6[%c0_16, %c0_17, %c0_18, %c0_19] : memref<1x1x16x16xf32, #tpu.memory_space<vmem>>, vector<1x1x16x16xf32>
    %24 = vector.shape_cast %23 : vector<1x1x16x16xf32> to vector<16x16xf32>
    %25 = vector.shape_cast %22 : vector<16x16xf32> to vector<1x1x16x16xf32>
    tpu.vector_store %arg6[%c0_16, %c0_17, %c0_18, %c0_19], %25 {strides = array<i32>} : memref<1x1x16x16xf32, #tpu.memory_space<vmem>>, vector<1x1x16x16xf32>,
    return
  }
  func.func @transform_0(%arg0: i32, %arg1: i32, %arg2: i32) -> (i32, i32, i32, i32, i32) {
    %c0_i32 = arith.constant 0 : i32
    %c0_i32_0 = arith.constant 0 : i32
    %c0_i32_1 = arith.constant 0 : i32
    return %arg0, %arg1, %c0_i32, %arg2, %c0_i32_0 : i32, i32, i32, i32, i32
  }
  func.func @transform_1(%arg0: i32, %arg1: i32, %arg2: i32) -> (i32, i32, i32, i32, i32) {
    %c0_i32 = arith.constant 0 : i32
    %c0_i32_0 = arith.constant 0 : i32
    %c0_i32_1 = arith.constant 0 : i32
    return %arg0, %arg1, %c0_i32, %arg2, %c0_i32_0 : i32, i32, i32, i32, i32
  }
  func.func @transform_2(%arg0: i32, %arg1: i32, %arg2: i32) -> (i32, i32, i32, i32) {
    %c0_i32 = arith.constant 0 : i32
    %c0_i32_0 = arith.constant 0 : i32
    return %arg0, %arg1, %c0_i32, %arg2 : i32, i32, i32, i32
  }
  func.func @transform_3(%arg0: i32, %arg1: i32, %arg2: i32) -> (i32, i32, i32, i32) {
    %c0_i32 = arith.constant 0 : i32
    %c0_i32_0 = arith.constant 0 : i32
    return %arg0, %arg1, %arg2, %c0_i32 : i32, i32, i32, i32
  }
}

</mosaic_0001>

<llo_original>
// kernel: a_call__.1
$region0: #{a_call__.1}
  #allocation0 [shape = 'u32[]', space=smem, size = 0x4, offset = 0x4, fixed_abs, tag = 'smem constant byte address 0x4 - core index']
  #allocation1 [shape = 'u32[144,128]{1,0:T(1,128)}', space=vmem, size = 0x12000, scoped, tag = 'internal scratch']
  %s0 = inlined_call_operand.hbm [shape: f32[2,2,2,16,16], index: 0, kind: input, shape index: {}]
  %s1 = inlined_call_operand.hbm [shape: f32[2,2,2,16,16], index: 1, kind: input, shape index: {}]
  %s2 = inlined_call_operand.vmem [shape: f32[2,2,16,256], index: 2, kind: output, shape index: {0}]
  %s3 = inlined_call_operand.vmem [shape: f32[2,2,16,16], index: 3, kind: output, shape index: {1}]
  %4 = xla_tuple %s2, %s3
  %s5 = sld [smem:[#allocation0]]
  $region57: #{a_call__.1} parent=0
    _
  %s7 = ssub.s32 1, %s5
  %s8 = scalar_select 0, %s7, %s5
  $region1: #{a_call__.1} parent=0
    #allocation2 [shape = 'u8[32768]{0}', space=vmem, size = 0x8000, scoped, tag = 'input window, operand 0']
    #allocation3 [shape = 's32[2]{0}', space=sflag, size = 0x8, scoped, tag = 'scoped memory for a_call__.1']
    #allocation4 [shape = 'u8[32768]{0}', space=vmem, size = 0x8000, scoped, tag = 'input window, operand 1']
    #allocation5 [shape = 's32[2]{0}', space=sflag, size = 0x8, scoped, tag = 'scoped memory for a_call__.1']
    %9 = vsyncpa [#allocation3], 0
    %s10 = scalar_lea.sflag [#allocation3], 1
    %11 = vsyncpa %s10, 0
    %12 = vsyncpa [#allocation5], 0
    %s13 = scalar_lea.sflag [#allocation5], 1
    %14 = vsyncpa %s13, 0
    loop: start=0, step=1, limit=6
    $region2: #{a_call__.1} parent=1 // loop_pre_header
      _
    $region3: #{a_call__.1} parent=1 // loop_header
      %s16 = sphi 0, %s20
      %p17 = scmp.ge.s32.totalorder %s16, 6
      %s23 = sphi 0, %s42
      %s24 = sphi 0, %s38
      %s25 = sphi 0, %s34
      %s26 = sphi 0, %s23
      %s27 = sphi 0, %s24
      %s28 = sphi 0, %s25
      %s29 = sphi 0, %s26
      %s30 = sphi 0, %s27
      %s31 = sphi 0, %s28
      %s49 = sphi 0, %s51
      %s52 = sphi 0, %s49
      %s53 = sphi 0, %s52
      %s69 = sphi 0, %s53
      %s79 = sphi 0, %s81
      %s82 = sphi 0, %s79
      %s83 = sphi 0, %s82
      %s99 = sphi 0, %s83
      %s109 = sphi 0, %s111
      %s112 = sphi 0, %s109
      %s113 = sphi 0, %s112
      %s129 = sphi 0, %s113
      %s139 = sphi 0, %s141
      %s142 = sphi 0, %s139
      %s143 = sphi 0, %s142
      %s159 = sphi 0, %s143
    $region4: #{a_call__.1} parent=1 // loop_header_branch
      %19 = sbr.rel (%p17) target = $region8
    $region5: #{a_call__.1} parent=1 // loop_body
      %s21 = ssub.s32 %s16, 1
      %s22 = ssub.s32 %s16, 2
      %s32 = sadd.s32 1, %s25
      %p33 = scmp.ge.s32.totalorder %s32, 1
      %s34 = scalar_select %p33, 0, %s32
      %s35 = sadd.s32 1, %s24
      %s36 = scalar_select %p33, %s35, %s24
      %p37 = scmp.ge.s32.totalorder %s36, 2
      %s38 = scalar_select %p37, 0, %s36
      %s39 = sadd.s32 1, %s23
      %s40 = scalar_select %p37, %s39, %s23
      %p41 = scmp.ge.s32.totalorder %s40, 2
      %s42 = scalar_select %p41, 0, %s40
      %s43 = ssub.s32 %s23, %s42
      %s44 = ssub.s32 %s24, %s38
      %s45 = sor.u32 %s43, %s44
      %s46 = ssub.s32 %s25, %s34
      %s47 = sor.u32 %s45, %s46
      %p48 = scmp.eq.s32.totalorder %s47, 0
      %s50 = sadd.s32 %s49, 1
      %s51 = scalar_select %p48, %s49, %s50
      %p54 = pneg %p48
      %p55 = scmp.eq.s32.totalorder %s16, 3
      %p56 = por %p54, %p55
      %p57 = scmp.ne.s32.totalorder %s49, %s52
      %p58 = scmp.eq.s32.totalorder %s16, 0
      %p59 = por %p57, %p58
      %p60 = scmp.ne.s32.totalorder %s49, %s52
      %p61 = scmp.eq.s32.totalorder %s21, 3
      %p62 = por %p60, %p61
      %p63 = scmp.ne.s32.totalorder %s52, %s53
      %p64 = scmp.eq.s32.totalorder %s21, 0
      %p65 = por %p63, %p64
      %p66 = scmp.ne.s32.totalorder %s52, %s53
      %p67 = scmp.eq.s32.totalorder %s22, 3
      %p68 = por %p66, %p67
      %p70 = scmp.ne.s32.totalorder %s53, %s69
      %p71 = scmp.eq.s32.totalorder %s22, 0
      %p72 = por %p70, %p71
      %s73 = ssub.s32 %s23, %s42
      %s74 = ssub.s32 %s24, %s38
      %s75 = sor.u32 %s73, %s74
      %s76 = ssub.s32 %s25, %s34
      %s77 = sor.u32 %s75, %s76
      %p78 = scmp.eq.s32.totalorder %s77, 0
      %s80 = sadd.s32 %s79, 1
      %s81 = scalar_select %p78, %s79, %s80
      %p84 = pneg %p78
      %p85 = scmp.eq.s32.totalorder %s16, 3
      %p86 = por %p84, %p85
      %p87 = scmp.ne.s32.totalorder %s79, %s82
      %p88 = scmp.eq.s32.totalorder %s16, 0
      %p89 = por %p87, %p88
      %p90 = scmp.ne.s32.totalorder %s79, %s82
      %p91 = scmp.eq.s32.totalorder %s21, 3
      %p92 = por %p90, %p91
      %p93 = scmp.ne.s32.totalorder %s82, %s83
      %p94 = scmp.eq.s32.totalorder %s21, 0
      %p95 = por %p93, %p94
      %p96 = scmp.ne.s32.totalorder %s82, %s83
      %p97 = scmp.eq.s32.totalorder %s22, 3
      %p98 = por %p96, %p97
      %p100 = scmp.ne.s32.totalorder %s83, %s99
      %p101 = scmp.eq.s32.totalorder %s22, 0
      %p102 = por %p100, %p101
      %s103 = ssub.s32 %s23, %s42
      %s104 = ssub.s32 %s24, %s38
      %s105 = sor.u32 %s103, %s104
      %s106 = ssub.s32 %s25, %s34
      %s107 = sor.u32 %s105, %s106
      %p108 = scmp.eq.s32.totalorder %s107, 0
      %s110 = sadd.s32 %s109, 1
      %s111 = scalar_select %p108, %s109, %s110
      %p114 = pneg %p108
      %p115 = scmp.eq.s32.totalorder %s16, 3
      %p116 = por %p114, %p115
      %p117 = scmp.ne.s32.totalorder %s109, %s112
      %p118 = scmp.eq.s32.totalorder %s16, 0
      %p119 = por %p117, %p118
      %p120 = scmp.ne.s32.totalorder %s109, %s112
      %p121 = scmp.eq.s32.totalorder %s21, 3
      %p122 = por %p120, %p121
      %p123 = scmp.ne.s32.totalorder %s112, %s113
      %p124 = scmp.eq.s32.totalorder %s21, 0
      %p125 = por %p123, %p124
      %p126 = scmp.ne.s32.totalorder %s112, %s113
      %p127 = scmp.eq.s32.totalorder %s22, 3
      %p128 = por %p126, %p127
      %p130 = scmp.ne.s32.totalorder %s113, %s129
      %p131 = scmp.eq.s32.totalorder %s22, 0
      %p132 = por %p130, %p131
      %s133 = ssub.s32 %s23, %s42
      %s134 = ssub.s32 %s24, %s38
      %s135 = sor.u32 %s133, %s134
      %s136 = ssub.s32 %s25, %s34
      %s137 = sor.u32 %s135, %s136
      %p138 = scmp.eq.s32.totalorder %s137, 0
      %s140 = sadd.s32 %s139, 1
      %s141 = scalar_select %p138, %s139, %s140
      %p144 = pneg %p138
      %p145 = scmp.eq.s32.totalorder %s16, 3
      %p146 = por %p144, %p145
      %p147 = scmp.ne.s32.totalorder %s139, %s142
      %p148 = scmp.eq.s32.totalorder %s16, 0
      %p149 = por %p147, %p148
      %p150 = scmp.ne.s32.totalorder %s139, %s142
      %p151 = scmp.eq.s32.totalorder %s21, 3
      %p152 = por %p150, %p151
      %p153 = scmp.ne.s32.totalorder %s142, %s143
      %p154 = scmp.eq.s32.totalorder %s21, 0
      %p155 = por %p153, %p154
      %p156 = scmp.ne.s32.totalorder %s142, %s143
      %p157 = scmp.eq.s32.totalorder %s22, 3
      %p158 = por %p156, %p157
      %p160 = scmp.ne.s32.totalorder %s143, %s159
      %p161 = scmp.eq.s32.totalorder %s22, 0
      %p162 = por %p160, %p161
      %p163 = scmp.le.s32.totalorder 1, %s16
      %p164 = scmp.lt.s32.totalorder %s16, 5
      %p165 = pnand %p163, %p164
      %p166 = pneg %p165
      // Predicated region
      $region9: #{a_call__.1} parent=5 // pred_check
        _
      $region10: #{a_call__.1} parent=5 // pred_check_branch
        %168 = sbr.rel (%p165) target = $region12
      $region11: #{a_call__.1} parent=5 // pred_region
        %s169 = ssub.s32 %s16, 1
      $region12: #{a_call__.1} parent=5 // pred_fallthru
        _
      %p170 = scmp.lt.s32.totalorder %s16, 4
      // Predicated region
      $region13: #{a_call__.1} parent=5 // pred_check
        %p171 = pneg %p170
      $region14: #{a_call__.1} parent=5 // pred_check_branch
        %173 = sbr.rel (%p171) target = $region16
      $region15: #{a_call__.1} parent=5 // pred_region
        // Predicated region
        $region17: #{a_call__.1} parent=15 // pred_check
          %p174 = pneg %p59
        $region18: #{a_call__.1} parent=15 // pred_check_branch
          %176 = sbr.rel (%p174) target = $region20
        $region19: #{a_call__.1} parent=15 // pred_region
          %s177 = sand.u32 %s49, 1
          %s178 = scalar_lea.sflag [#allocation3], %s177
          %s179 = sand.u32 %s49, 1
          %s180 = smul.addr %s179, 32
          %s181 = scalar_lea.vmem [#allocation2], %s180
          %s182 = smul.u32 2, %s25
          %s184 = ssub.s32 512, 512
          %185 = vsyncadd %s178, %s184
          %s186 = smul.addr %s24, 4
          %s187 = sadd.s32 %s182, %s186
          %s188 = smul.addr %s23, 8
          %s189 = sadd.s32 %s187, %s188
          %s190 = smul.addr %s189, 128
          %s191 = scalar_lea.hbm %s0, %s190
          %s192 = sshll.u32 %s181, 4
          %s193 = int_to_ptr.vmem [resolvable:$true] %s192
          %198 = dma.hbm_to_vmem [thread:$0]  %s191, 512, %s193, %s178, 128, 128, 8
        $region20: #{a_call__.1} parent=15 // pred_fallthru
          _
        // Predicated region
        $region21: #{a_call__.1} parent=15 // pred_check
          %p199 = pneg %p89
        $region22: #{a_call__.1} parent=15 // pred_check_branch
          %201 = sbr.rel (%p199) target = $region24
        $region23: #{a_call__.1} parent=15 // pred_region
          %s202 = sand.u32 %s79, 1
          %s203 = scalar_lea.sflag [#allocation5], %s202
          %s204 = sand.u32 %s79, 1
          %s205 = smul.addr %s204, 32
          %s206 = scalar_lea.vmem [#allocation4], %s205
          %s207 = smul.u32 2, %s25
          %s209 = ssub.s32 512, 512
          %210 = vsyncadd %s203, %s209
          %s211 = smul.addr %s24, 4
          %s212 = sadd.s32 %s207, %s211
          %s213 = smul.addr %s23, 8
          %s214 = sadd.s32 %s212, %s213
          %s215 = smul.addr %s214, 128
          %s216 = scalar_lea.hbm %s1, %s215
          %s217 = sshll.u32 %s206, 4
          %s218 = int_to_ptr.vmem [resolvable:$true] %s217
          %223 = dma.hbm_to_vmem [thread:$0]  %s216, 512, %s218, %s203, 128, 128, 8
        $region24: #{a_call__.1} parent=15 // pred_fallthru
          _
      $region16: #{a_call__.1} parent=5 // pred_fallthru
        _
      %p224 = scmp.le.s32.totalorder 1, %s16
      %p225 = scmp.lt.s32.totalorder %s16, 5
      %p226 = pnand %p224, %p225
      %p227 = pneg %p226
      // Predicated region
      $region25: #{a_call__.1} parent=5 // pred_check
        _
      $region26: #{a_call__.1} parent=5 // pred_check_branch
        %229 = sbr.rel (%p226) target = $region28
      $region27: #{a_call__.1} parent=5 // pred_region
        %s230 = ssub.s32 %s16, 1
        %s231 = sand.u32 %s52, 1
        %s232 = scalar_lea.sflag [#allocation3], %s231
        %s233 = sand.u32 %s52, 1
        %s234 = smul.addr %s233, 32
        %s235 = scalar_lea.vmem [#allocation2], %s234
        // Predicated region
        $region29: #{a_call__.1} parent=27 // pred_check
          %p236 = pneg %p65
        $region30: #{a_call__.1} parent=27 // pred_check_branch
          %238 = sbr.rel (%p236) target = $region32
        $region31: #{a_call__.1} parent=27 // pred_region
          %239 = dma.done %s232, 512
        $region32: #{a_call__.1} parent=27 // pred_fallthru
          _
        %s240 = sand.u32 %s82, 1
        %s241 = scalar_lea.sflag [#allocation5], %s240
        %s242 = sand.u32 %s82, 1
        %s243 = smul.addr %s242, 32
        %s244 = scalar_lea.vmem [#allocation4], %s243
        // Predicated region
        $region33: #{a_call__.1} parent=27 // pred_check
          %p245 = pneg %p95
        $region34: #{a_call__.1} parent=27 // pred_check_branch
          %247 = sbr.rel (%p245) target = $region36
        $region35: #{a_call__.1} parent=27 // pred_region
          %248 = dma.done %s241, 512
        $region36: #{a_call__.1} parent=27 // pred_fallthru
          _
        %s249 = sand.u32 %s52, 1
        %s250 = scalar_lea.sflag [#allocation3], %s249
        %s251 = sand.u32 %s52, 1
        %s252 = smul.addr %s251, 32
        %s253 = scalar_lea.vmem [#allocation2], %s252
        %p254 = pneg %p65
        %p255 = pneg %p62
        %s256 = sand.u32 %s82, 1
        %s257 = scalar_lea.sflag [#allocation5], %s256
        %s258 = sand.u32 %s82, 1
        %s259 = smul.addr %s258, 32
        %s260 = scalar_lea.vmem [#allocation4], %s259
        %p261 = pneg %p95
        %p262 = pneg %p92
        %p263 = pneg %p125
        %p264 = pneg %p122
        %s265 = smul.u32 2, %s28
        %p266 = scmp.lt.s32.totalorder %s26, 1
        %s267 = scalar_select %p266, %s26, 1
        %p268 = scmp.lt.s32.totalorder %s27, 1
        %s269 = scalar_select %p268, %s27, 1
        %p270 = scmp.lt.s32.totalorder %s265, 1
        %s271 = scalar_select %p270, %s265, 1
        %s272 = smul.addr %s269, 4
        %s273 = sadd.s32 %s271, %s272
        %s274 = smul.addr %s267, 8
        %s275 = sadd.s32 %s273, %s274
        %s276 = smul.addr %s275, 8
        %s277 = scalar_lea.vmem %s2, %s276
        %p278 = pneg %p155
        %p279 = pneg %p152
        %s280 = smul.u32 2, %s28
        %p281 = scmp.lt.s32.totalorder %s26, 1
        %s282 = scalar_select %p281, %s26, 1
        %p283 = scmp.lt.s32.totalorder %s27, 1
        %s284 = scalar_select %p283, %s27, 1
        %p285 = scmp.lt.s32.totalorder %s280, 1
        %s286 = scalar_select %p285, %s280, 1
        %s287 = smul.addr %s284, 2
        %s288 = sadd.s32 %s286, %s287
        %s289 = smul.addr %s282, 4
        %s290 = sadd.s32 %s288, %s289
        %s291 = smul.addr %s290, 8
        %s292 = scalar_lea.vmem %s3, %s291
        %s293 = smul.u32 2, %s28
        %s294 = smul.u32 2, %s28
        %s295 = smul.u32 2, %s28
        %p296 = scmp.lt.s32.totalorder %s26, 1
        %s297 = scalar_select %p296, %s26, 1
        %p298 = scmp.lt.s32.totalorder %s27, 1
        %s299 = scalar_select %p298, %s27, 1
        %p300 = scmp.lt.s32.totalorder %s295, 1
        %s301 = scalar_select %p300, %s295, 1
        %s302 = smul.addr %s299, 4
        %s303 = sadd.s32 %s301, %s302
        %s304 = smul.addr %s297, 8
        %s305 = sadd.s32 %s303, %s304
        %s306 = smul.addr %s305, 8
        %s307 = scalar_lea.vmem %s2, %s306
        %s308 = smul.u32 2, %s28
        %s309 = smul.u32 2, %s28
        %p310 = scmp.lt.s32.totalorder %s26, 1
        %s311 = scalar_select %p310, %s26, 1
        %p312 = scmp.lt.s32.totalorder %s27, 1
        %s313 = scalar_select %p312, %s27, 1
        %p314 = scmp.lt.s32.totalorder %s309, 1
        %s315 = scalar_select %p314, %s309, 1
        %s316 = smul.addr %s313, 2
        %s317 = sadd.s32 %s315, %s316
        %s318 = smul.addr %s311, 4
        %s319 = sadd.s32 %s317, %s318
        %s320 = smul.addr %s319, 8
        %s321 = scalar_lea.vmem %s3, %s320
        %s322 = smul.u32 2, %s28
        %v323 = vld [vmem:[%s235] sm:$0xff]
        %v324 = vld [vmem:[%s235 + $0x8] sm:$0xff]
        %v325 = vld [vmem:[%s235 + $0x10] sm:$0xff]
        %v326 = vld [vmem:[%s235 + $0x18] sm:$0xff]
        %v327 = vcombine.high %v323, 0.0
        %v329 = vunpack.c.l.s4 1983009808
        %v330 = vunpack.c.0.s8 %v329
        %v331 = vlaneseq
        %v332 = vshrl.u32 %v331, 7
        %v333 = vsub.s32 %v330, %v332
        %v334 = vrot.slane %v323, %v333
        %v336 = vunpack.c.l.s4 1983009808
        %v337 = vunpack.c.0.s8 %v336
        %v338 = vlaneseq
        %v339 = vshrl.u32 %v338, 7
        %v340 = vsub.s32 %v337, %v339
        %v341 = vrot.slane %v327, %v340
        %v342 = vcombine.high %v325, 0.0
        %v344 = vunpack.c.l.s4 1983009808
        %v345 = vunpack.c.0.s8 %v344
        %v346 = vlaneseq
        %v347 = vshrl.u32 %v346, 7
        %v348 = vsub.s32 %v345, %v347
        %v349 = vrot.slane %v325, %v348
        %v351 = vunpack.c.l.s4 1983009808
        %v352 = vunpack.c.0.s8 %v351
        %v353 = vlaneseq
        %v354 = vshrl.u32 %v353, 7
        %v355 = vsub.s32 %v352, %v354
        %v356 = vrot.slane %v342, %v355
        %v357 = vcombine.low %v334, %v349
        %v358 = vcombine.high %v334, %v349
        %v360 = vunpack.c.l.s4 1934713408
        %v361 = vunpack.c.0.s8 %v360
        %v362 = vlaneseq
        %v363 = vshrl.u32 %v362, 7
        %v364 = vsub.s32 %v361, %v363
        %v365 = vrot.slane %v357, %v364
        %v367 = vunpack.c.l.s4 1934713408
        %v368 = vunpack.c.0.s8 %v367
        %v369 = vlaneseq
        %v370 = vshrl.u32 %v369, 7
        %v371 = vsub.s32 %v368, %v370
        %v372 = vrot.slane %v358, %v371
        %v373 = vcombine.low %v341, %v356
        %v374 = vcombine.high %v341, %v356
        %v376 = vunpack.c.l.s4 1934713408
        %v377 = vunpack.c.0.s8 %v376
        %v378 = vlaneseq
        %v379 = vshrl.u32 %v378, 7
        %v380 = vsub.s32 %v377, %v379
        %v381 = vrot.slane %v373, %v380
        %v383 = vunpack.c.l.s4 1934713408
        %v384 = vunpack.c.0.s8 %v383
        %v385 = vlaneseq
        %v386 = vshrl.u32 %v385, 7
        %v387 = vsub.s32 %v384, %v386
        %v388 = vrot.slane %v374, %v387
        %v389 = vcombine.high %v365, 0.0
        %v390 = vcombine.high %v372, 0.0
        %v391 = vcombine.high %v381, 0.0
        %v392 = vcombine.high %v388, 0.0
        %v393 = vcombine.high %v324, 0.0
        %v395 = vunpack.c.l.s4 1983009808
        %v396 = vunpack.c.0.s8 %v395
        %v397 = vlaneseq
        %v398 = vshrl.u32 %v397, 7
        %v399 = vsub.s32 %v396, %v398
        %v400 = vrot.slane %v324, %v399
        %v402 = vunpack.c.l.s4 1983009808
        %v403 = vunpack.c.0.s8 %v402
        %v404 = vlaneseq
        %v405 = vshrl.u32 %v404, 7
        %v406 = vsub.s32 %v403, %v405
        %v407 = vrot.slane %v393, %v406
        %v408 = vcombine.high %v326, 0.0
        %v410 = vunpack.c.l.s4 1983009808
        %v411 = vunpack.c.0.s8 %v410
        %v412 = vlaneseq
        %v413 = vshrl.u32 %v412, 7
        %v414 = vsub.s32 %v411, %v413
        %v415 = vrot.slane %v326, %v414
        %v417 = vunpack.c.l.s4 1983009808
        %v418 = vunpack.c.0.s8 %v417
        %v419 = vlaneseq
        %v420 = vshrl.u32 %v419, 7
        %v421 = vsub.s32 %v418, %v420
        %v422 = vrot.slane %v408, %v421
        %v423 = vcombine.low %v400, %v415
        %v424 = vcombine.high %v400, %v415
        %v426 = vunpack.c.l.s4 1934713408
        %v427 = vunpack.c.0.s8 %v426
        %v428 = vlaneseq
        %v429 = vshrl.u32 %v428, 7
        %v430 = vsub.s32 %v427, %v429
        %v431 = vrot.slane %v423, %v430
        %v433 = vunpack.c.l.s4 1934713408
        %v434 = vunpack.c.0.s8 %v433
        %v435 = vlaneseq
        %v436 = vshrl.u32 %v435, 7
        %v437 = vsub.s32 %v434, %v436
        %v438 = vrot.slane %v424, %v437
        %v439 = vcombine.low %v407, %v422
        %v440 = vcombine.high %v407, %v422
        %v442 = vunpack.c.l.s4 1934713408
        %v443 = vunpack.c.0.s8 %v442
        %v444 = vlaneseq
        %v445 = vshrl.u32 %v444, 7
        %v446 = vsub.s32 %v443, %v445
        %v447 = vrot.slane %v439, %v446
        %v449 = vunpack.c.l.s4 1934713408
        %v450 = vunpack.c.0.s8 %v449
        %v451 = vlaneseq
        %v452 = vshrl.u32 %v451, 7
        %v453 = vsub.s32 %v450, %v452
        %v454 = vrot.slane %v440, %v453
        %v455 = vcombine.high %v431, 0.0
        %v456 = vcombine.high %v438, 0.0
        %v457 = vcombine.high %v447, 0.0
        %v458 = vcombine.high %v454, 0.0
        %v459 = vld [vmem:[%s244] sm:$0xff]
        %v460 = vld [vmem:[%s244 + $0x8] sm:$0xff]
        %v461 = vld [vmem:[%s244 + $0x10] sm:$0xff]
        %v462 = vld [vmem:[%s244 + $0x18] sm:$0xff]
        %v463 = vcombine.high %v459, 0.0
        %v465 = vunpack.c.l.s4 1983009808
        %v466 = vunpack.c.0.s8 %v465
        %v467 = vlaneseq
        %v468 = vshrl.u32 %v467, 7
        %v469 = vsub.s32 %v466, %v468
        %v470 = vrot.slane %v459, %v469
        %v472 = vunpack.c.l.s4 1983009808
        %v473 = vunpack.c.0.s8 %v472
        %v474 = vlaneseq
        %v475 = vshrl.u32 %v474, 7
        %v476 = vsub.s32 %v473, %v475
        %v477 = vrot.slane %v463, %v476
        %v478 = vcombine.high %v461, 0.0
        %v480 = vunpack.c.l.s4 1983009808
        %v481 = vunpack.c.0.s8 %v480
        %v482 = vlaneseq
        %v483 = vshrl.u32 %v482, 7
        %v484 = vsub.s32 %v481, %v483
        %v485 = vrot.slane %v461, %v484
        %v487 = vunpack.c.l.s4 1983009808
        %v488 = vunpack.c.0.s8 %v487
        %v489 = vlaneseq
        %v490 = vshrl.u32 %v489, 7
        %v491 = vsub.s32 %v488, %v490
        %v492 = vrot.slane %v478, %v491
        %v493 = vcombine.low %v470, %v485
        %v494 = vcombine.high %v470, %v485
        %v496 = vunpack.c.l.s4 1934713408
        %v497 = vunpack.c.0.s8 %v496
        %v498 = vlaneseq
        %v499 = vshrl.u32 %v498, 7
        %v500 = vsub.s32 %v497, %v499
        %v501 = vrot.slane %v493, %v500
        %v503 = vunpack.c.l.s4 1934713408
        %v504 = vunpack.c.0.s8 %v503
        %v505 = vlaneseq
        %v506 = vshrl.u32 %v505, 7
        %v507 = vsub.s32 %v504, %v506
        %v508 = vrot.slane %v494, %v507
        %v509 = vcombine.low %v477, %v492
        %v510 = vcombine.high %v477, %v492
        %v512 = vunpack.c.l.s4 1934713408
        %v513 = vunpack.c.0.s8 %v512
        %v514 = vlaneseq
        %v515 = vshrl.u32 %v514, 7
        %v516 = vsub.s32 %v513, %v515
        %v517 = vrot.slane %v509, %v516
        %v519 = vunpack.c.l.s4 1934713408
        %v520 = vunpack.c.0.s8 %v519
        %v521 = vlaneseq
        %v522 = vshrl.u32 %v521, 7
        %v523 = vsub.s32 %v520, %v522
        %v524 = vrot.slane %v510, %v523
        %v525 = vcombine.high %v501, 0.0
        %v526 = vcombine.high %v508, 0.0
        %v527 = vcombine.high %v517, 0.0
        %v528 = vcombine.high %v524, 0.0
        %v529 = vcombine.high %v460, 0.0
        %v531 = vunpack.c.l.s4 1983009808
        %v532 = vunpack.c.0.s8 %v531
        %v533 = vlaneseq
        %v534 = vshrl.u32 %v533, 7
        %v535 = vsub.s32 %v532, %v534
        %v536 = vrot.slane %v460, %v535
        %v538 = vunpack.c.l.s4 1983009808
        %v539 = vunpack.c.0.s8 %v538
        %v540 = vlaneseq
        %v541 = vshrl.u32 %v540, 7
        %v542 = vsub.s32 %v539, %v541
        %v543 = vrot.slane %v529, %v542
        %v544 = vcombine.high %v462, 0.0
        %v546 = vunpack.c.l.s4 1983009808
        %v547 = vunpack.c.0.s8 %v546
        %v548 = vlaneseq
        %v549 = vshrl.u32 %v548, 7
        %v550 = vsub.s32 %v547, %v549
        %v551 = vrot.slane %v462, %v550
        %v553 = vunpack.c.l.s4 1983009808
        %v554 = vunpack.c.0.s8 %v553
        %v555 = vlaneseq
        %v556 = vshrl.u32 %v555, 7
        %v557 = vsub.s32 %v554, %v556
        %v558 = vrot.slane %v544, %v557
        %v559 = vcombine.low %v536, %v551
        %v560 = vcombine.high %v536, %v551
        %v562 = vunpack.c.l.s4 1934713408
        %v563 = vunpack.c.0.s8 %v562
        %v564 = vlaneseq
        %v565 = vshrl.u32 %v564, 7
        %v566 = vsub.s32 %v563, %v565
        %v567 = vrot.slane %v559, %v566
        %v569 = vunpack.c.l.s4 1934713408
        %v570 = vunpack.c.0.s8 %v569
        %v571 = vlaneseq
        %v572 = vshrl.u32 %v571, 7
        %v573 = vsub.s32 %v570, %v572
        %v574 = vrot.slane %v560, %v573
        %v575 = vcombine.low %v543, %v558
        %v576 = vcombine.high %v543, %v558
        %v578 = vunpack.c.l.s4 1934713408
        %v579 = vunpack.c.0.s8 %v578
        %v580 = vlaneseq
        %v581 = vshrl.u32 %v580, 7
        %v582 = vsub.s32 %v579, %v581
        %v583 = vrot.slane %v575, %v582
        %v585 = vunpack.c.l.s4 1934713408
        %v586 = vunpack.c.0.s8 %v585
        %v587 = vlaneseq
        %v588 = vshrl.u32 %v587, 7
        %v589 = vsub.s32 %v586, %v588
        %v590 = vrot.slane %v576, %v589
        %v591 = vcombine.high %v567, 0.0
        %v592 = vcombine.high %v574, 0.0
        %v593 = vcombine.high %v583, 0.0
        %v594 = vcombine.high %v590, 0.0
        %595 = vxpose.xlu0.b32.start [1/16] %v365, 128
        %596 = vxpose.xlu0.b32.cont [2/16] 0.0, 128
        %597 = vxpose.xlu0.b32.cont [3/16] 0.0, 128
        %598 = vxpose.xlu0.b32.cont [4/16] 0.0, 128
        %599 = vxpose.xlu0.b32.cont [5/16] 0.0, 128
        %600 = vxpose.xlu0.b32.cont [6/16] 0.0, 128
        %601 = vxpose.xlu0.b32.cont [7/16] 0.0, 128
        %602 = vxpose.xlu0.b32.cont [8/16] 0.0, 128
        %603 = vxpose.xlu0.b32.cont [9/16] 0.0, 128
        %604 = vxpose.xlu0.b32.cont [10/16] 0.0, 128
        %605 = vxpose.xlu0.b32.cont [11/16] 0.0, 128
        %606 = vxpose.xlu0.b32.cont [12/16] 0.0, 128
        %607 = vxpose.xlu0.b32.cont [13/16] 0.0, 128
        %608 = vxpose.xlu0.b32.cont [14/16] 0.0, 128
        %609 = vxpose.xlu0.b32.cont [15/16] 0.0, 128
        %610 = vxpose.xlu0.b32.end [16/16] 0.0, 128
        %v611 = vpop.trf.xlu0
        %v612 = vpop.trf.xlu0
        %v613 = vpop.trf.xlu0
        %v614 = vpop.trf.xlu0
        %v615 = vpop.trf.xlu0
        %v616 = vpop.trf.xlu0
        %v617 = vpop.trf.xlu0
        %v618 = vpop.trf.xlu0
        %v619 = vpop.trf.xlu0
        %v620 = vpop.trf.xlu0
        %v621 = vpop.trf.xlu0
        %v622 = vpop.trf.xlu0
        %v623 = vpop.trf.xlu0
        %v624 = vpop.trf.xlu0
        %v625 = vpop.trf.xlu0
        %v626 = vpop.trf.xlu0
        %vm627 = vcmask 15360
        %v629 = vsel %vm627, %v611, 0
        %v632 = vsel %vm627, %v612, 0
        %vm634 = vcmask 1041408
        %v636 = vsel %vm634, %v501, 0
        %638 = vmatprep.subr.mxu0 0.0
        %639 = vmatpush1.msra.mxu0 %v636
        %640 = vmatprep.subr.mxu0 0.0
        %641 = vmatpush1.msra.mxu0 0.0
        %642 = vmatprep.subr.mxu0 0.0
        %643 = vmatpush1.msra.mxu0 0.0
        %644 = vmatprep.subr.mxu0 0.0
        %645 = vmatpush1.msra.mxu0 0.0
        %646 = vmatprep.subr.mxu0 0.0
        %647 = vmatpush1.msra.mxu0 0.0
        %648 = vmatprep.subr.mxu0 0.0
        %649 = vmatpush1.msra.mxu0 0.0
        %650 = vmatprep.subr.mxu0 0.0
        %651 = vmatpush1.msra.mxu0 0.0
        %652 = vmatprep.subr.mxu0 0.0
        %653 = vmatpush1.msra.mxu0 0.0
        %654 = vmatprep.subr.mxu0 0.0
        %655 = vmatpush1.msra.mxu0 0.0
        %656 = vmatprep.subr.mxu0 0.0
        %657 = vmatpush1.msra.mxu0 0.0
        %658 = vmatprep.subr.mxu0 0.0
        %659 = vmatpush1.msra.mxu0 0.0
        %660 = vmatprep.subr.mxu0 0.0
        %661 = vmatpush1.msra.mxu0 0.0
        %662 = vmatprep.subr.mxu0 0.0
        %663 = vmatpush1.msra.mxu0 0.0
        %664 = vmatprep.subr.mxu0 0.0
        %665 = vmatpush1.msra.mxu0 0.0
        %666 = vmatprep.subr.mxu0 0.0
        %667 = vmatpush1.msra.mxu0 0.0
        %668 = vmatprep.subr.mxu0 0.0
        %669 = vmatpush1.msra.mxu0 0.0
        %670 = vmatprep.subr.mxu0 0.0
        %671 = vmatpush1.msra.mxu0 0.0
        %672 = vmatprep.subr.mxu0 0.0
        %673 = vmatpush1.msra.mxu0 0.0
        %674 = vmatprep.subr.mxu0 0.0
        %675 = vmatpush1.msra.mxu0 0.0
        %676 = vmatprep.subr.mxu0 0.0
        %677 = vmatpush1.msra.mxu0 0.0
        %678 = vmatprep.subr.mxu0 0.0
        %679 = vmatpush1.msra.mxu0 0.0
        %680 = vmatprep.subr.mxu0 0.0
        %681 = vmatpush1.msra.mxu0 0.0
        %682 = vmatprep.subr.mxu0 0.0
        %683 = vmatpush1.msra.mxu0 0.0
        %684 = vmatprep.subr.mxu0 0.0
        %685 = vmatpush1.msra.mxu0 0.0
        %686 = vmatprep.subr.mxu0 0.0
        %687 = vmatpush1.msra.mxu0 0.0
        %688 = vmatprep.subr.mxu0 0.0
        %689 = vmatpush1.msra.mxu0 0.0
        %690 = vmatprep.subr.mxu0 0.0
        %691 = vmatpush1.msra.mxu0 0.0
        %692 = vmatprep.subr.mxu0 0.0
        %693 = vmatpush1.msra.mxu0 0.0
        %694 = vmatprep.subr.mxu0 0.0
        %695 = vmatpush1.msra.mxu0 0.0
        %696 = vmatprep.subr.mxu0 0.0
        %697 = vmatpush1.msra.mxu0 0.0
        %698 = vmatprep.subr.mxu0 0.0
        %699 = vmatpush1.msra.mxu0 0.0
        %700 = vmatprep.subr.mxu0 0.0
        %701 = vmatpush1.msra.mxu0 0.0
        %702 = vmatprep.mubr.f32.mxu0 0.0
        %703 = vmatmul.mubr.f32.gmra.mrb[0].mxu0 %v629
        %v704 = vpop.f32.mrb[0].mxu0
        %v705 = vadd.f32 0.0, %v704
        %v706 = vpop.f32.mrb[0].mxu0
        %707 = vmatprep.mubr.f32.mxu0 0.0
        %708 = vmatmul.mubr.f32.gmra.mrb[0].mxu0 %v632
        %v709 = vpop.f32.mrb[0].mxu0
        %v710 = vadd.f32 0.0, %v709
        %v711 = vpop.f32.mrb[0].mxu0
        %712 = vdwg.mxu0
        %713 = vxpose.xlu0.b32.start [1/16] %v389, 128
        %714 = vxpose.xlu0.b32.cont [2/16] 0.0, 128
        %715 = vxpose.xlu0.b32.cont [3/16] 0.0, 128
        %716 = vxpose.xlu0.b32.cont [4/16] 0.0, 128
        %717 = vxpose.xlu0.b32.cont [5/16] 0.0, 128
        %718 = vxpose.xlu0.b32.cont [6/16] 0.0, 128
        %719 = vxpose.xlu0.b32.cont [7/16] 0.0, 128
        %720 = vxpose.xlu0.b32.cont [8/16] 0.0, 128
        %721 = vxpose.xlu0.b32.cont [9/16] 0.0, 128
        %722 = vxpose.xlu0.b32.cont [10/16] 0.0, 128
        %723 = vxpose.xlu0.b32.cont [11/16] 0.0, 128
        %724 = vxpose.xlu0.b32.cont [12/16] 0.0, 128
        %725 = vxpose.xlu0.b32.cont [13/16] 0.0, 128
        %726 = vxpose.xlu0.b32.cont [14/16] 0.0, 128
        %727 = vxpose.xlu0.b32.cont [15/16] 0.0, 128
        %728 = vxpose.xlu0.b32.end [16/16] 0.0, 128
        %v729 = vpop.trf.xlu0
        %v730 = vpop.trf.xlu0
        %v731 = vpop.trf.xlu0
        %v732 = vpop.trf.xlu0
        %v733 = vpop.trf.xlu0
        %v734 = vpop.trf.xlu0
        %v735 = vpop.trf.xlu0
        %v736 = vpop.trf.xlu0
        %v737 = vpop.trf.xlu0
        %v738 = vpop.trf.xlu0
        %v739 = vpop.trf.xlu0
        %v740 = vpop.trf.xlu0
        %v741 = vpop.trf.xlu0
        %v742 = vpop.trf.xlu0
        %v743 = vpop.trf.xlu0
        %v744 = vpop.trf.xlu0
        %v746 = vsel %vm627, %v729, 0
        %v749 = vsel %vm627, %v730, 0
        %v752 = vsel %vm634, %v525, 0
        %754 = vmatprep.subr.mxu0 0.0
        %755 = vmatpush1.msra.mxu0 %v752
        %756 = vmatprep.subr.mxu0 0.0
        %757 = vmatpush1.msra.mxu0 0.0
        %758 = vmatprep.subr.mxu0 0.0
        %759 = vmatpush1.msra.mxu0 0.0
        %760 = vmatprep.subr.mxu0 0.0
        %761 = vmatpush1.msra.mxu0 0.0
        %762 = vmatprep.subr.mxu0 0.0
        %763 = vmatpush1.msra.mxu0 0.0
        %764 = vmatprep.subr.mxu0 0.0
        %765 = vmatpush1.msra.mxu0 0.0
        %766 = vmatprep.subr.mxu0 0.0
        %767 = vmatpush1.msra.mxu0 0.0
        %768 = vmatprep.subr.mxu0 0.0
        %769 = vmatpush1.msra.mxu0 0.0
        %770 = vmatprep.subr.mxu0 0.0
        %771 = vmatpush1.msra.mxu0 0.0
        %772 = vmatprep.subr.mxu0 0.0
        %773 = vmatpush1.msra.mxu0 0.0
        %774 = vmatprep.subr.mxu0 0.0
        %775 = vmatpush1.msra.mxu0 0.0
        %776 = vmatprep.subr.mxu0 0.0
        %777 = vmatpush1.msra.mxu0 0.0
        %778 = vmatprep.subr.mxu0 0.0
        %779 = vmatpush1.msra.mxu0 0.0
        %780 = vmatprep.subr.mxu0 0.0
        %781 = vmatpush1.msra.mxu0 0.0
        %782 = vmatprep.subr.mxu0 0.0
        %783 = vmatpush1.msra.mxu0 0.0
        %784 = vmatprep.subr.mxu0 0.0
        %785 = vmatpush1.msra.mxu0 0.0
        %786 = vmatprep.subr.mxu0 0.0
        %787 = vmatpush1.msra.mxu0 0.0
        %788 = vmatprep.subr.mxu0 0.0
        %789 = vmatpush1.msra.mxu0 0.0
        %790 = vmatprep.subr.mxu0 0.0
        %791 = vmatpush1.msra.mxu0 0.0
        %792 = vmatprep.subr.mxu0 0.0
        %793 = vmatpush1.msra.mxu0 0.0
        %794 = vmatprep.subr.mxu0 0.0
        %795 = vmatpush1.msra.mxu0 0.0
        %796 = vmatprep.subr.mxu0 0.0
        %797 = vmatpush1.msra.mxu0 0.0
        %798 = vmatprep.subr.mxu0 0.0
        %799 = vmatpush1.msra.mxu0 0.0
        %800 = vmatprep.subr.mxu0 0.0
        %801 = vmatpush1.msra.mxu0 0.0
        %802 = vmatprep.subr.mxu0 0.0
        %803 = vmatpush1.msra.mxu0 0.0
        %804 = vmatprep.subr.mxu0 0.0
        %805 = vmatpush1.msra.mxu0 0.0
        %806 = vmatprep.subr.mxu0 0.0
        %807 = vmatpush1.msra.mxu0 0.0
        %808 = vmatprep.subr.mxu0 0.0
        %809 = vmatpush1.msra.mxu0 0.0
        %810 = vmatprep.subr.mxu0 0.0
        %811 = vmatpush1.msra.mxu0 0.0
        %812 = vmatprep.subr.mxu0 0.0
        %813 = vmatpush1.msra.mxu0 0.0
        %814 = vmatprep.subr.mxu0 0.0
        %815 = vmatpush1.msra.mxu0 0.0
        %816 = vmatprep.subr.mxu0 0.0
        %817 = vmatpush1.msra.mxu0 0.0
        %818 = vmatprep.mubr.f32.mxu0 0.0
        %819 = vmatmul.mubr.f32.gmra.mrb[0].mxu0 %v746
        %v820 = vpop.f32.mrb[0].mxu0
        %v821 = vadd.f32 0.0, %v820
        %v822 = vpop.f32.mrb[0].mxu0
        %823 = vmatprep.mubr.f32.mxu0 0.0
        %824 = vmatmul.mubr.f32.gmra.mrb[0].mxu0 %v749
        %v825 = vpop.f32.mrb[0].mxu0
        %v826 = vadd.f32 0.0, %v825
        %v827 = vpop.f32.mrb[0].mxu0
        %828 = vdwg.mxu0
        %829 = vxpose.xlu0.b32.start [1/16] %v372, 128
        %830 = vxpose.xlu0.b32.cont [2/16] 0.0, 128
        %831 = vxpose.xlu0.b32.cont [3/16] 0.0, 128
        %832 = vxpose.xlu0.b32.cont [4/16] 0.0, 128
        %833 = vxpose.xlu0.b32.cont [5/16] 0.0, 128
        %834 = vxpose.xlu0.b32.cont [6/16] 0.0, 128
        %835 = vxpose.xlu0.b32.cont [7/16] 0.0, 128
        %836 = vxpose.xlu0.b32.cont [8/16] 0.0, 128
        %837 = vxpose.xlu0.b32.cont [9/16] 0.0, 128
        %838 = vxpose.xlu0.b32.cont [10/16] 0.0, 128
        %839 = vxpose.xlu0.b32.cont [11/16] 0.0, 128
        %840 = vxpose.xlu0.b32.cont [12/16] 0.0, 128
        %841 = vxpose.xlu0.b32.cont [13/16] 0.0, 128
        %842 = vxpose.xlu0.b32.cont [14/16] 0.0, 128
        %843 = vxpose.xlu0.b32.cont [15/16] 0.0, 128
        %844 = vxpose.xlu0.b32.end [16/16] 0.0, 128
        %v845 = vpop.trf.xlu0
        %v846 = vpop.trf.xlu0
        %v847 = vpop.trf.xlu0
        %v848 = vpop.trf.xlu0
        %v849 = vpop.trf.xlu0
        %v850 = vpop.trf.xlu0
        %v851 = vpop.trf.xlu0
        %v852 = vpop.trf.xlu0
        %v853 = vpop.trf.xlu0
        %v854 = vpop.trf.xlu0
        %v855 = vpop.trf.xlu0
        %v856 = vpop.trf.xlu0
        %v857 = vpop.trf.xlu0
        %v858 = vpop.trf.xlu0
        %v859 = vpop.trf.xlu0
        %v860 = vpop.trf.xlu0
        %v862 = vsel %vm627, %v845, 0
        %v865 = vsel %vm627, %v846, 0
        %v868 = vsel %vm634, %v508, 0
        %870 = vmatprep.subr.mxu0 0.0
        %871 = vmatpush1.msra.mxu0 %v868
        %872 = vmatprep.subr.mxu0 0.0
        %873 = vmatpush1.msra.mxu0 0.0
        %874 = vmatprep.subr.mxu0 0.0
        %875 = vmatpush1.msra.mxu0 0.0
        %876 = vmatprep.subr.mxu0 0.0
        %877 = vmatpush1.msra.mxu0 0.0
        %878 = vmatprep.subr.mxu0 0.0
        %879 = vmatpush1.msra.mxu0 0.0
        %880 = vmatprep.subr.mxu0 0.0
        %881 = vmatpush1.msra.mxu0 0.0
        %882 = vmatprep.subr.mxu0 0.0
        %883 = vmatpush1.msra.mxu0 0.0
        %884 = vmatprep.subr.mxu0 0.0
        %885 = vmatpush1.msra.mxu0 0.0
        %886 = vmatprep.subr.mxu0 0.0
        %887 = vmatpush1.msra.mxu0 0.0
        %888 = vmatprep.subr.mxu0 0.0
        %889 = vmatpush1.msra.mxu0 0.0
        %890 = vmatprep.subr.mxu0 0.0
        %891 = vmatpush1.msra.mxu0 0.0
        %892 = vmatprep.subr.mxu0 0.0
        %893 = vmatpush1.msra.mxu0 0.0
        %894 = vmatprep.subr.mxu0 0.0
        %895 = vmatpush1.msra.mxu0 0.0
        %896 = vmatprep.subr.mxu0 0.0
        %897 = vmatpush1.msra.mxu0 0.0
        %898 = vmatprep.subr.mxu0 0.0
        %899 = vmatpush1.msra.mxu0 0.0
        %900 = vmatprep.subr.mxu0 0.0
        %901 = vmatpush1.msra.mxu0 0.0
        %902 = vmatprep.subr.mxu0 0.0
        %903 = vmatpush1.msra.mxu0 0.0
        %904 = vmatprep.subr.mxu0 0.0
        %905 = vmatpush1.msra.mxu0 0.0
        %906 = vmatprep.subr.mxu0 0.0
        %907 = vmatpush1.msra.mxu0 0.0
        %908 = vmatprep.subr.mxu0 0.0
        %909 = vmatpush1.msra.mxu0 0.0
        %910 = vmatprep.subr.mxu0 0.0
        %911 = vmatpush1.msra.mxu0 0.0
        %912 = vmatprep.subr.mxu0 0.0
        %913 = vmatpush1.msra.mxu0 0.0
        %914 = vmatprep.subr.mxu0 0.0
        %915 = vmatpush1.msra.mxu0 0.0
        %916 = vmatprep.subr.mxu0 0.0
        %917 = vmatpush1.msra.mxu0 0.0
        %918 = vmatprep.subr.mxu0 0.0
        %919 = vmatpush1.msra.mxu0 0.0
        %920 = vmatprep.subr.mxu0 0.0
        %921 = vmatpush1.msra.mxu0 0.0
        %922 = vmatprep.subr.mxu0 0.0
        %923 = vmatpush1.msra.mxu0 0.0
        %924 = vmatprep.subr.mxu0 0.0
        %925 = vmatpush1.msra.mxu0 0.0
        %926 = vmatprep.subr.mxu0 0.0
        %927 = vmatpush1.msra.mxu0 0.0
        %928 = vmatprep.subr.mxu0 0.0
        %929 = vmatpush1.msra.mxu0 0.0
        %930 = vmatprep.subr.mxu0 0.0
        %931 = vmatpush1.msra.mxu0 0.0
        %932 = vmatprep.subr.mxu0 0.0
        %933 = vmatpush1.msra.mxu0 0.0
        %934 = vmatprep.mubr.f32.mxu0 0.0
        %935 = vmatmul.mubr.f32.gmra.mrb[0].mxu0 %v862
        %v936 = vpop.f32.mrb[0].mxu0
        %v937 = vadd.f32 0.0, %v936
        %v938 = vpop.f32.mrb[0].mxu0
        %939 = vmatprep.mubr.f32.mxu0 0.0
        %940 = vmatmul.mubr.f32.gmra.mrb[0].mxu0 %v865
        %v941 = vpop.f32.mrb[0].mxu0
        %v942 = vadd.f32 0.0, %v941
        %v943 = vpop.f32.mrb[0].mxu0
        %944 = vdwg.mxu0
        %945 = vxpose.xlu0.b32.start [1/16] %v390, 128
        %946 = vxpose.xlu0.b32.cont [2/16] 0.0, 128
        %947 = vxpose.xlu0.b32.cont [3/16] 0.0, 128
        %948 = vxpose.xlu0.b32.cont [4/16] 0.0, 128
        %949 = vxpose.xlu0.b32.cont [5/16] 0.0, 128
        %950 = vxpose.xlu0.b32.cont [6/16] 0.0, 128
        %951 = vxpose.xlu0.b32.cont [7/16] 0.0, 128
        %952 = vxpose.xlu0.b32.cont [8/16] 0.0, 128
        %953 = vxpose.xlu0.b32.cont [9/16] 0.0, 128
        %954 = vxpose.xlu0.b32.cont [10/16] 0.0, 128
        %955 = vxpose.xlu0.b32.cont [11/16] 0.0, 128
        %956 = vxpose.xlu0.b32.cont [12/16] 0.0, 128
        %957 = vxpose.xlu0.b32.cont [13/16] 0.0, 128
        %958 = vxpose.xlu0.b32.cont [14/16] 0.0, 128
        %959 = vxpose.xlu0.b32.cont [15/16] 0.0, 128
        %960 = vxpose.xlu0.b32.end [16/16] 0.0, 128
        %v961 = vpop.trf.xlu0
        %v962 = vpop.trf.xlu0
        %v963 = vpop.trf.xlu0
        %v964 = vpop.trf.xlu0
        %v965 = vpop.trf.xlu0
        %v966 = vpop.trf.xlu0
        %v967 = vpop.trf.xlu0
        %v968 = vpop.trf.xlu0
        %v969 = vpop.trf.xlu0
        %v970 = vpop.trf.xlu0
        %v971 = vpop.trf.xlu0
        %v972 = vpop.trf.xlu0
        %v973 = vpop.trf.xlu0
        %v974 = vpop.trf.xlu0
        %v975 = vpop.trf.xlu0
        %v976 = vpop.trf.xlu0
        %v978 = vsel %vm627, %v961, 0
        %v981 = vsel %vm627, %v962, 0
        %v984 = vsel %vm634, %v526, 0
        %986 = vmatprep.subr.mxu0 0.0
        %987 = vmatpush1.msra.mxu0 %v984
        %988 = vmatprep.subr.mxu0 0.0
        %989 = vmatpush1.msra.mxu0 0.0
        %990 = vmatprep.subr.mxu0 0.0
        %991 = vmatpush1.msra.mxu0 0.0
        %992 = vmatprep.subr.mxu0 0.0
        %993 = vmatpush1.msra.mxu0 0.0
        %994 = vmatprep.subr.mxu0 0.0
        %995 = vmatpush1.msra.mxu0 0.0
        %996 = vmatprep.subr.mxu0 0.0
        %997 = vmatpush1.msra.mxu0 0.0
        %998 = vmatprep.subr.mxu0 0.0
        %999 = vmatpush1.msra.mxu0 0.0
        %1000 = vmatprep.subr.mxu0 0.0
        %1001 = vmatpush1.msra.mxu0 0.0
        %1002 = vmatprep.subr.mxu0 0.0
        %1003 = vmatpush1.msra.mxu0 0.0
        %1004 = vmatprep.subr.mxu0 0.0
        %1005 = vmatpush1.msra.mxu0 0.0
        %1006 = vmatprep.subr.mxu0 0.0
        %1007 = vmatpush1.msra.mxu0 0.0
        %1008 = vmatprep.subr.mxu0 0.0
        %1009 = vmatpush1.msra.mxu0 0.0
        %1010 = vmatprep.subr.mxu0 0.0
        %1011 = vmatpush1.msra.mxu0 0.0
        %1012 = vmatprep.subr.mxu0 0.0
        %1013 = vmatpush1.msra.mxu0 0.0
        %1014 = vmatprep.subr.mxu0 0.0
        %1015 = vmatpush1.msra.mxu0 0.0
        %1016 = vmatprep.subr.mxu0 0.0
        %1017 = vmatpush1.msra.mxu0 0.0
        %1018 = vmatprep.subr.mxu0 0.0
        %1019 = vmatpush1.msra.mxu0 0.0
        %1020 = vmatprep.subr.mxu0 0.0
        %1021 = vmatpush1.msra.mxu0 0.0
        %1022 = vmatprep.subr.mxu0 0.0
        %1023 = vmatpush1.msra.mxu0 0.0
        %1024 = vmatprep.subr.mxu0 0.0
        %1025 = vmatpush1.msra.mxu0 0.0
        %1026 = vmatprep.subr.mxu0 0.0
        %1027 = vmatpush1.msra.mxu0 0.0
        %1028 = vmatprep.subr.mxu0 0.0
        %1029 = vmatpush1.msra.mxu0 0.0
        %1030 = vmatprep.subr.mxu0 0.0
        %1031 = vmatpush1.msra.mxu0 0.0
        %1032 = vmatprep.subr.mxu0 0.0
        %1033 = vmatpush1.msra.mxu0 0.0
        %1034 = vmatprep.subr.mxu0 0.0
        %1035 = vmatpush1.msra.mxu0 0.0
        %1036 = vmatprep.subr.mxu0 0.0
        %1037 = vmatpush1.msra.mxu0 0.0
        %1038 = vmatprep.subr.mxu0 0.0
        %1039 = vmatpush1.msra.mxu0 0.0
        %1040 = vmatprep.subr.mxu0 0.0
        %1041 = vmatpush1.msra.mxu0 0.0
        %1042 = vmatprep.subr.mxu0 0.0
        %1043 = vmatpush1.msra.mxu0 0.0
        %1044 = vmatprep.subr.mxu0 0.0
        %1045 = vmatpush1.msra.mxu0 0.0
        %1046 = vmatprep.subr.mxu0 0.0
        %1047 = vmatpush1.msra.mxu0 0.0
        %1048 = vmatprep.subr.mxu0 0.0
        %1049 = vmatpush1.msra.mxu0 0.0
        %1050 = vmatprep.mubr.f32.mxu0 0.0
        %1051 = vmatmul.mubr.f32.gmra.mrb[0].mxu0 %v978
        %v1052 = vpop.f32.mrb[0].mxu0
        %v1053 = vadd.f32 0.0, %v1052
        %v1054 = vpop.f32.mrb[0].mxu0
        %1055 = vmatprep.mubr.f32.mxu0 0.0
        %1056 = vmatmul.mubr.f32.gmra.mrb[0].mxu0 %v981
        %v1057 = vpop.f32.mrb[0].mxu0
        %v1058 = vadd.f32 0.0, %v1057
        %v1059 = vpop.f32.mrb[0].mxu0
        %1060 = vdwg.mxu0
        %1061 = vxpose.xlu0.b32.start [1/16] %v381, 128
        %1062 = vxpose.xlu0.b32.cont [2/16] 0.0, 128
        %1063 = vxpose.xlu0.b32.cont [3/16] 0.0, 128
        %1064 = vxpose.xlu0.b32.cont [4/16] 0.0, 128
        %1065 = vxpose.xlu0.b32.cont [5/16] 0.0, 128
        %1066 = vxpose.xlu0.b32.cont [6/16] 0.0, 128
        %1067 = vxpose.xlu0.b32.cont [7/16] 0.0, 128
        %1068 = vxpose.xlu0.b32.cont [8/16] 0.0, 128
        %1069 = vxpose.xlu0.b32.cont [9/16] 0.0, 128
        %1070 = vxpose.xlu0.b32.cont [10/16] 0.0, 128
        %1071 = vxpose.xlu0.b32.cont [11/16] 0.0, 128
        %1072 = vxpose.xlu0.b32.cont [12/16] 0.0, 128
        %1073 = vxpose.xlu0.b32.cont [13/16] 0.0, 128
        %1074 = vxpose.xlu0.b32.cont [14/16] 0.0, 128
        %1075 = vxpose.xlu0.b32.cont [15/16] 0.0, 128
        %1076 = vxpose.xlu0.b32.end [16/16] 0.0, 128
        %v1077 = vpop.trf.xlu0
        %v1078 = vpop.trf.xlu0
        %v1079 = vpop.trf.xlu0
        %v1080 = vpop.trf.xlu0
        %v1081 = vpop.trf.xlu0
        %v1082 = vpop.trf.xlu0
        %v1083 = vpop.trf.xlu0
        %v1084 = vpop.trf.xlu0
        %v1085 = vpop.trf.xlu0
        %v1086 = vpop.trf.xlu0
        %v1087 = vpop.trf.xlu0
        %v1088 = vpop.trf.xlu0
        %v1089 = vpop.trf.xlu0
        %v1090 = vpop.trf.xlu0
        %v1091 = vpop.trf.xlu0
        %v1092 = vpop.trf.xlu0
        %v1094 = vsel %vm627, %v1077, 0
        %v1097 = vsel %vm627, %v1078, 0
        %v1100 = vsel %vm634, %v517, 0
        %1102 = vmatprep.subr.mxu0 0.0
        %1103 = vmatpush1.msra.mxu0 %v1100
        %1104 = vmatprep.subr.mxu0 0.0
        %1105 = vmatpush1.msra.mxu0 0.0
        %1106 = vmatprep.subr.mxu0 0.0
        %1107 = vmatpush1.msra.mxu0 0.0
        %1108 = vmatprep.subr.mxu0 0.0
        %1109 = vmatpush1.msra.mxu0 0.0
        %1110 = vmatprep.subr.mxu0 0.0
        %1111 = vmatpush1.msra.mxu0 0.0
        %1112 = vmatprep.subr.mxu0 0.0
        %1113 = vmatpush1.msra.mxu0 0.0
        %1114 = vmatprep.subr.mxu0 0.0
        %1115 = vmatpush1.msra.mxu0 0.0
        %1116 = vmatprep.subr.mxu0 0.0
        %1117 = vmatpush1.msra.mxu0 0.0
        %1118 = vmatprep.subr.mxu0 0.0
        %1119 = vmatpush1.msra.mxu0 0.0
        %1120 = vmatprep.subr.mxu0 0.0
        %1121 = vmatpush1.msra.mxu0 0.0
        %1122 = vmatprep.subr.mxu0 0.0
        %1123 = vmatpush1.msra.mxu0 0.0
        %1124 = vmatprep.subr.mxu0 0.0
        %1125 = vmatpush1.msra.mxu0 0.0
        %1126 = vmatprep.subr.mxu0 0.0
        %1127 = vmatpush1.msra.mxu0 0.0
        %1128 = vmatprep.subr.mxu0 0.0
        %1129 = vmatpush1.msra.mxu0 0.0
        %1130 = vmatprep.subr.mxu0 0.0
        %1131 = vmatpush1.msra.mxu0 0.0
        %1132 = vmatprep.subr.mxu0 0.0
        %1133 = vmatpush1.msra.mxu0 0.0
        %1134 = vmatprep.subr.mxu0 0.0
        %1135 = vmatpush1.msra.mxu0 0.0
        %1136 = vmatprep.subr.mxu0 0.0
        %1137 = vmatpush1.msra.mxu0 0.0
        %1138 = vmatprep.subr.mxu0 0.0
        %1139 = vmatpush1.msra.mxu0 0.0
        %1140 = vmatprep.subr.mxu0 0.0
        %1141 = vmatpush1.msra.mxu0 0.0
        %1142 = vmatprep.subr.mxu0 0.0
        %1143 = vmatpush1.msra.mxu0 0.0
        %1144 = vmatprep.subr.mxu0 0.0
        %1145 = vmatpush1.msra.mxu0 0.0
        %1146 = vmatprep.subr.mxu0 0.0
        %1147 = vmatpush1.msra.mxu0 0.0
        %1148 = vmatprep.subr.mxu0 0.0
        %1149 = vmatpush1.msra.mxu0 0.0
        %1150 = vmatprep.subr.mxu0 0.0
        %1151 = vmatpush1.msra.mxu0 0.0
        %1152 = vmatprep.subr.mxu0 0.0
        %1153 = vmatpush1.msra.mxu0 0.0
        %1154 = vmatprep.subr.mxu0 0.0
        %1155 = vmatpush1.msra.mxu0 0.0
        %1156 = vmatprep.subr.mxu0 0.0
        %1157 = vmatpush1.msra.mxu0 0.0
        %1158 = vmatprep.subr.mxu0 0.0
        %1159 = vmatpush1.msra.mxu0 0.0
        %1160 = vmatprep.subr.mxu0 0.0
        %1161 = vmatpush1.msra.mxu0 0.0
        %1162 = vmatprep.subr.mxu0 0.0
        %1163 = vmatpush1.msra.mxu0 0.0
        %1164 = vmatprep.subr.mxu0 0.0
        %1165 = vmatpush1.msra.mxu0 0.0
        %1166 = vmatprep.mubr.f32.mxu0 0.0
        %1167 = vmatmul.mubr.f32.gmra.mrb[0].mxu0 %v1094
        %v1168 = vpop.f32.mrb[0].mxu0
        %v1169 = vadd.f32 0.0, %v1168
        %v1170 = vpop.f32.mrb[0].mxu0
        %1171 = vmatprep.mubr.f32.mxu0 0.0
        %1172 = vmatmul.mubr.f32.gmra.mrb[0].mxu0 %v1097
        %v1173 = vpop.f32.mrb[0].mxu0
        %v1174 = vadd.f32 0.0, %v1173
        %v1175 = vpop.f32.mrb[0].mxu0
        %1176 = vdwg.mxu0
        %1177 = vxpose.xlu0.b32.start [1/16] %v391, 128
        %1178 = vxpose.xlu0.b32.cont [2/16] 0.0, 128
        %1179 = vxpose.xlu0.b32.cont [3/16] 0.0, 128
        %1180 = vxpose.xlu0.b32.cont [4/16] 0.0, 128
        %1181 = vxpose.xlu0.b32.cont [5/16] 0.0, 128
        %1182 = vxpose.xlu0.b32.cont [6/16] 0.0, 128
        %1183 = vxpose.xlu0.b32.cont [7/16] 0.0, 128
        %1184 = vxpose.xlu0.b32.cont [8/16] 0.0, 128
        %1185 = vxpose.xlu0.b32.cont [9/16] 0.0, 128
        %1186 = vxpose.xlu0.b32.cont [10/16] 0.0, 128
        %1187 = vxpose.xlu0.b32.cont [11/16] 0.0, 128
        %1188 = vxpose.xlu0.b32.cont [12/16] 0.0, 128
        %1189 = vxpose.xlu0.b32.cont [13/16] 0.0, 128
        %1190 = vxpose.xlu0.b32.cont [14/16] 0.0, 128
        %1191 = vxpose.xlu0.b32.cont [15/16] 0.0, 128
        %1192 = vxpose.xlu0.b32.end [16/16] 0.0, 128
        %v1193 = vpop.trf.xlu0
        %v1194 = vpop.trf.xlu0
        %v1195 = vpop.trf.xlu0
        %v1196 = vpop.trf.xlu0
        %v1197 = vpop.trf.xlu0
        %v1198 = vpop.trf.xlu0
        %v1199 = vpop.trf.xlu0
        %v1200 = vpop.trf.xlu0
        %v1201 = vpop.trf.xlu0
        %v1202 = vpop.trf.xlu0
        %v1203 = vpop.trf.xlu0
        %v1204 = vpop.trf.xlu0
        %v1205 = vpop.trf.xlu0
        %v1206 = vpop.trf.xlu0
        %v1207 = vpop.trf.xlu0
        %v1208 = vpop.trf.xlu0
        %v1210 = vsel %vm627, %v1193, 0
        %v1213 = vsel %vm627, %v1194, 0
        %v1216 = vsel %vm634, %v527, 0
        %1218 = vmatprep.subr.mxu0 0.0
        %1219 = vmatpush1.msra.mxu0 %v1216
        %1220 = vmatprep.subr.mxu0 0.0
        %1221 = vmatpush1.msra.mxu0 0.0
        %1222 = vmatprep.subr.mxu0 0.0
        %1223 = vmatpush1.msra.mxu0 0.0
        %1224 = vmatprep.subr.mxu0 0.0
        %1225 = vmatpush1.msra.mxu0 0.0
        %1226 = vmatprep.subr.mxu0 0.0
        %1227 = vmatpush1.msra.mxu0 0.0
        %1228 = vmatprep.subr.mxu0 0.0
        %1229 = vmatpush1.msra.mxu0 0.0
        %1230 = vmatprep.subr.mxu0 0.0
        %1231 = vmatpush1.msra.mxu0 0.0
        %1232 = vmatprep.subr.mxu0 0.0
        %1233 = vmatpush1.msra.mxu0 0.0
        %1234 = vmatprep.subr.mxu0 0.0
        %1235 = vmatpush1.msra.mxu0 0.0
        %1236 = vmatprep.subr.mxu0 0.0
        %1237 = vmatpush1.msra.mxu0 0.0
        %1238 = vmatprep.subr.mxu0 0.0
        %1239 = vmatpush1.msra.mxu0 0.0
        %1240 = vmatprep.subr.mxu0 0.0
        %1241 = vmatpush1.msra.mxu0 0.0
        %1242 = vmatprep.subr.mxu0 0.0
        %1243 = vmatpush1.msra.mxu0 0.0
        %1244 = vmatprep.subr.mxu0 0.0
        %1245 = vmatpush1.msra.mxu0 0.0
        %1246 = vmatprep.subr.mxu0 0.0
        %1247 = vmatpush1.msra.mxu0 0.0
        %1248 = vmatprep.subr.mxu0 0.0
        %1249 = vmatpush1.msra.mxu0 0.0
        %1250 = vmatprep.subr.mxu0 0.0
        %1251 = vmatpush1.msra.mxu0 0.0
        %1252 = vmatprep.subr.mxu0 0.0
        %1253 = vmatpush1.msra.mxu0 0.0
        %1254 = vmatprep.subr.mxu0 0.0
        %1255 = vmatpush1.msra.mxu0 0.0
        %1256 = vmatprep.subr.mxu0 0.0
        %1257 = vmatpush1.msra.mxu0 0.0
        %1258 = vmatprep.subr.mxu0 0.0
        %1259 = vmatpush1.msra.mxu0 0.0
        %1260 = vmatprep.subr.mxu0 0.0
        %1261 = vmatpush1.msra.mxu0 0.0
        %1262 = vmatprep.subr.mxu0 0.0
        %1263 = vmatpush1.msra.mxu0 0.0
        %1264 = vmatprep.subr.mxu0 0.0
        %1265 = vmatpush1.msra.mxu0 0.0
        %1266 = vmatprep.subr.mxu0 0.0
        %1267 = vmatpush1.msra.mxu0 0.0
        %1268 = vmatprep.subr.mxu0 0.0
        %1269 = vmatpush1.msra.mxu0 0.0
        %1270 = vmatprep.subr.mxu0 0.0
        %1271 = vmatpush1.msra.mxu0 0.0
        %1272 = vmatprep.subr.mxu0 0.0
        %1273 = vmatpush1.msra.mxu0 0.0
        %1274 = vmatprep.subr.mxu0 0.0
        %1275 = vmatpush1.msra.mxu0 0.0
        %1276 = vmatprep.subr.mxu0 0.0
        %1277 = vmatpush1.msra.mxu0 0.0
        %1278 = vmatprep.subr.mxu0 0.0
        %1279 = vmatpush1.msra.mxu0 0.0
        %1280 = vmatprep.subr.mxu0 0.0
        %1281 = vmatpush1.msra.mxu0 0.0
        %1282 = vmatprep.mubr.f32.mxu0 0.0
        %1283 = vmatmul.mubr.f32.gmra.mrb[0].mxu0 %v1210
        %v1284 = vpop.f32.mrb[0].mxu0
        %v1285 = vadd.f32 0.0, %v1284
        %v1286 = vpop.f32.mrb[0].mxu0
        %1287 = vmatprep.mubr.f32.mxu0 0.0
        %1288 = vmatmul.mubr.f32.gmra.mrb[0].mxu0 %v1213
        %v1289 = vpop.f32.mrb[0].mxu0
        %v1290 = vadd.f32 0.0, %v1289
        %v1291 = vpop.f32.mrb[0].mxu0
        %1292 = vdwg.mxu0
        %1293 = vxpose.xlu0.b32.start [1/16] %v388, 128
        %1294 = vxpose.xlu0.b32.cont [2/16] 0.0, 128
        %1295 = vxpose.xlu0.b32.cont [3/16] 0.0, 128
        %1296 = vxpose.xlu0.b32.cont [4/16] 0.0, 128
        %1297 = vxpose.xlu0.b32.cont [5/16] 0.0, 128
        %1298 = vxpose.xlu0.b32.cont [6/16] 0.0, 128
        %1299 = vxpose.xlu0.b32.cont [7/16] 0.0, 128
        %1300 = vxpose.xlu0.b32.cont [8/16] 0.0, 128
        %1301 = vxpose.xlu0.b32.cont [9/16] 0.0, 128
        %1302 = vxpose.xlu0.b32.cont [10/16] 0.0, 128
        %1303 = vxpose.xlu0.b32.cont [11/16] 0.0, 128
        %1304 = vxpose.xlu0.b32.cont [12/16] 0.0, 128
        %1305 = vxpose.xlu0.b32.cont [13/16] 0.0, 128
        %1306 = vxpose.xlu0.b32.cont [14/16] 0.0, 128
        %1307 = vxpose.xlu0.b32.cont [15/16] 0.0, 128
        %1308 = vxpose.xlu0.b32.end [16/16] 0.0, 128
        %v1309 = vpop.trf.xlu0
        %v1310 = vpop.trf.xlu0
        %v1311 = vpop.trf.xlu0
        %v1312 = vpop.trf.xlu0
        %v1313 = vpop.trf.xlu0
        %v1314 = vpop.trf.xlu0
        %v1315 = vpop.trf.xlu0
        %v1316 = vpop.trf.xlu0
        %v1317 = vpop.trf.xlu0
        %v1318 = vpop.trf.xlu0
        %v1319 = vpop.trf.xlu0
        %v1320 = vpop.trf.xlu0
        %v1321 = vpop.trf.xlu0
        %v1322 = vpop.trf.xlu0
        %v1323 = vpop.trf.xlu0
        %v1324 = vpop.trf.xlu0
        %v1326 = vsel %vm627, %v1309, 0
        %v1329 = vsel %vm627, %v1310, 0
        %v1332 = vsel %vm634, %v524, 0
        %1334 = vmatprep.subr.mxu0 0.0
        %1335 = vmatpush1.msra.mxu0 %v1332
        %1336 = vmatprep.subr.mxu0 0.0
        %1337 = vmatpush1.msra.mxu0 0.0
        %1338 = vmatprep.subr.mxu0 0.0
        %1339 = vmatpush1.msra.mxu0 0.0
        %1340 = vmatprep.subr.mxu0 0.0
        %1341 = vmatpush1.msra.mxu0 0.0
        %1342 = vmatprep.subr.mxu0 0.0
        %1343 = vmatpush1.msra.mxu0 0.0
        %1344 = vmatprep.subr.mxu0 0.0
        %1345 = vmatpush1.msra.mxu0 0.0
        %1346 = vmatprep.subr.mxu0 0.0
        %1347 = vmatpush1.msra.mxu0 0.0
        %1348 = vmatprep.subr.mxu0 0.0
        %1349 = vmatpush1.msra.mxu0 0.0
        %1350 = vmatprep.subr.mxu0 0.0
        %1351 = vmatpush1.msra.mxu0 0.0
        %1352 = vmatprep.subr.mxu0 0.0
        %1353 = vmatpush1.msra.mxu0 0.0
        %1354 = vmatprep.subr.mxu0 0.0
        %1355 = vmatpush1.msra.mxu0 0.0
        %1356 = vmatprep.subr.mxu0 0.0
        %1357 = vmatpush1.msra.mxu0 0.0
        %1358 = vmatprep.subr.mxu0 0.0
        %1359 = vmatpush1.msra.mxu0 0.0
        %1360 = vmatprep.subr.mxu0 0.0
        %1361 = vmatpush1.msra.mxu0 0.0
        %1362 = vmatprep.subr.mxu0 0.0
        %1363 = vmatpush1.msra.mxu0 0.0
        %1364 = vmatprep.subr.mxu0 0.0
        %1365 = vmatpush1.msra.mxu0 0.0
        %1366 = vmatprep.subr.mxu0 0.0
        %1367 = vmatpush1.msra.mxu0 0.0
        %1368 = vmatprep.subr.mxu0 0.0
        %1369 = vmatpush1.msra.mxu0 0.0
        %1370 = vmatprep.subr.mxu0 0.0
        %1371 = vmatpush1.msra.mxu0 0.0
        %1372 = vmatprep.subr.mxu0 0.0
        %1373 = vmatpush1.msra.mxu0 0.0
        %1374 = vmatprep.subr.mxu0 0.0
        %1375 = vmatpush1.msra.mxu0 0.0
        %1376 = vmatprep.subr.mxu0 0.0
        %1377 = vmatpush1.msra.mxu0 0.0
        %1378 = vmatprep.subr.mxu0 0.0
        %1379 = vmatpush1.msra.mxu0 0.0
        %1380 = vmatprep.subr.mxu0 0.0
        %1381 = vmatpush1.msra.mxu0 0.0
        %1382 = vmatprep.subr.mxu0 0.0
        %1383 = vmatpush1.msra.mxu0 0.0
        %1384 = vmatprep.subr.mxu0 0.0
        %1385 = vmatpush1.msra.mxu0 0.0
        %1386 = vmatprep.subr.mxu0 0.0
        %1387 = vmatpush1.msra.mxu0 0.0
        %1388 = vmatprep.subr.mxu0 0.0
        %1389 = vmatpush1.msra.mxu0 0.0
        %1390 = vmatprep.subr.mxu0 0.0
        %1391 = vmatpush1.msra.mxu0 0.0
        %1392 = vmatprep.subr.mxu0 0.0
        %1393 = vmatpush1.msra.mxu0 0.0
        %1394 = vmatprep.subr.mxu0 0.0
        %1395 = vmatpush1.msra.mxu0 0.0
        %1396 = vmatprep.subr.mxu0 0.0
        %1397 = vmatpush1.msra.mxu0 0.0
        %1398 = vmatprep.mubr.f32.mxu0 0.0
        %1399 = vmatmul.mubr.f32.gmra.mrb[0].mxu0 %v1326
        %v1400 = vpop.f32.mrb[0].mxu0
        %v1401 = vadd.f32 0.0, %v1400
        %v1402 = vpop.f32.mrb[0].mxu0
        %1403 = vmatprep.mubr.f32.mxu0 0.0
        %1404 = vmatmul.mubr.f32.gmra.mrb[0].mxu0 %v1329
        %v1405 = vpop.f32.mrb[0].mxu0
        %v1406 = vadd.f32 0.0, %v1405
        %v1407 = vpop.f32.mrb[0].mxu0
        %1408 = vdwg.mxu0
        %1409 = vxpose.xlu0.b32.start [1/16] %v392, 128
        %1410 = vxpose.xlu0.b32.cont [2/16] 0.0, 128
        %1411 = vxpose.xlu0.b32.cont [3/16] 0.0, 128
        %1412 = vxpose.xlu0.b32.cont [4/16] 0.0, 128
        %1413 = vxpose.xlu0.b32.cont [5/16] 0.0, 128
        %1414 = vxpose.xlu0.b32.cont [6/16] 0.0, 128
        %1415 = vxpose.xlu0.b32.cont [7/16] 0.0, 128
        %1416 = vxpose.xlu0.b32.cont [8/16] 0.0, 128
        %1417 = vxpose.xlu0.b32.cont [9/16] 0.0, 128
        %1418 = vxpose.xlu0.b32.cont [10/16] 0.0, 128
        %1419 = vxpose.xlu0.b32.cont [11/16] 0.0, 128
        %1420 = vxpose.xlu0.b32.cont [12/16] 0.0, 128
        %1421 = vxpose.xlu0.b32.cont [13/16] 0.0, 128
        %1422 = vxpose.xlu0.b32.cont [14/16] 0.0, 128
        %1423 = vxpose.xlu0.b32.cont [15/16] 0.0, 128
        %1424 = vxpose.xlu0.b32.end [16/16] 0.0, 128
        %v1425 = vpop.trf.xlu0
        %v1426 = vpop.trf.xlu0
        %v1427 = vpop.trf.xlu0
        %v1428 = vpop.trf.xlu0
        %v1429 = vpop.trf.xlu0
        %v1430 = vpop.trf.xlu0
        %v1431 = vpop.trf.xlu0
        %v1432 = vpop.trf.xlu0
        %v1433 = vpop.trf.xlu0
        %v1434 = vpop.trf.xlu0
        %v1435 = vpop.trf.xlu0
        %v1436 = vpop.trf.xlu0
        %v1437 = vpop.trf.xlu0
        %v1438 = vpop.trf.xlu0
        %v1439 = vpop.trf.xlu0
        %v1440 = vpop.trf.xlu0
        %v1442 = vsel %vm627, %v1425, 0
        %v1445 = vsel %vm627, %v1426, 0
        %v1448 = vsel %vm634, %v528, 0
        %1450 = vmatprep.subr.mxu0 0.0
        %1451 = vmatpush1.msra.mxu0 %v1448
        %1452 = vmatprep.subr.mxu0 0.0
        %1453 = vmatpush1.msra.mxu0 0.0
        %1454 = vmatprep.subr.mxu0 0.0
        %1455 = vmatpush1.msra.mxu0 0.0
        %1456 = vmatprep.subr.mxu0 0.0
        %1457 = vmatpush1.msra.mxu0 0.0
        %1458 = vmatprep.subr.mxu0 0.0
        %1459 = vmatpush1.msra.mxu0 0.0
        %1460 = vmatprep.subr.mxu0 0.0
        %1461 = vmatpush1.msra.mxu0 0.0
        %1462 = vmatprep.subr.mxu0 0.0
        %1463 = vmatpush1.msra.mxu0 0.0
        %1464 = vmatprep.subr.mxu0 0.0
        %1465 = vmatpush1.msra.mxu0 0.0
        %1466 = vmatprep.subr.mxu0 0.0
        %1467 = vmatpush1.msra.mxu0 0.0
        %1468 = vmatprep.subr.mxu0 0.0
        %1469 = vmatpush1.msra.mxu0 0.0
        %1470 = vmatprep.subr.mxu0 0.0
        %1471 = vmatpush1.msra.mxu0 0.0
        %1472 = vmatprep.subr.mxu0 0.0
        %1473 = vmatpush1.msra.mxu0 0.0
        %1474 = vmatprep.subr.mxu0 0.0
        %1475 = vmatpush1.msra.mxu0 0.0
        %1476 = vmatprep.subr.mxu0 0.0
        %1477 = vmatpush1.msra.mxu0 0.0
        %1478 = vmatprep.subr.mxu0 0.0
        %1479 = vmatpush1.msra.mxu0 0.0
        %1480 = vmatprep.subr.mxu0 0.0
        %1481 = vmatpush1.msra.mxu0 0.0
        %1482 = vmatprep.subr.mxu0 0.0
        %1483 = vmatpush1.msra.mxu0 0.0
        %1484 = vmatprep.subr.mxu0 0.0
        %1485 = vmatpush1.msra.mxu0 0.0
        %1486 = vmatprep.subr.mxu0 0.0
        %1487 = vmatpush1.msra.mxu0 0.0
        %1488 = vmatprep.subr.mxu0 0.0
        %1489 = vmatpush1.msra.mxu0 0.0
        %1490 = vmatprep.subr.mxu0 0.0
        %1491 = vmatpush1.msra.mxu0 0.0
        %1492 = vmatprep.subr.mxu0 0.0
        %1493 = vmatpush1.msra.mxu0 0.0
        %1494 = vmatprep.subr.mxu0 0.0
        %1495 = vmatpush1.msra.mxu0 0.0
        %1496 = vmatprep.subr.mxu0 0.0
        %1497 = vmatpush1.msra.mxu0 0.0
        %1498 = vmatprep.subr.mxu0 0.0
        %1499 = vmatpush1.msra.mxu0 0.0
        %1500 = vmatprep.subr.mxu0 0.0
        %1501 = vmatpush1.msra.mxu0 0.0
        %1502 = vmatprep.subr.mxu0 0.0
        %1503 = vmatpush1.msra.mxu0 0.0
        %1504 = vmatprep.subr.mxu0 0.0
        %1505 = vmatpush1.msra.mxu0 0.0
        %1506 = vmatprep.subr.mxu0 0.0
        %1507 = vmatpush1.msra.mxu0 0.0
        %1508 = vmatprep.subr.mxu0 0.0
        %1509 = vmatpush1.msra.mxu0 0.0
        %1510 = vmatprep.subr.mxu0 0.0
        %1511 = vmatpush1.msra.mxu0 0.0
        %1512 = vmatprep.subr.mxu0 0.0
        %1513 = vmatpush1.msra.mxu0 0.0
        %1514 = vmatprep.mubr.f32.mxu0 0.0
        %1515 = vmatmul.mubr.f32.gmra.mrb[0].mxu0 %v1442
        %v1516 = vpop.f32.mrb[0].mxu0
        %v1517 = vadd.f32 0.0, %v1516
        %v1518 = vpop.f32.mrb[0].mxu0
        %1519 = vmatprep.mubr.f32.mxu0 0.0
        %1520 = vmatmul.mubr.f32.gmra.mrb[0].mxu0 %v1445
        %v1521 = vpop.f32.mrb[0].mxu0
        %v1522 = vadd.f32 0.0, %v1521
        %v1523 = vpop.f32.mrb[0].mxu0
        %1524 = vdwg.mxu0
        %1525 = vxpose.xlu0.b32.start [1/16] %v431, 128
        %1526 = vxpose.xlu0.b32.cont [2/16] 0.0, 128
        %1527 = vxpose.xlu0.b32.cont [3/16] 0.0, 128
        %1528 = vxpose.xlu0.b32.cont [4/16] 0.0, 128
        %1529 = vxpose.xlu0.b32.cont [5/16] 0.0, 128
        %1530 = vxpose.xlu0.b32.cont [6/16] 0.0, 128
        %1531 = vxpose.xlu0.b32.cont [7/16] 0.0, 128
        %1532 = vxpose.xlu0.b32.cont [8/16] 0.0, 128
        %1533 = vxpose.xlu0.b32.cont [9/16] 0.0, 128
        %1534 = vxpose.xlu0.b32.cont [10/16] 0.0, 128
        %1535 = vxpose.xlu0.b32.cont [11/16] 0.0, 128
        %1536 = vxpose.xlu0.b32.cont [12/16] 0.0, 128
        %1537 = vxpose.xlu0.b32.cont [13/16] 0.0, 128
        %1538 = vxpose.xlu0.b32.cont [14/16] 0.0, 128
        %1539 = vxpose.xlu0.b32.cont [15/16] 0.0, 128
        %1540 = vxpose.xlu0.b32.end [16/16] 0.0, 128
        %v1541 = vpop.trf.xlu0
        %v1542 = vpop.trf.xlu0
        %v1543 = vpop.trf.xlu0
        %v1544 = vpop.trf.xlu0
        %v1545 = vpop.trf.xlu0
        %v1546 = vpop.trf.xlu0
        %v1547 = vpop.trf.xlu0
        %v1548 = vpop.trf.xlu0
        %v1549 = vpop.trf.xlu0
        %v1550 = vpop.trf.xlu0
        %v1551 = vpop.trf.xlu0
        %v1552 = vpop.trf.xlu0
        %v1553 = vpop.trf.xlu0
        %v1554 = vpop.trf.xlu0
        %v1555 = vpop.trf.xlu0
        %v1556 = vpop.trf.xlu0
        %v1558 = vsel %vm627, %v1541, 0
        %v1561 = vsel %vm627, %v1542, 0
        %v1564 = vsel %vm634, %v567, 0
        %1566 = vmatprep.subr.mxu0 0.0
        %1567 = vmatpush1.msra.mxu0 %v1564
        %1568 = vmatprep.subr.mxu0 0.0
        %1569 = vmatpush1.msra.mxu0 0.0
        %1570 = vmatprep.subr.mxu0 0.0
        %1571 = vmatpush1.msra.mxu0 0.0
        %1572 = vmatprep.subr.mxu0 0.0
        %1573 = vmatpush1.msra.mxu0 0.0
        %1574 = vmatprep.subr.mxu0 0.0
        %1575 = vmatpush1.msra.mxu0 0.0
        %1576 = vmatprep.subr.mxu0 0.0
        %1577 = vmatpush1.msra.mxu0 0.0
        %1578 = vmatprep.subr.mxu0 0.0
        %1579 = vmatpush1.msra.mxu0 0.0
        %1580 = vmatprep.subr.mxu0 0.0
        %1581 = vmatpush1.msra.mxu0 0.0
        %1582 = vmatprep.subr.mxu0 0.0
        %1583 = vmatpush1.msra.mxu0 0.0
        %1584 = vmatprep.subr.mxu0 0.0
        %1585 = vmatpush1.msra.mxu0 0.0
        %1586 = vmatprep.subr.mxu0 0.0
        %1587 = vmatpush1.msra.mxu0 0.0
        %1588 = vmatprep.subr.mxu0 0.0
        %1589 = vmatpush1.msra.mxu0 0.0
        %1590 = vmatprep.subr.mxu0 0.0
        %1591 = vmatpush1.msra.mxu0 0.0
        %1592 = vmatprep.subr.mxu0 0.0
        %1593 = vmatpush1.msra.mxu0 0.0
        %1594 = vmatprep.subr.mxu0 0.0
        %1595 = vmatpush1.msra.mxu0 0.0
        %1596 = vmatprep.subr.mxu0 0.0
        %1597 = vmatpush1.msra.mxu0 0.0
        %1598 = vmatprep.subr.mxu0 0.0
        %1599 = vmatpush1.msra.mxu0 0.0
        %1600 = vmatprep.subr.mxu0 0.0
        %1601 = vmatpush1.msra.mxu0 0.0
        %1602 = vmatprep.subr.mxu0 0.0
        %1603 = vmatpush1.msra.mxu0 0.0
        %1604 = vmatprep.subr.mxu0 0.0
        %1605 = vmatpush1.msra.mxu0 0.0
        %1606 = vmatprep.subr.mxu0 0.0
        %1607 = vmatpush1.msra.mxu0 0.0
        %1608 = vmatprep.subr.mxu0 0.0
        %1609 = vmatpush1.msra.mxu0 0.0
        %1610 = vmatprep.subr.mxu0 0.0
        %1611 = vmatpush1.msra.mxu0 0.0
        %1612 = vmatprep.subr.mxu0 0.0
        %1613 = vmatpush1.msra.mxu0 0.0
        %1614 = vmatprep.subr.mxu0 0.0
        %1615 = vmatpush1.msra.mxu0 0.0
        %1616 = vmatprep.subr.mxu0 0.0
        %1617 = vmatpush1.msra.mxu0 0.0
        %1618 = vmatprep.subr.mxu0 0.0
        %1619 = vmatpush1.msra.mxu0 0.0
        %1620 = vmatprep.subr.mxu0 0.0
        %1621 = vmatpush1.msra.mxu0 0.0
        %1622 = vmatprep.subr.mxu0 0.0
        %1623 = vmatpush1.msra.mxu0 0.0
        %1624 = vmatprep.subr.mxu0 0.0
        %1625 = vmatpush1.msra.mxu0 0.0
        %1626 = vmatprep.subr.mxu0 0.0
        %1627 = vmatpush1.msra.mxu0 0.0
        %1628 = vmatprep.subr.mxu0 0.0
        %1629 = vmatpush1.msra.mxu0 0.0
        %1630 = vmatprep.mubr.f32.mxu0 0.0
        %1631 = vmatmul.mubr.f32.gmra.mrb[0].mxu0 %v1558
        %v1632 = vpop.f32.mrb[0].mxu0
        %v1633 = vadd.f32 0.0, %v1632
        %v1634 = vpop.f32.mrb[0].mxu0
        %1635 = vmatprep.mubr.f32.mxu0 0.0
        %1636 = vmatmul.mubr.f32.gmra.mrb[0].mxu0 %v1561
        %v1637 = vpop.f32.mrb[0].mxu0
        %v1638 = vadd.f32 0.0, %v1637
        %v1639 = vpop.f32.mrb[0].mxu0
        %1640 = vdwg.mxu0
        %1641 = vxpose.xlu0.b32.start [1/16] %v455, 128
        %1642 = vxpose.xlu0.b32.cont [2/16] 0.0, 128
        %1643 = vxpose.xlu0.b32.cont [3/16] 0.0, 128
        %1644 = vxpose.xlu0.b32.cont [4/16] 0.0, 128
        %1645 = vxpose.xlu0.b32.cont [5/16] 0.0, 128
        %1646 = vxpose.xlu0.b32.cont [6/16] 0.0, 128
        %1647 = vxpose.xlu0.b32.cont [7/16] 0.0, 128
        %1648 = vxpose.xlu0.b32.cont [8/16] 0.0, 128
        %1649 = vxpose.xlu0.b32.cont [9/16] 0.0, 128
        %1650 = vxpose.xlu0.b32.cont [10/16] 0.0, 128
        %1651 = vxpose.xlu0.b32.cont [11/16] 0.0, 128
        %1652 = vxpose.xlu0.b32.cont [12/16] 0.0, 128
        %1653 = vxpose.xlu0.b32.cont [13/16] 0.0, 128
        %1654 = vxpose.xlu0.b32.cont [14/16] 0.0, 128
        %1655 = vxpose.xlu0.b32.cont [15/16] 0.0, 128
        %1656 = vxpose.xlu0.b32.end [16/16] 0.0, 128
        %v1657 = vpop.trf.xlu0
        %v1658 = vpop.trf.xlu0
        %v1659 = vpop.trf.xlu0
        %v1660 = vpop.trf.xlu0
        %v1661 = vpop.trf.xlu0
        %v1662 = vpop.trf.xlu0
        %v1663 = vpop.trf.xlu0
        %v1664 = vpop.trf.xlu0
        %v1665 = vpop.trf.xlu0
        %v1666 = vpop.trf.xlu0
        %v1667 = vpop.trf.xlu0
        %v1668 = vpop.trf.xlu0
        %v1669 = vpop.trf.xlu0
        %v1670 = vpop.trf.xlu0
        %v1671 = vpop.trf.xlu0
        %v1672 = vpop.trf.xlu0
        %v1674 = vsel %vm627, %v1657, 0
        %v1677 = vsel %vm627, %v1658, 0
        %v1680 = vsel %vm634, %v591, 0
        %1682 = vmatprep.subr.mxu0 0.0
        %1683 = vmatpush1.msra.mxu0 %v1680
        %1684 = vmatprep.subr.mxu0 0.0
        %1685 = vmatpush1.msra.mxu0 0.0
        %1686 = vmatprep.subr.mxu0 0.0
        %1687 = vmatpush1.msra.mxu0 0.0
        %1688 = vmatprep.subr.mxu0 0.0
        %1689 = vmatpush1.msra.mxu0 0.0
        %1690 = vmatprep.subr.mxu0 0.0
        %1691 = vmatpush1.msra.mxu0 0.0
        %1692 = vmatprep.subr.mxu0 0.0
        %1693 = vmatpush1.msra.mxu0 0.0
        %1694 = vmatprep.subr.mxu0 0.0
        %1695 = vmatpush1.msra.mxu0 0.0
        %1696 = vmatprep.subr.mxu0 0.0
        %1697 = vmatpush1.msra.mxu0 0.0
        %1698 = vmatprep.subr.mxu0 0.0
        %1699 = vmatpush1.msra.mxu0 0.0
        %1700 = vmatprep.subr.mxu0 0.0
        %1701 = vmatpush1.msra.mxu0 0.0
        %1702 = vmatprep.subr.mxu0 0.0
        %1703 = vmatpush1.msra.mxu0 0.0
        %1704 = vmatprep.subr.mxu0 0.0
        %1705 = vmatpush1.msra.mxu0 0.0
        %1706 = vmatprep.subr.mxu0 0.0
        %1707 = vmatpush1.msra.mxu0 0.0
        %1708 = vmatprep.subr.mxu0 0.0
        %1709 = vmatpush1.msra.mxu0 0.0
        %1710 = vmatprep.subr.mxu0 0.0
        %1711 = vmatpush1.msra.mxu0 0.0
        %1712 = vmatprep.subr.mxu0 0.0
        %1713 = vmatpush1.msra.mxu0 0.0
        %1714 = vmatprep.subr.mxu0 0.0
        %1715 = vmatpush1.msra.mxu0 0.0
        %1716 = vmatprep.subr.mxu0 0.0
        %1717 = vmatpush1.msra.mxu0 0.0
        %1718 = vmatprep.subr.mxu0 0.0
        %1719 = vmatpush1.msra.mxu0 0.0
        %1720 = vmatprep.subr.mxu0 0.0
        %1721 = vmatpush1.msra.mxu0 0.0
        %1722 = vmatprep.subr.mxu0 0.0
        %1723 = vmatpush1.msra.mxu0 0.0
        %1724 = vmatprep.subr.mxu0 0.0
        %1725 = vmatpush1.msra.mxu0 0.0
        %1726 = vmatprep.subr.mxu0 0.0
        %1727 = vmatpush1.msra.mxu0 0.0
        %1728 = vmatprep.subr.mxu0 0.0
        %1729 = vmatpush1.msra.mxu0 0.0
        %1730 = vmatprep.subr.mxu0 0.0
        %1731 = vmatpush1.msra.mxu0 0.0
        %1732 = vmatprep.subr.mxu0 0.0
        %1733 = vmatpush1.msra.mxu0 0.0
        %1734 = vmatprep.subr.mxu0 0.0
        %1735 = vmatpush1.msra.mxu0 0.0
        %1736 = vmatprep.subr.mxu0 0.0
        %1737 = vmatpush1.msra.mxu0 0.0
        %1738 = vmatprep.subr.mxu0 0.0
        %1739 = vmatpush1.msra.mxu0 0.0
        %1740 = vmatprep.subr.mxu0 0.0
        %1741 = vmatpush1.msra.mxu0 0.0
        %1742 = vmatprep.subr.mxu0 0.0
        %1743 = vmatpush1.msra.mxu0 0.0
        %1744 = vmatprep.subr.mxu0 0.0
        %1745 = vmatpush1.msra.mxu0 0.0
        %1746 = vmatprep.mubr.f32.mxu0 0.0
        %1747 = vmatmul.mubr.f32.gmra.mrb[0].mxu0 %v1674
        %v1748 = vpop.f32.mrb[0].mxu0
        %v1749 = vadd.f32 0.0, %v1748
        %v1750 = vpop.f32.mrb[0].mxu0
        %1751 = vmatprep.mubr.f32.mxu0 0.0
        %1752 = vmatmul.mubr.f32.gmra.mrb[0].mxu0 %v1677
        %v1753 = vpop.f32.mrb[0].mxu0
        %v1754 = vadd.f32 0.0, %v1753
        %v1755 = vpop.f32.mrb[0].mxu0
        %1756 = vdwg.mxu0
        %1757 = vxpose.xlu0.b32.start [1/16] %v438, 128
        %1758 = vxpose.xlu0.b32.cont [2/16] 0.0, 128
        %1759 = vxpose.xlu0.b32.cont [3/16] 0.0, 128
        %1760 = vxpose.xlu0.b32.cont [4/16] 0.0, 128
        %1761 = vxpose.xlu0.b32.cont [5/16] 0.0, 128
        %1762 = vxpose.xlu0.b32.cont [6/16] 0.0, 128
        %1763 = vxpose.xlu0.b32.cont [7/16] 0.0, 128
        %1764 = vxpose.xlu0.b32.cont [8/16] 0.0, 128
        %1765 = vxpose.xlu0.b32.cont [9/16] 0.0, 128
        %1766 = vxpose.xlu0.b32.cont [10/16] 0.0, 128
        %1767 = vxpose.xlu0.b32.cont [11/16] 0.0, 128
        %1768 = vxpose.xlu0.b32.cont [12/16] 0.0, 128
        %1769 = vxpose.xlu0.b32.cont [13/16] 0.0, 128
        %1770 = vxpose.xlu0.b32.cont [14/16] 0.0, 128
        %1771 = vxpose.xlu0.b32.cont [15/16] 0.0, 128
        %1772 = vxpose.xlu0.b32.end [16/16] 0.0, 128
        %v1773 = vpop.trf.xlu0
        %v1774 = vpop.trf.xlu0
        %v1775 = vpop.trf.xlu0
        %v1776 = vpop.trf.xlu0
        %v1777 = vpop.trf.xlu0
        %v1778 = vpop.trf.xlu0
        %v1779 = vpop.trf.xlu0
        %v1780 = vpop.trf.xlu0
        %v1781 = vpop.trf.xlu0
        %v1782 = vpop.trf.xlu0
        %v1783 = vpop.trf.xlu0
        %v1784 = vpop.trf.xlu0
        %v1785 = vpop.trf.xlu0
        %v1786 = vpop.trf.xlu0
        %v1787 = vpop.trf.xlu0
        %v1788 = vpop.trf.xlu0
        %v1790 = vsel %vm627, %v1773, 0
        %v1793 = vsel %vm627, %v1774, 0
        %v1796 = vsel %vm634, %v574, 0
        %1798 = vmatprep.subr.mxu0 0.0
        %1799 = vmatpush1.msra.mxu0 %v1796
        %1800 = vmatprep.subr.mxu0 0.0
        %1801 = vmatpush1.msra.mxu0 0.0
        %1802 = vmatprep.subr.mxu0 0.0
        %1803 = vmatpush1.msra.mxu0 0.0
        %1804 = vmatprep.subr.mxu0 0.0
        %1805 = vmatpush1.msra.mxu0 0.0
        %1806 = vmatprep.subr.mxu0 0.0
        %1807 = vmatpush1.msra.mxu0 0.0
        %1808 = vmatprep.subr.mxu0 0.0
        %1809 = vmatpush1.msra.mxu0 0.0
        %1810 = vmatprep.subr.mxu0 0.0
        %1811 = vmatpush1.msra.mxu0 0.0
        %1812 = vmatprep.subr.mxu0 0.0
        %1813 = vmatpush1.msra.mxu0 0.0
        %1814 = vmatprep.subr.mxu0 0.0
        %1815 = vmatpush1.msra.mxu0 0.0
        %1816 = vmatprep.subr.mxu0 0.0
        %1817 = vmatpush1.msra.mxu0 0.0
        %1818 = vmatprep.subr.mxu0 0.0
        %1819 = vmatpush1.msra.mxu0 0.0
        %1820 = vmatprep.subr.mxu0 0.0
        %1821 = vmatpush1.msra.mxu0 0.0
        %1822 = vmatprep.subr.mxu0 0.0
        %1823 = vmatpush1.msra.mxu0 0.0
        %1824 = vmatprep.subr.mxu0 0.0
        %1825 = vmatpush1.msra.mxu0 0.0
        %1826 = vmatprep.subr.mxu0 0.0
        %1827 = vmatpush1.msra.mxu0 0.0
        %1828 = vmatprep.subr.mxu0 0.0
        %1829 = vmatpush1.msra.mxu0 0.0
        %1830 = vmatprep.subr.mxu0 0.0
        %1831 = vmatpush1.msra.mxu0 0.0
        %1832 = vmatprep.subr.mxu0 0.0
        %1833 = vmatpush1.msra.mxu0 0.0
        %1834 = vmatprep.subr.mxu0 0.0
        %1835 = vmatpush1.msra.mxu0 0.0
        %1836 = vmatprep.subr.mxu0 0.0
        %1837 = vmatpush1.msra.mxu0 0.0
        %1838 = vmatprep.subr.mxu0 0.0
        %1839 = vmatpush1.msra.mxu0 0.0
        %1840 = vmatprep.subr.mxu0 0.0
        %1841 = vmatpush1.msra.mxu0 0.0
        %1842 = vmatprep.subr.mxu0 0.0
        %1843 = vmatpush1.msra.mxu0 0.0
        %1844 = vmatprep.subr.mxu0 0.0
        %1845 = vmatpush1.msra.mxu0 0.0
        %1846 = vmatprep.subr.mxu0 0.0
        %1847 = vmatpush1.msra.mxu0 0.0
        %1848 = vmatprep.subr.mxu0 0.0
        %1849 = vmatpush1.msra.mxu0 0.0
        %1850 = vmatprep.subr.mxu0 0.0
        %1851 = vmatpush1.msra.mxu0 0.0
        %1852 = vmatprep.subr.mxu0 0.0
        %1853 = vmatpush1.msra.mxu0 0.0
        %1854 = vmatprep.subr.mxu0 0.0
        %1855 = vmatpush1.msra.mxu0 0.0
        %1856 = vmatprep.subr.mxu0 0.0
        %1857 = vmatpush1.msra.mxu0 0.0
        %1858 = vmatprep.subr.mxu0 0.0
        %1859 = vmatpush1.msra.mxu0 0.0
        %1860 = vmatprep.subr.mxu0 0.0
        %1861 = vmatpush1.msra.mxu0 0.0
        %1862 = vmatprep.mubr.f32.mxu0 0.0
        %1863 = vmatmul.mubr.f32.gmra.mrb[0].mxu0 %v1790
        %v1864 = vpop.f32.mrb[0].mxu0
        %v1865 = vadd.f32 0.0, %v1864
        %v1866 = vpop.f32.mrb[0].mxu0
        %1867 = vmatprep.mubr.f32.mxu0 0.0
        %1868 = vmatmul.mubr.f32.gmra.mrb[0].mxu0 %v1793
        %v1869 = vpop.f32.mrb[0].mxu0
        %v1870 = vadd.f32 0.0, %v1869
        %v1871 = vpop.f32.mrb[0].mxu0
        %1872 = vdwg.mxu0
        %1873 = vxpose.xlu0.b32.start [1/16] %v456, 128
        %1874 = vxpose.xlu0.b32.cont [2/16] 0.0, 128
        %1875 = vxpose.xlu0.b32.cont [3/16] 0.0, 128
        %1876 = vxpose.xlu0.b32.cont [4/16] 0.0, 128
        %1877 = vxpose.xlu0.b32.cont [5/16] 0.0, 128
        %1878 = vxpose.xlu0.b32.cont [6/16] 0.0, 128
        %1879 = vxpose.xlu0.b32.cont [7/16] 0.0, 128
        %1880 = vxpose.xlu0.b32.cont [8/16] 0.0, 128
        %1881 = vxpose.xlu0.b32.cont [9/16] 0.0, 128
        %1882 = vxpose.xlu0.b32.cont [10/16] 0.0, 128
        %1883 = vxpose.xlu0.b32.cont [11/16] 0.0, 128
        %1884 = vxpose.xlu0.b32.cont [12/16] 0.0, 128
        %1885 = vxpose.xlu0.b32.cont [13/16] 0.0, 128
        %1886 = vxpose.xlu0.b32.cont [14/16] 0.0, 128
        %1887 = vxpose.xlu0.b32.cont [15/16] 0.0, 128
        %1888 = vxpose.xlu0.b32.end [16/16] 0.0, 128
        %v1889 = vpop.trf.xlu0
        %v1890 = vpop.trf.xlu0
        %v1891 = vpop.trf.xlu0
        %v1892 = vpop.trf.xlu0
        %v1893 = vpop.trf.xlu0
        %v1894 = vpop.trf.xlu0
        %v1895 = vpop.trf.xlu0
        %v1896 = vpop.trf.xlu0
        %v1897 = vpop.trf.xlu0
        %v1898 = vpop.trf.xlu0
        %v1899 = vpop.trf.xlu0
        %v1900 = vpop.trf.xlu0
        %v1901 = vpop.trf.xlu0
        %v1902 = vpop.trf.xlu0
        %v1903 = vpop.trf.xlu0
        %v1904 = vpop.trf.xlu0
        %v1906 = vsel %vm627, %v1889, 0
        %v1909 = vsel %vm627, %v1890, 0
        %v1912 = vsel %vm634, %v592, 0
        %1914 = vmatprep.subr.mxu0 0.0
        %1915 = vmatpush1.msra.mxu0 %v1912
        %1916 = vmatprep.subr.mxu0 0.0
        %1917 = vmatpush1.msra.mxu0 0.0
        %1918 = vmatprep.subr.mxu0 0.0
        %1919 = vmatpush1.msra.mxu0 0.0
        %1920 = vmatprep.subr.mxu0 0.0
        %1921 = vmatpush1.msra.mxu0 0.0
        %1922 = vmatprep.subr.mxu0 0.0
        %1923 = vmatpush1.msra.mxu0 0.0
        %1924 = vmatprep.subr.mxu0 0.0
        %1925 = vmatpush1.msra.mxu0 0.0
        %1926 = vmatprep.subr.mxu0 0.0
        %1927 = vmatpush1.msra.mxu0 0.0
        %1928 = vmatprep.subr.mxu0 0.0
        %1929 = vmatpush1.msra.mxu0 0.0
        %1930 = vmatprep.subr.mxu0 0.0
        %1931 = vmatpush1.msra.mxu0 0.0
        %1932 = vmatprep.subr.mxu0 0.0
        %1933 = vmatpush1.msra.mxu0 0.0
        %1934 = vmatprep.subr.mxu0 0.0
        %1935 = vmatpush1.msra.mxu0 0.0
        %1936 = vmatprep.subr.mxu0 0.0
        %1937 = vmatpush1.msra.mxu0 0.0
        %1938 = vmatprep.subr.mxu0 0.0
        %1939 = vmatpush1.msra.mxu0 0.0
        %1940 = vmatprep.subr.mxu0 0.0
        %1941 = vmatpush1.msra.mxu0 0.0
        %1942 = vmatprep.subr.mxu0 0.0
        %1943 = vmatpush1.msra.mxu0 0.0
        %1944 = vmatprep.subr.mxu0 0.0
        %1945 = vmatpush1.msra.mxu0 0.0
        %1946 = vmatprep.subr.mxu0 0.0
        %1947 = vmatpush1.msra.mxu0 0.0
        %1948 = vmatprep.subr.mxu0 0.0
        %1949 = vmatpush1.msra.mxu0 0.0
        %1950 = vmatprep.subr.mxu0 0.0
        %1951 = vmatpush1.msra.mxu0 0.0
        %1952 = vmatprep.subr.mxu0 0.0
        %1953 = vmatpush1.msra.mxu0 0.0
        %1954 = vmatprep.subr.mxu0 0.0
        %1955 = vmatpush1.msra.mxu0 0.0
        %1956 = vmatprep.subr.mxu0 0.0
        %1957 = vmatpush1.msra.mxu0 0.0
        %1958 = vmatprep.subr.mxu0 0.0
        %1959 = vmatpush1.msra.mxu0 0.0
        %1960 = vmatprep.subr.mxu0 0.0
        %1961 = vmatpush1.msra.mxu0 0.0
        %1962 = vmatprep.subr.mxu0 0.0
        %1963 = vmatpush1.msra.mxu0 0.0
        %1964 = vmatprep.subr.mxu0 0.0
        %1965 = vmatpush1.msra.mxu0 0.0
        %1966 = vmatprep.subr.mxu0 0.0
        %1967 = vmatpush1.msra.mxu0 0.0
        %1968 = vmatprep.subr.mxu0 0.0
        %1969 = vmatpush1.msra.mxu0 0.0
        %1970 = vmatprep.subr.mxu0 0.0
        %1971 = vmatpush1.msra.mxu0 0.0
        %1972 = vmatprep.subr.mxu0 0.0
        %1973 = vmatpush1.msra.mxu0 0.0
        %1974 = vmatprep.subr.mxu0 0.0
        %1975 = vmatpush1.msra.mxu0 0.0
        %1976 = vmatprep.subr.mxu0 0.0
        %1977 = vmatpush1.msra.mxu0 0.0
        %1978 = vmatprep.mubr.f32.mxu0 0.0
        %1979 = vmatmul.mubr.f32.gmra.mrb[0].mxu0 %v1906
        %v1980 = vpop.f32.mrb[0].mxu0
        %v1981 = vadd.f32 0.0, %v1980
        %v1982 = vpop.f32.mrb[0].mxu0
        %1983 = vmatprep.mubr.f32.mxu0 0.0
        %1984 = vmatmul.mubr.f32.gmra.mrb[0].mxu0 %v1909
        %v1985 = vpop.f32.mrb[0].mxu0
        %v1986 = vadd.f32 0.0, %v1985
        %v1987 = vpop.f32.mrb[0].mxu0
        %1988 = vdwg.mxu0
        %1989 = vxpose.xlu0.b32.start [1/16] %v447, 128
        %1990 = vxpose.xlu0.b32.cont [2/16] 0.0, 128
        %1991 = vxpose.xlu0.b32.cont [3/16] 0.0, 128
        %1992 = vxpose.xlu0.b32.cont [4/16] 0.0, 128
        %1993 = vxpose.xlu0.b32.cont [5/16] 0.0, 128
        %1994 = vxpose.xlu0.b32.cont [6/16] 0.0, 128
        %1995 = vxpose.xlu0.b32.cont [7/16] 0.0, 128
        %1996 = vxpose.xlu0.b32.cont [8/16] 0.0, 128
        %1997 = vxpose.xlu0.b32.cont [9/16] 0.0, 128
        %1998 = vxpose.xlu0.b32.cont [10/16] 0.0, 128
        %1999 = vxpose.xlu0.b32.cont [11/16] 0.0, 128
        %2000 = vxpose.xlu0.b32.cont [12/16] 0.0, 128
        %2001 = vxpose.xlu0.b32.cont [13/16] 0.0, 128
        %2002 = vxpose.xlu0.b32.cont [14/16] 0.0, 128
        %2003 = vxpose.xlu0.b32.cont [15/16] 0.0, 128
        %2004 = vxpose.xlu0.b32.end [16/16] 0.0, 128
        %v2005 = vpop.trf.xlu0
        %v2006 = vpop.trf.xlu0
        %v2007 = vpop.trf.xlu0
        %v2008 = vpop.trf.xlu0
        %v2009 = vpop.trf.xlu0
        %v2010 = vpop.trf.xlu0
        %v2011 = vpop.trf.xlu0
        %v2012 = vpop.trf.xlu0
        %v2013 = vpop.trf.xlu0
        %v2014 = vpop.trf.xlu0
        %v2015 = vpop.trf.xlu0
        %v2016 = vpop.trf.xlu0
        %v2017 = vpop.trf.xlu0
        %v2018 = vpop.trf.xlu0
        %v2019 = vpop.trf.xlu0
        %v2020 = vpop.trf.xlu0
        %v2022 = vsel %vm627, %v2005, 0
        %v2025 = vsel %vm627, %v2006, 0
        %v2028 = vsel %vm634, %v583, 0
        %2030 = vmatprep.subr.mxu0 0.0
        %2031 = vmatpush1.msra.mxu0 %v2028
        %2032 = vmatprep.subr.mxu0 0.0
        %2033 = vmatpush1.msra.mxu0 0.0
        %2034 = vmatprep.subr.mxu0 0.0
        %2035 = vmatpush1.msra.mxu0 0.0
        %2036 = vmatprep.subr.mxu0 0.0
        %2037 = vmatpush1.msra.mxu0 0.0
        %2038 = vmatprep.subr.mxu0 0.0
        %2039 = vmatpush1.msra.mxu0 0.0
        %2040 = vmatprep.subr.mxu0 0.0
        %2041 = vmatpush1.msra.mxu0 0.0
        %2042 = vmatprep.subr.mxu0 0.0
        %2043 = vmatpush1.msra.mxu0 0.0
        %2044 = vmatprep.subr.mxu0 0.0
        %2045 = vmatpush1.msra.mxu0 0.0
        %2046 = vmatprep.subr.mxu0 0.0
        %2047 = vmatpush1.msra.mxu0 0.0
        %2048 = vmatprep.subr.mxu0 0.0
        %2049 = vmatpush1.msra.mxu0 0.0
        %2050 = vmatprep.subr.mxu0 0.0
        %2051 = vmatpush1.msra.mxu0 0.0
        %2052 = vmatprep.subr.mxu0 0.0
        %2053 = vmatpush1.msra.mxu0 0.0
        %2054 = vmatprep.subr.mxu0 0.0
        %2055 = vmatpush1.msra.mxu0 0.0
        %2056 = vmatprep.subr.mxu0 0.0
        %2057 = vmatpush1.msra.mxu0 0.0
        %2058 = vmatprep.subr.mxu0 0.0
        %2059 = vmatpush1.msra.mxu0 0.0
        %2060 = vmatprep.subr.mxu0 0.0
        %2061 = vmatpush1.msra.mxu0 0.0
        %2062 = vmatprep.subr.mxu0 0.0
        %2063 = vmatpush1.msra.mxu0 0.0
        %2064 = vmatprep.subr.mxu0 0.0
        %2065 = vmatpush1.msra.mxu0 0.0
        %2066 = vmatprep.subr.mxu0 0.0
        %2067 = vmatpush1.msra.mxu0 0.0
        %2068 = vmatprep.subr.mxu0 0.0
        %2069 = vmatpush1.msra.mxu0 0.0
        %2070 = vmatprep.subr.mxu0 0.0
        %2071 = vmatpush1.msra.mxu0 0.0
        %2072 = vmatprep.subr.mxu0 0.0
        %2073 = vmatpush1.msra.mxu0 0.0
        %2074 = vmatprep.subr.mxu0 0.0
        %2075 = vmatpush1.msra.mxu0 0.0
        %2076 = vmatprep.subr.mxu0 0.0
        %2077 = vmatpush1.msra.mxu0 0.0
        %2078 = vmatprep.subr.mxu0 0.0
        %2079 = vmatpush1.msra.mxu0 0.0
        %2080 = vmatprep.subr.mxu0 0.0
        %2081 = vmatpush1.msra.mxu0 0.0
        %2082 = vmatprep.subr.mxu0 0.0
        %2083 = vmatpush1.msra.mxu0 0.0
        %2084 = vmatprep.subr.mxu0 0.0
        %2085 = vmatpush1.msra.mxu0 0.0
        %2086 = vmatprep.subr.mxu0 0.0
        %2087 = vmatpush1.msra.mxu0 0.0
        %2088 = vmatprep.subr.mxu0 0.0
        %2089 = vmatpush1.msra.mxu0 0.0
        %2090 = vmatprep.subr.mxu0 0.0
        %2091 = vmatpush1.msra.mxu0 0.0
        %2092 = vmatprep.subr.mxu0 0.0
        %2093 = vmatpush1.msra.mxu0 0.0
        %2094 = vmatprep.mubr.f32.mxu0 0.0
        %2095 = vmatmul.mubr.f32.gmra.mrb[0].mxu0 %v2022
        %v2096 = vpop.f32.mrb[0].mxu0
        %v2097 = vadd.f32 0.0, %v2096
        %v2098 = vpop.f32.mrb[0].mxu0
        %2099 = vmatprep.mubr.f32.mxu0 0.0
        %2100 = vmatmul.mubr.f32.gmra.mrb[0].mxu0 %v2025
        %v2101 = vpop.f32.mrb[0].mxu0
        %v2102 = vadd.f32 0.0, %v2101
        %v2103 = vpop.f32.mrb[0].mxu0
        %2104 = vdwg.mxu0
        %2105 = vxpose.xlu0.b32.start [1/16] %v457, 128
        %2106 = vxpose.xlu0.b32.cont [2/16] 0.0, 128
        %2107 = vxpose.xlu0.b32.cont [3/16] 0.0, 128
        %2108 = vxpose.xlu0.b32.cont [4/16] 0.0, 128
        %2109 = vxpose.xlu0.b32.cont [5/16] 0.0, 128
        %2110 = vxpose.xlu0.b32.cont [6/16] 0.0, 128
        %2111 = vxpose.xlu0.b32.cont [7/16] 0.0, 128
        %2112 = vxpose.xlu0.b32.cont [8/16] 0.0, 128
        %2113 = vxpose.xlu0.b32.cont [9/16] 0.0, 128
        %2114 = vxpose.xlu0.b32.cont [10/16] 0.0, 128
        %2115 = vxpose.xlu0.b32.cont [11/16] 0.0, 128
        %2116 = vxpose.xlu0.b32.cont [12/16] 0.0, 128
        %2117 = vxpose.xlu0.b32.cont [13/16] 0.0, 128
        %2118 = vxpose.xlu0.b32.cont [14/16] 0.0, 128
        %2119 = vxpose.xlu0.b32.cont [15/16] 0.0, 128
        %2120 = vxpose.xlu0.b32.end [16/16] 0.0, 128
        %v2121 = vpop.trf.xlu0
        %v2122 = vpop.trf.xlu0
        %v2123 = vpop.trf.xlu0
        %v2124 = vpop.trf.xlu0
        %v2125 = vpop.trf.xlu0
        %v2126 = vpop.trf.xlu0
        %v2127 = vpop.trf.xlu0
        %v2128 = vpop.trf.xlu0
        %v2129 = vpop.trf.xlu0
        %v2130 = vpop.trf.xlu0
        %v2131 = vpop.trf.xlu0
        %v2132 = vpop.trf.xlu0
        %v2133 = vpop.trf.xlu0
        %v2134 = vpop.trf.xlu0
        %v2135 = vpop.trf.xlu0
        %v2136 = vpop.trf.xlu0
        %v2138 = vsel %vm627, %v2121, 0
        %v2141 = vsel %vm627, %v2122, 0
        %v2144 = vsel %vm634, %v593, 0
        %2146 = vmatprep.subr.mxu0 0.0
        %2147 = vmatpush1.msra.mxu0 %v2144
        %2148 = vmatprep.subr.mxu0 0.0
        %2149 = vmatpush1.msra.mxu0 0.0
        %2150 = vmatprep.subr.mxu0 0.0
        %2151 = vmatpush1.msra.mxu0 0.0
        %2152 = vmatprep.subr.mxu0 0.0
        %2153 = vmatpush1.msra.mxu0 0.0
        %2154 = vmatprep.subr.mxu0 0.0
        %2155 = vmatpush1.msra.mxu0 0.0
        %2156 = vmatprep.subr.mxu0 0.0
        %2157 = vmatpush1.msra.mxu0 0.0
        %2158 = vmatprep.subr.mxu0 0.0
        %2159 = vmatpush1.msra.mxu0 0.0
        %2160 = vmatprep.subr.mxu0 0.0
        %2161 = vmatpush1.msra.mxu0 0.0
        %2162 = vmatprep.subr.mxu0 0.0
        %2163 = vmatpush1.msra.mxu0 0.0
        %2164 = vmatprep.subr.mxu0 0.0
        %2165 = vmatpush1.msra.mxu0 0.0
        %2166 = vmatprep.subr.mxu0 0.0
        %2167 = vmatpush1.msra.mxu0 0.0
        %2168 = vmatprep.subr.mxu0 0.0
        %2169 = vmatpush1.msra.mxu0 0.0
        %2170 = vmatprep.subr.mxu0 0.0
        %2171 = vmatpush1.msra.mxu0 0.0
        %2172 = vmatprep.subr.mxu0 0.0
        %2173 = vmatpush1.msra.mxu0 0.0
        %2174 = vmatprep.subr.mxu0 0.0
        %2175 = vmatpush1.msra.mxu0 0.0
        %2176 = vmatprep.subr.mxu0 0.0
        %2177 = vmatpush1.msra.mxu0 0.0
        %2178 = vmatprep.subr.mxu0 0.0
        %2179 = vmatpush1.msra.mxu0 0.0
        %2180 = vmatprep.subr.mxu0 0.0
        %2181 = vmatpush1.msra.mxu0 0.0
        %2182 = vmatprep.subr.mxu0 0.0
        %2183 = vmatpush1.msra.mxu0 0.0
        %2184 = vmatprep.subr.mxu0 0.0
        %2185 = vmatpush1.msra.mxu0 0.0
        %2186 = vmatprep.subr.mxu0 0.0
        %2187 = vmatpush1.msra.mxu0 0.0
        %2188 = vmatprep.subr.mxu0 0.0
        %2189 = vmatpush1.msra.mxu0 0.0
        %2190 = vmatprep.subr.mxu0 0.0
        %2191 = vmatpush1.msra.mxu0 0.0
        %2192 = vmatprep.subr.mxu0 0.0
        %2193 = vmatpush1.msra.mxu0 0.0
        %2194 = vmatprep.subr.mxu0 0.0
        %2195 = vmatpush1.msra.mxu0 0.0
        %2196 = vmatprep.subr.mxu0 0.0
        %2197 = vmatpush1.msra.mxu0 0.0
        %2198 = vmatprep.subr.mxu0 0.0
        %2199 = vmatpush1.msra.mxu0 0.0
        %2200 = vmatprep.subr.mxu0 0.0
        %2201 = vmatpush1.msra.mxu0 0.0
        %2202 = vmatprep.subr.mxu0 0.0
        %2203 = vmatpush1.msra.mxu0 0.0
        %2204 = vmatprep.subr.mxu0 0.0
        %2205 = vmatpush1.msra.mxu0 0.0
        %2206 = vmatprep.subr.mxu0 0.0
        %2207 = vmatpush1.msra.mxu0 0.0
        %2208 = vmatprep.subr.mxu0 0.0
        %2209 = vmatpush1.msra.mxu0 0.0
        %2210 = vmatprep.mubr.f32.mxu0 0.0
        %2211 = vmatmul.mubr.f32.gmra.mrb[0].mxu0 %v2138
        %v2212 = vpop.f32.mrb[0].mxu0
        %v2213 = vadd.f32 0.0, %v2212
        %v2214 = vpop.f32.mrb[0].mxu0
        %2215 = vmatprep.mubr.f32.mxu0 0.0
        %2216 = vmatmul.mubr.f32.gmra.mrb[0].mxu0 %v2141
        %v2217 = vpop.f32.mrb[0].mxu0
        %v2218 = vadd.f32 0.0, %v2217
        %v2219 = vpop.f32.mrb[0].mxu0
        %2220 = vdwg.mxu0
        %2221 = vxpose.xlu0.b32.start [1/16] %v454, 128
        %2222 = vxpose.xlu0.b32.cont [2/16] 0.0, 128
        %2223 = vxpose.xlu0.b32.cont [3/16] 0.0, 128
        %2224 = vxpose.xlu0.b32.cont [4/16] 0.0, 128
        %2225 = vxpose.xlu0.b32.cont [5/16] 0.0, 128
        %2226 = vxpose.xlu0.b32.cont [6/16] 0.0, 128
        %2227 = vxpose.xlu0.b32.cont [7/16] 0.0, 128
        %2228 = vxpose.xlu0.b32.cont [8/16] 0.0, 128
        %2229 = vxpose.xlu0.b32.cont [9/16] 0.0, 128
        %2230 = vxpose.xlu0.b32.cont [10/16] 0.0, 128
        %2231 = vxpose.xlu0.b32.cont [11/16] 0.0, 128
        %2232 = vxpose.xlu0.b32.cont [12/16] 0.0, 128
        %2233 = vxpose.xlu0.b32.cont [13/16] 0.0, 128
        %2234 = vxpose.xlu0.b32.cont [14/16] 0.0, 128
        %2235 = vxpose.xlu0.b32.cont [15/16] 0.0, 128
        %2236 = vxpose.xlu0.b32.end [16/16] 0.0, 128
        %v2237 = vpop.trf.xlu0
        %v2238 = vpop.trf.xlu0
        %v2239 = vpop.trf.xlu0
        %v2240 = vpop.trf.xlu0
        %v2241 = vpop.trf.xlu0
        %v2242 = vpop.trf.xlu0
        %v2243 = vpop.trf.xlu0
        %v2244 = vpop.trf.xlu0
        %v2245 = vpop.trf.xlu0
        %v2246 = vpop.trf.xlu0
        %v2247 = vpop.trf.xlu0
        %v2248 = vpop.trf.xlu0
        %v2249 = vpop.trf.xlu0
        %v2250 = vpop.trf.xlu0
        %v2251 = vpop.trf.xlu0
        %v2252 = vpop.trf.xlu0
        %v2254 = vsel %vm627, %v2237, 0
        %v2257 = vsel %vm627, %v2238, 0
        %v2260 = vsel %vm634, %v590, 0
        %2262 = vmatprep.subr.mxu0 0.0
        %2263 = vmatpush1.msra.mxu0 %v2260
        %2264 = vmatprep.subr.mxu0 0.0
        %2265 = vmatpush1.msra.mxu0 0.0
        %2266 = vmatprep.subr.mxu0 0.0
        %2267 = vmatpush1.msra.mxu0 0.0
        %2268 = vmatprep.subr.mxu0 0.0
        %2269 = vmatpush1.msra.mxu0 0.0
        %2270 = vmatprep.subr.mxu0 0.0
        %2271 = vmatpush1.msra.mxu0 0.0
        %2272 = vmatprep.subr.mxu0 0.0
        %2273 = vmatpush1.msra.mxu0 0.0
        %2274 = vmatprep.subr.mxu0 0.0
        %2275 = vmatpush1.msra.mxu0 0.0
        %2276 = vmatprep.subr.mxu0 0.0
        %2277 = vmatpush1.msra.mxu0 0.0
        %2278 = vmatprep.subr.mxu0 0.0
        %2279 = vmatpush1.msra.mxu0 0.0
        %2280 = vmatprep.subr.mxu0 0.0
        %2281 = vmatpush1.msra.mxu0 0.0
        %2282 = vmatprep.subr.mxu0 0.0
        %2283 = vmatpush1.msra.mxu0 0.0
        %2284 = vmatprep.subr.mxu0 0.0
        %2285 = vmatpush1.msra.mxu0 0.0
        %2286 = vmatprep.subr.mxu0 0.0
        %2287 = vmatpush1.msra.mxu0 0.0
        %2288 = vmatprep.subr.mxu0 0.0
        %2289 = vmatpush1.msra.mxu0 0.0
        %2290 = vmatprep.subr.mxu0 0.0
        %2291 = vmatpush1.msra.mxu0 0.0
        %2292 = vmatprep.subr.mxu0 0.0
        %2293 = vmatpush1.msra.mxu0 0.0
        %2294 = vmatprep.subr.mxu0 0.0
        %2295 = vmatpush1.msra.mxu0 0.0
        %2296 = vmatprep.subr.mxu0 0.0
        %2297 = vmatpush1.msra.mxu0 0.0
        %2298 = vmatprep.subr.mxu0 0.0
        %2299 = vmatpush1.msra.mxu0 0.0
        %2300 = vmatprep.subr.mxu0 0.0
        %2301 = vmatpush1.msra.mxu0 0.0
        %2302 = vmatprep.subr.mxu0 0.0
        %2303 = vmatpush1.msra.mxu0 0.0
        %2304 = vmatprep.subr.mxu0 0.0
        %2305 = vmatpush1.msra.mxu0 0.0
        %2306 = vmatprep.subr.mxu0 0.0
        %2307 = vmatpush1.msra.mxu0 0.0
        %2308 = vmatprep.subr.mxu0 0.0
        %2309 = vmatpush1.msra.mxu0 0.0
        %2310 = vmatprep.subr.mxu0 0.0
        %2311 = vmatpush1.msra.mxu0 0.0
        %2312 = vmatprep.subr.mxu0 0.0
        %2313 = vmatpush1.msra.mxu0 0.0
        %2314 = vmatprep.subr.mxu0 0.0
        %2315 = vmatpush1.msra.mxu0 0.0
        %2316 = vmatprep.subr.mxu0 0.0
        %2317 = vmatpush1.msra.mxu0 0.0
        %2318 = vmatprep.subr.mxu0 0.0
        %2319 = vmatpush1.msra.mxu0 0.0
        %2320 = vmatprep.subr.mxu0 0.0
        %2321 = vmatpush1.msra.mxu0 0.0
        %2322 = vmatprep.subr.mxu0 0.0
        %2323 = vmatpush1.msra.mxu0 0.0
        %2324 = vmatprep.subr.mxu0 0.0
        %2325 = vmatpush1.msra.mxu0 0.0
        %2326 = vmatprep.mubr.f32.mxu0 0.0
        %2327 = vmatmul.mubr.f32.gmra.mrb[0].mxu0 %v2254
        %v2328 = vpop.f32.mrb[0].mxu0
        %v2329 = vadd.f32 0.0, %v2328
        %v2330 = vpop.f32.mrb[0].mxu0
        %2331 = vmatprep.mubr.f32.mxu0 0.0
        %2332 = vmatmul.mubr.f32.gmra.mrb[0].mxu0 %v2257
        %v2333 = vpop.f32.mrb[0].mxu0
        %v2334 = vadd.f32 0.0, %v2333
        %v2335 = vpop.f32.mrb[0].mxu0
        %2336 = vdwg.mxu0
        %2337 = vxpose.xlu0.b32.start [1/16] %v458, 128
        %2338 = vxpose.xlu0.b32.cont [2/16] 0.0, 128
        %2339 = vxpose.xlu0.b32.cont [3/16] 0.0, 128
        %2340 = vxpose.xlu0.b32.cont [4/16] 0.0, 128
        %2341 = vxpose.xlu0.b32.cont [5/16] 0.0, 128
        %2342 = vxpose.xlu0.b32.cont [6/16] 0.0, 128
        %2343 = vxpose.xlu0.b32.cont [7/16] 0.0, 128
        %2344 = vxpose.xlu0.b32.cont [8/16] 0.0, 128
        %2345 = vxpose.xlu0.b32.cont [9/16] 0.0, 128
        %2346 = vxpose.xlu0.b32.cont [10/16] 0.0, 128
        %2347 = vxpose.xlu0.b32.cont [11/16] 0.0, 128
        %2348 = vxpose.xlu0.b32.cont [12/16] 0.0, 128
        %2349 = vxpose.xlu0.b32.cont [13/16] 0.0, 128
        %2350 = vxpose.xlu0.b32.cont [14/16] 0.0, 128
        %2351 = vxpose.xlu0.b32.cont [15/16] 0.0, 128
        %2352 = vxpose.xlu0.b32.end [16/16] 0.0, 128
        %v2353 = vpop.trf.xlu0
        %v2354 = vpop.trf.xlu0
        %v2355 = vpop.trf.xlu0
        %v2356 = vpop.trf.xlu0
        %v2357 = vpop.trf.xlu0
        %v2358 = vpop.trf.xlu0
        %v2359 = vpop.trf.xlu0
        %v2360 = vpop.trf.xlu0
        %v2361 = vpop.trf.xlu0
        %v2362 = vpop.trf.xlu0
        %v2363 = vpop.trf.xlu0
        %v2364 = vpop.trf.xlu0
        %v2365 = vpop.trf.xlu0
        %v2366 = vpop.trf.xlu0
        %v2367 = vpop.trf.xlu0
        %v2368 = vpop.trf.xlu0
        %v2370 = vsel %vm627, %v2353, 0
        %v2373 = vsel %vm627, %v2354, 0
        %v2376 = vsel %vm634, %v594, 0
        %2378 = vmatprep.subr.mxu0 0.0
        %2379 = vmatpush1.msra.mxu0 %v2376
        %2380 = vmatprep.subr.mxu0 0.0
        %2381 = vmatpush1.msra.mxu0 0.0
        %2382 = vmatprep.subr.mxu0 0.0
        %2383 = vmatpush1.msra.mxu0 0.0
        %2384 = vmatprep.subr.mxu0 0.0
        %2385 = vmatpush1.msra.mxu0 0.0
        %2386 = vmatprep.subr.mxu0 0.0
        %2387 = vmatpush1.msra.mxu0 0.0
        %2388 = vmatprep.subr.mxu0 0.0
        %2389 = vmatpush1.msra.mxu0 0.0
        %2390 = vmatprep.subr.mxu0 0.0
        %2391 = vmatpush1.msra.mxu0 0.0
        %2392 = vmatprep.subr.mxu0 0.0
        %2393 = vmatpush1.msra.mxu0 0.0
        %2394 = vmatprep.subr.mxu0 0.0
        %2395 = vmatpush1.msra.mxu0 0.0
        %2396 = vmatprep.subr.mxu0 0.0
        %2397 = vmatpush1.msra.mxu0 0.0
        %2398 = vmatprep.subr.mxu0 0.0
        %2399 = vmatpush1.msra.mxu0 0.0
        %2400 = vmatprep.subr.mxu0 0.0
        %2401 = vmatpush1.msra.mxu0 0.0
        %2402 = vmatprep.subr.mxu0 0.0
        %2403 = vmatpush1.msra.mxu0 0.0
        %2404 = vmatprep.subr.mxu0 0.0
        %2405 = vmatpush1.msra.mxu0 0.0
        %2406 = vmatprep.subr.mxu0 0.0
        %2407 = vmatpush1.msra.mxu0 0.0
        %2408 = vmatprep.subr.mxu0 0.0
        %2409 = vmatpush1.msra.mxu0 0.0
        %2410 = vmatprep.subr.mxu0 0.0
        %2411 = vmatpush1.msra.mxu0 0.0
        %2412 = vmatprep.subr.mxu0 0.0
        %2413 = vmatpush1.msra.mxu0 0.0
        %2414 = vmatprep.subr.mxu0 0.0
        %2415 = vmatpush1.msra.mxu0 0.0
        %2416 = vmatprep.subr.mxu0 0.0
        %2417 = vmatpush1.msra.mxu0 0.0
        %2418 = vmatprep.subr.mxu0 0.0
        %2419 = vmatpush1.msra.mxu0 0.0
        %2420 = vmatprep.subr.mxu0 0.0
        %2421 = vmatpush1.msra.mxu0 0.0
        %2422 = vmatprep.subr.mxu0 0.0
        %2423 = vmatpush1.msra.mxu0 0.0
        %2424 = vmatprep.subr.mxu0 0.0
        %2425 = vmatpush1.msra.mxu0 0.0
        %2426 = vmatprep.subr.mxu0 0.0
        %2427 = vmatpush1.msra.mxu0 0.0
        %2428 = vmatprep.subr.mxu0 0.0
        %2429 = vmatpush1.msra.mxu0 0.0
        %2430 = vmatprep.subr.mxu0 0.0
        %2431 = vmatpush1.msra.mxu0 0.0
        %2432 = vmatprep.subr.mxu0 0.0
        %2433 = vmatpush1.msra.mxu0 0.0
        %2434 = vmatprep.subr.mxu0 0.0
        %2435 = vmatpush1.msra.mxu0 0.0
        %2436 = vmatprep.subr.mxu0 0.0
        %2437 = vmatpush1.msra.mxu0 0.0
        %2438 = vmatprep.subr.mxu0 0.0
        %2439 = vmatpush1.msra.mxu0 0.0
        %2440 = vmatprep.subr.mxu0 0.0
        %2441 = vmatpush1.msra.mxu0 0.0
        %2442 = vmatprep.mubr.f32.mxu0 0.0
        %2443 = vmatmul.mubr.f32.gmra.mrb[0].mxu0 %v2370
        %v2444 = vpop.f32.mrb[0].mxu0
        %v2445 = vadd.f32 0.0, %v2444
        %v2446 = vpop.f32.mrb[0].mxu0
        %2447 = vmatprep.mubr.f32.mxu0 0.0
        %2448 = vmatmul.mubr.f32.gmra.mrb[0].mxu0 %v2373
        %v2449 = vpop.f32.mrb[0].mxu0
        %v2450 = vadd.f32 0.0, %v2449
        %v2451 = vpop.f32.mrb[0].mxu0
        %2452 = vdwg.mxu0
        %v2453 = vmul.f32 %v705, 0.5
        %v2454 = vmul.f32 %v710, 0.5
        %v2455 = vmul.f32 %v821, 0.5
        %v2456 = vmul.f32 %v826, 0.5
        %v2457 = vmul.f32 %v937, 0.5
        %v2458 = vmul.f32 %v942, 0.5
        %v2459 = vmul.f32 %v1053, 0.5
        %v2460 = vmul.f32 %v1058, 0.5
        %v2461 = vmul.f32 %v1169, 0.5
        %v2462 = vmul.f32 %v1174, 0.5
        %v2463 = vmul.f32 %v1285, 0.5
        %v2464 = vmul.f32 %v1290, 0.5
        %v2465 = vmul.f32 %v1401, 0.5
        %v2466 = vmul.f32 %v1406, 0.5
        %v2467 = vmul.f32 %v1517, 0.5
        %v2468 = vmul.f32 %v1522, 0.5
        %v2469 = vmul.f32 %v1633, 0.5
        %v2470 = vmul.f32 %v1638, 0.5
        %v2471 = vmul.f32 %v1749, 0.5
        %v2472 = vmul.f32 %v1754, 0.5
        %v2473 = vmul.f32 %v1865, 0.5
        %v2474 = vmul.f32 %v1870, 0.5
        %v2475 = vmul.f32 %v1981, 0.5
        %v2476 = vmul.f32 %v1986, 0.5
        %v2477 = vmul.f32 %v2097, 0.5
        %v2478 = vmul.f32 %v2102, 0.5
        %v2479 = vmul.f32 %v2213, 0.5
        %v2480 = vmul.f32 %v2218, 0.5
        %v2481 = vmul.f32 %v2329, 0.5
        %v2482 = vmul.f32 %v2334, 0.5
        %v2483 = vmul.f32 %v2445, 0.5
        %v2484 = vmul.f32 %v2450, 0.5
        %v2485 = vfloor.f32 %v2453
        %v2486 = vfloor.f32 %v2454
        %v2487 = vfloor.f32 %v2455
        %v2488 = vfloor.f32 %v2456
        %v2489 = vfloor.f32 %v2457
        %v2490 = vfloor.f32 %v2458
        %v2491 = vfloor.f32 %v2459
        %v2492 = vfloor.f32 %v2460
        %v2493 = vfloor.f32 %v2461
        %v2494 = vfloor.f32 %v2462
        %v2495 = vfloor.f32 %v2463
        %v2496 = vfloor.f32 %v2464
        %v2497 = vfloor.f32 %v2465
        %v2498 = vfloor.f32 %v2466
        %v2499 = vfloor.f32 %v2467
        %v2500 = vfloor.f32 %v2468
        %v2501 = vfloor.f32 %v2469
        %v2502 = vfloor.f32 %v2470
        %v2503 = vfloor.f32 %v2471
        %v2504 = vfloor.f32 %v2472
        %v2505 = vfloor.f32 %v2473
        %v2506 = vfloor.f32 %v2474
        %v2507 = vfloor.f32 %v2475
        %v2508 = vfloor.f32 %v2476
        %v2509 = vfloor.f32 %v2477
        %v2510 = vfloor.f32 %v2478
        %v2511 = vfloor.f32 %v2479
        %v2512 = vfloor.f32 %v2480
        %v2513 = vfloor.f32 %v2481
        %v2514 = vfloor.f32 %v2482
        %v2515 = vfloor.f32 %v2483
        %v2516 = vfloor.f32 %v2484
        %v2517 = vcombine.low %v2485, %v2489
        %v2518 = vcombine.high %v2485, %v2489
        %v2520 = vunpack.c.l.s4 1983009808
        %v2521 = vunpack.c.0.s8 %v2520
        %v2522 = vlaneseq
        %v2523 = vshrl.u32 %v2522, 7
        %v2524 = vsub.s32 %v2521, %v2523
        %v2525 = vrot.slane %v2517, %v2524
        %v2527 = vunpack.c.l.s4 1983009808
        %v2528 = vunpack.c.0.s8 %v2527
        %v2529 = vlaneseq
        %v2530 = vshrl.u32 %v2529, 7
        %v2531 = vsub.s32 %v2528, %v2530
        %v2532 = vrot.slane %v2518, %v2531
        %v2533 = vcombine.low %v2487, %v2491
        %v2534 = vcombine.high %v2487, %v2491
        %v2536 = vunpack.c.l.s4 1983009808
        %v2537 = vunpack.c.0.s8 %v2536
        %v2538 = vlaneseq
        %v2539 = vshrl.u32 %v2538, 7
        %v2540 = vsub.s32 %v2537, %v2539
        %v2541 = vrot.slane %v2533, %v2540
        %v2543 = vunpack.c.l.s4 1983009808
        %v2544 = vunpack.c.0.s8 %v2543
        %v2545 = vlaneseq
        %v2546 = vshrl.u32 %v2545, 7
        %v2547 = vsub.s32 %v2544, %v2546
        %v2548 = vrot.slane %v2534, %v2547
        %v2549 = vcombine.low %v2493, %v2497
        %v2550 = vcombine.high %v2493, %v2497
        %v2552 = vunpack.c.l.s4 1983009808
        %v2553 = vunpack.c.0.s8 %v2552
        %v2554 = vlaneseq
        %v2555 = vshrl.u32 %v2554, 7
        %v2556 = vsub.s32 %v2553, %v2555
        %v2557 = vrot.slane %v2549, %v2556
        %v2559 = vunpack.c.l.s4 1983009808
        %v2560 = vunpack.c.0.s8 %v2559
        %v2561 = vlaneseq
        %v2562 = vshrl.u32 %v2561, 7
        %v2563 = vsub.s32 %v2560, %v2562
        %v2564 = vrot.slane %v2550, %v2563
        %v2565 = vcombine.low %v2495, %v2499
        %v2566 = vcombine.high %v2495, %v2499
        %v2568 = vunpack.c.l.s4 1983009808
        %v2569 = vunpack.c.0.s8 %v2568
        %v2570 = vlaneseq
        %v2571 = vshrl.u32 %v2570, 7
        %v2572 = vsub.s32 %v2569, %v2571
        %v2573 = vrot.slane %v2565, %v2572
        %v2575 = vunpack.c.l.s4 1983009808
        %v2576 = vunpack.c.0.s8 %v2575
        %v2577 = vlaneseq
        %v2578 = vshrl.u32 %v2577, 7
        %v2579 = vsub.s32 %v2576, %v2578
        %v2580 = vrot.slane %v2566, %v2579
        %v2581 = vcombine.low %v2525, %v2541
        %v2582 = vcombine.high %v2525, %v2541
        %v2584 = vunpack.c.l.s4 1934713408
        %v2585 = vunpack.c.0.s8 %v2584
        %v2586 = vlaneseq
        %v2587 = vshrl.u32 %v2586, 7
        %v2588 = vsub.s32 %v2585, %v2587
        %v2589 = vrot.slane %v2581, %v2588
        %v2591 = vunpack.c.l.s4 1934713408
        %v2592 = vunpack.c.0.s8 %v2591
        %v2593 = vlaneseq
        %v2594 = vshrl.u32 %v2593, 7
        %v2595 = vsub.s32 %v2592, %v2594
        %v2596 = vrot.slane %v2582, %v2595
        %v2597 = vcombine.low %v2532, %v2548
        %v2598 = vcombine.high %v2532, %v2548
        %v2600 = vunpack.c.l.s4 1934713408
        %v2601 = vunpack.c.0.s8 %v2600
        %v2602 = vlaneseq
        %v2603 = vshrl.u32 %v2602, 7
        %v2604 = vsub.s32 %v2601, %v2603
        %v2605 = vrot.slane %v2597, %v2604
        %v2607 = vunpack.c.l.s4 1934713408
        %v2608 = vunpack.c.0.s8 %v2607
        %v2609 = vlaneseq
        %v2610 = vshrl.u32 %v2609, 7
        %v2611 = vsub.s32 %v2608, %v2610
        %v2612 = vrot.slane %v2598, %v2611
        %v2613 = vcombine.low %v2557, %v2573
        %v2614 = vcombine.high %v2557, %v2573
        %v2616 = vunpack.c.l.s4 1934713408
        %v2617 = vunpack.c.0.s8 %v2616
        %v2618 = vlaneseq
        %v2619 = vshrl.u32 %v2618, 7
        %v2620 = vsub.s32 %v2617, %v2619
        %v2621 = vrot.slane %v2613, %v2620
        %v2623 = vunpack.c.l.s4 1934713408
        %v2624 = vunpack.c.0.s8 %v2623
        %v2625 = vlaneseq
        %v2626 = vshrl.u32 %v2625, 7
        %v2627 = vsub.s32 %v2624, %v2626
        %v2628 = vrot.slane %v2614, %v2627
        %v2629 = vcombine.low %v2564, %v2580
        %v2630 = vcombine.high %v2564, %v2580
        %v2632 = vunpack.c.l.s4 1934713408
        %v2633 = vunpack.c.0.s8 %v2632
        %v2634 = vlaneseq
        %v2635 = vshrl.u32 %v2634, 7
        %v2636 = vsub.s32 %v2633, %v2635
        %v2637 = vrot.slane %v2629, %v2636
        %v2639 = vunpack.c.l.s4 1934713408
        %v2640 = vunpack.c.0.s8 %v2639
        %v2641 = vlaneseq
        %v2642 = vshrl.u32 %v2641, 7
        %v2643 = vsub.s32 %v2640, %v2642
        %v2644 = vrot.slane %v2630, %v2643
        %v2645 = vcombine.low %v2589, %v2621
        %v2646 = vcombine.high %v2589, %v2621
        %v2647 = vcombine.low %v2596, %v2628
        %v2648 = vcombine.high %v2596, %v2628
        %v2649 = vcombine.low %v2605, %v2637
        %v2650 = vcombine.high %v2605, %v2637
        %v2651 = vcombine.low %v2612, %v2644
        %v2652 = vcombine.high %v2612, %v2644
        %v2653 = vcombine.low %v2501, %v2505
        %v2654 = vcombine.high %v2501, %v2505
        %v2656 = vunpack.c.l.s4 1983009808
        %v2657 = vunpack.c.0.s8 %v2656
        %v2658 = vlaneseq
        %v2659 = vshrl.u32 %v2658, 7
        %v2660 = vsub.s32 %v2657, %v2659
        %v2661 = vrot.slane %v2653, %v2660
        %v2663 = vunpack.c.l.s4 1983009808
        %v2664 = vunpack.c.0.s8 %v2663
        %v2665 = vlaneseq
        %v2666 = vshrl.u32 %v2665, 7
        %v2667 = vsub.s32 %v2664, %v2666
        %v2668 = vrot.slane %v2654, %v2667
        %v2669 = vcombine.low %v2503, %v2507
        %v2670 = vcombine.high %v2503, %v2507
        %v2672 = vunpack.c.l.s4 1983009808
        %v2673 = vunpack.c.0.s8 %v2672
        %v2674 = vlaneseq
        %v2675 = vshrl.u32 %v2674, 7
        %v2676 = vsub.s32 %v2673, %v2675
        %v2677 = vrot.slane %v2669, %v2676
        %v2679 = vunpack.c.l.s4 1983009808
        %v2680 = vunpack.c.0.s8 %v2679
        %v2681 = vlaneseq
        %v2682 = vshrl.u32 %v2681, 7
        %v2683 = vsub.s32 %v2680, %v2682
        %v2684 = vrot.slane %v2670, %v2683
        %v2685 = vcombine.low %v2509, %v2513
        %v2686 = vcombine.high %v2509, %v2513
        %v2688 = vunpack.c.l.s4 1983009808
        %v2689 = vunpack.c.0.s8 %v2688
        %v2690 = vlaneseq
        %v2691 = vshrl.u32 %v2690, 7
        %v2692 = vsub.s32 %v2689, %v2691
        %v2693 = vrot.slane %v2685, %v2692
        %v2695 = vunpack.c.l.s4 1983009808
        %v2696 = vunpack.c.0.s8 %v2695
        %v2697 = vlaneseq
        %v2698 = vshrl.u32 %v2697, 7
        %v2699 = vsub.s32 %v2696, %v2698
        %v2700 = vrot.slane %v2686, %v2699
        %v2701 = vcombine.low %v2511, %v2515
        %v2702 = vcombine.high %v2511, %v2515
        %v2704 = vunpack.c.l.s4 1983009808
        %v2705 = vunpack.c.0.s8 %v2704
        %v2706 = vlaneseq
        %v2707 = vshrl.u32 %v2706, 7
        %v2708 = vsub.s32 %v2705, %v2707
        %v2709 = vrot.slane %v2701, %v2708
        %v2711 = vunpack.c.l.s4 1983009808
        %v2712 = vunpack.c.0.s8 %v2711
        %v2713 = vlaneseq
        %v2714 = vshrl.u32 %v2713, 7
        %v2715 = vsub.s32 %v2712, %v2714
        %v2716 = vrot.slane %v2702, %v2715
        %v2717 = vcombine.low %v2661, %v2677
        %v2718 = vcombine.high %v2661, %v2677
        %v2720 = vunpack.c.l.s4 1934713408
        %v2721 = vunpack.c.0.s8 %v2720
        %v2722 = vlaneseq
        %v2723 = vshrl.u32 %v2722, 7
        %v2724 = vsub.s32 %v2721, %v2723
        %v2725 = vrot.slane %v2717, %v2724
        %v2727 = vunpack.c.l.s4 1934713408
        %v2728 = vunpack.c.0.s8 %v2727
        %v2729 = vlaneseq
        %v2730 = vshrl.u32 %v2729, 7
        %v2731 = vsub.s32 %v2728, %v2730
        %v2732 = vrot.slane %v2718, %v2731
        %v2733 = vcombine.low %v2668, %v2684
        %v2734 = vcombine.high %v2668, %v2684
        %v2736 = vunpack.c.l.s4 1934713408
        %v2737 = vunpack.c.0.s8 %v2736
        %v2738 = vlaneseq
        %v2739 = vshrl.u32 %v2738, 7
        %v2740 = vsub.s32 %v2737, %v2739
        %v2741 = vrot.slane %v2733, %v2740
        %v2743 = vunpack.c.l.s4 1934713408
        %v2744 = vunpack.c.0.s8 %v2743
        %v2745 = vlaneseq
        %v2746 = vshrl.u32 %v2745, 7
        %v2747 = vsub.s32 %v2744, %v2746
        %v2748 = vrot.slane %v2734, %v2747
        %v2749 = vcombine.low %v2693, %v2709
        %v2750 = vcombine.high %v2693, %v2709
        %v2752 = vunpack.c.l.s4 1934713408
        %v2753 = vunpack.c.0.s8 %v2752
        %v2754 = vlaneseq
        %v2755 = vshrl.u32 %v2754, 7
        %v2756 = vsub.s32 %v2753, %v2755
        %v2757 = vrot.slane %v2749, %v2756
        %v2759 = vunpack.c.l.s4 1934713408
        %v2760 = vunpack.c.0.s8 %v2759
        %v2761 = vlaneseq
        %v2762 = vshrl.u32 %v2761, 7
        %v2763 = vsub.s32 %v2760, %v2762
        %v2764 = vrot.slane %v2750, %v2763
        %v2765 = vcombine.low %v2700, %v2716
        %v2766 = vcombine.high %v2700, %v2716
        %v2768 = vunpack.c.l.s4 1934713408
        %v2769 = vunpack.c.0.s8 %v2768
        %v2770 = vlaneseq
        %v2771 = vshrl.u32 %v2770, 7
        %v2772 = vsub.s32 %v2769, %v2771
        %v2773 = vrot.slane %v2765, %v2772
        %v2775 = vunpack.c.l.s4 1934713408
        %v2776 = vunpack.c.0.s8 %v2775
        %v2777 = vlaneseq
        %v2778 = vshrl.u32 %v2777, 7
        %v2779 = vsub.s32 %v2776, %v2778
        %v2780 = vrot.slane %v2766, %v2779
        %v2781 = vcombine.low %v2725, %v2757
        %v2782 = vcombine.high %v2725, %v2757
        %v2783 = vcombine.low %v2732, %v2764
        %v2784 = vcombine.high %v2732, %v2764
        %v2785 = vcombine.low %v2741, %v2773
        %v2786 = vcombine.high %v2741, %v2773
        %v2787 = vcombine.low %v2748, %v2780
        %v2788 = vcombine.high %v2748, %v2780
        %v2789 = vcombine.low %v2486, %v2490
        %v2790 = vcombine.high %v2486, %v2490
        %v2792 = vunpack.c.l.s4 1983009808
        %v2793 = vunpack.c.0.s8 %v2792
        %v2794 = vlaneseq
        %v2795 = vshrl.u32 %v2794, 7
        %v2796 = vsub.s32 %v2793, %v2795
        %v2797 = vrot.slane %v2789, %v2796
        %v2799 = vunpack.c.l.s4 1983009808
        %v2800 = vunpack.c.0.s8 %v2799
        %v2801 = vlaneseq
        %v2802 = vshrl.u32 %v2801, 7
        %v2803 = vsub.s32 %v2800, %v2802
        %v2804 = vrot.slane %v2790, %v2803
        %v2805 = vcombine.low %v2488, %v2492
        %v2806 = vcombine.high %v2488, %v2492
        %v2808 = vunpack.c.l.s4 1983009808
        %v2809 = vunpack.c.0.s8 %v2808
        %v2810 = vlaneseq
        %v2811 = vshrl.u32 %v2810, 7
        %v2812 = vsub.s32 %v2809, %v2811
        %v2813 = vrot.slane %v2805, %v2812
        %v2815 = vunpack.c.l.s4 1983009808
        %v2816 = vunpack.c.0.s8 %v2815
        %v2817 = vlaneseq
        %v2818 = vshrl.u32 %v2817, 7
        %v2819 = vsub.s32 %v2816, %v2818
        %v2820 = vrot.slane %v2806, %v2819
        %v2821 = vcombine.low %v2494, %v2498
        %v2822 = vcombine.high %v2494, %v2498
        %v2824 = vunpack.c.l.s4 1983009808
        %v2825 = vunpack.c.0.s8 %v2824
        %v2826 = vlaneseq
        %v2827 = vshrl.u32 %v2826, 7
        %v2828 = vsub.s32 %v2825, %v2827
        %v2829 = vrot.slane %v2821, %v2828
        %v2831 = vunpack.c.l.s4 1983009808
        %v2832 = vunpack.c.0.s8 %v2831
        %v2833 = vlaneseq
        %v2834 = vshrl.u32 %v2833, 7
        %v2835 = vsub.s32 %v2832, %v2834
        %v2836 = vrot.slane %v2822, %v2835
        %v2837 = vcombine.low %v2496, %v2500
        %v2838 = vcombine.high %v2496, %v2500
        %v2840 = vunpack.c.l.s4 1983009808
        %v2841 = vunpack.c.0.s8 %v2840
        %v2842 = vlaneseq
        %v2843 = vshrl.u32 %v2842, 7
        %v2844 = vsub.s32 %v2841, %v2843
        %v2845 = vrot.slane %v2837, %v2844
        %v2847 = vunpack.c.l.s4 1983009808
        %v2848 = vunpack.c.0.s8 %v2847
        %v2849 = vlaneseq
        %v2850 = vshrl.u32 %v2849, 7
        %v2851 = vsub.s32 %v2848, %v2850
        %v2852 = vrot.slane %v2838, %v2851
        %v2853 = vcombine.low %v2797, %v2813
        %v2854 = vcombine.high %v2797, %v2813
        %v2856 = vunpack.c.l.s4 1934713408
        %v2857 = vunpack.c.0.s8 %v2856
        %v2858 = vlaneseq
        %v2859 = vshrl.u32 %v2858, 7
        %v2860 = vsub.s32 %v2857, %v2859
        %v2861 = vrot.slane %v2853, %v2860
        %v2863 = vunpack.c.l.s4 1934713408
        %v2864 = vunpack.c.0.s8 %v2863
        %v2865 = vlaneseq
        %v2866 = vshrl.u32 %v2865, 7
        %v2867 = vsub.s32 %v2864, %v2866
        %v2868 = vrot.slane %v2854, %v2867
        %v2869 = vcombine.low %v2804, %v2820
        %v2870 = vcombine.high %v2804, %v2820
        %v2872 = vunpack.c.l.s4 1934713408
        %v2873 = vunpack.c.0.s8 %v2872
        %v2874 = vlaneseq
        %v2875 = vshrl.u32 %v2874, 7
        %v2876 = vsub.s32 %v2873, %v2875
        %v2877 = vrot.slane %v2869, %v2876
        %v2879 = vunpack.c.l.s4 1934713408
        %v2880 = vunpack.c.0.s8 %v2879
        %v2881 = vlaneseq
        %v2882 = vshrl.u32 %v2881, 7
        %v2883 = vsub.s32 %v2880, %v2882
        %v2884 = vrot.slane %v2870, %v2883
        %v2885 = vcombine.low %v2829, %v2845
        %v2886 = vcombine.high %v2829, %v2845
        %v2888 = vunpack.c.l.s4 1934713408
        %v2889 = vunpack.c.0.s8 %v2888
        %v2890 = vlaneseq
        %v2891 = vshrl.u32 %v2890, 7
        %v2892 = vsub.s32 %v2889, %v2891
        %v2893 = vrot.slane %v2885, %v2892
        %v2895 = vunpack.c.l.s4 1934713408
        %v2896 = vunpack.c.0.s8 %v2895
        %v2897 = vlaneseq
        %v2898 = vshrl.u32 %v2897, 7
        %v2899 = vsub.s32 %v2896, %v2898
        %v2900 = vrot.slane %v2886, %v2899
        %v2901 = vcombine.low %v2836, %v2852
        %v2902 = vcombine.high %v2836, %v2852
        %v2904 = vunpack.c.l.s4 1934713408
        %v2905 = vunpack.c.0.s8 %v2904
        %v2906 = vlaneseq
        %v2907 = vshrl.u32 %v2906, 7
        %v2908 = vsub.s32 %v2905, %v2907
        %v2909 = vrot.slane %v2901, %v2908
        %v2911 = vunpack.c.l.s4 1934713408
        %v2912 = vunpack.c.0.s8 %v2911
        %v2913 = vlaneseq
        %v2914 = vshrl.u32 %v2913, 7
        %v2915 = vsub.s32 %v2912, %v2914
        %v2916 = vrot.slane %v2902, %v2915
        %v2917 = vcombine.low %v2861, %v2893
        %v2918 = vcombine.high %v2861, %v2893
        %v2919 = vcombine.low %v2868, %v2900
        %v2920 = vcombine.high %v2868, %v2900
        %v2921 = vcombine.low %v2877, %v2909
        %v2922 = vcombine.high %v2877, %v2909
        %v2923 = vcombine.low %v2884, %v2916
        %v2924 = vcombine.high %v2884, %v2916
        %v2925 = vcombine.low %v2502, %v2506
        %v2926 = vcombine.high %v2502, %v2506
        %v2928 = vunpack.c.l.s4 1983009808
        %v2929 = vunpack.c.0.s8 %v2928
        %v2930 = vlaneseq
        %v2931 = vshrl.u32 %v2930, 7
        %v2932 = vsub.s32 %v2929, %v2931
        %v2933 = vrot.slane %v2925, %v2932
        %v2935 = vunpack.c.l.s4 1983009808
        %v2936 = vunpack.c.0.s8 %v2935
        %v2937 = vlaneseq
        %v2938 = vshrl.u32 %v2937, 7
        %v2939 = vsub.s32 %v2936, %v2938
        %v2940 = vrot.slane %v2926, %v2939
        %v2941 = vcombine.low %v2504, %v2508
        %v2942 = vcombine.high %v2504, %v2508
        %v2944 = vunpack.c.l.s4 1983009808
        %v2945 = vunpack.c.0.s8 %v2944
        %v2946 = vlaneseq
        %v2947 = vshrl.u32 %v2946, 7
        %v2948 = vsub.s32 %v2945, %v2947
        %v2949 = vrot.slane %v2941, %v2948
        %v2951 = vunpack.c.l.s4 1983009808
        %v2952 = vunpack.c.0.s8 %v2951
        %v2953 = vlaneseq
        %v2954 = vshrl.u32 %v2953, 7
        %v2955 = vsub.s32 %v2952, %v2954
        %v2956 = vrot.slane %v2942, %v2955
        %v2957 = vcombine.low %v2510, %v2514
        %v2958 = vcombine.high %v2510, %v2514
        %v2960 = vunpack.c.l.s4 1983009808
        %v2961 = vunpack.c.0.s8 %v2960
        %v2962 = vlaneseq
        %v2963 = vshrl.u32 %v2962, 7
        %v2964 = vsub.s32 %v2961, %v2963
        %v2965 = vrot.slane %v2957, %v2964
        %v2967 = vunpack.c.l.s4 1983009808
        %v2968 = vunpack.c.0.s8 %v2967
        %v2969 = vlaneseq
        %v2970 = vshrl.u32 %v2969, 7
        %v2971 = vsub.s32 %v2968, %v2970
        %v2972 = vrot.slane %v2958, %v2971
        %v2973 = vcombine.low %v2512, %v2516
        %v2974 = vcombine.high %v2512, %v2516
        %v2976 = vunpack.c.l.s4 1983009808
        %v2977 = vunpack.c.0.s8 %v2976
        %v2978 = vlaneseq
        %v2979 = vshrl.u32 %v2978, 7
        %v2980 = vsub.s32 %v2977, %v2979
        %v2981 = vrot.slane %v2973, %v2980
        %v2983 = vunpack.c.l.s4 1983009808
        %v2984 = vunpack.c.0.s8 %v2983
        %v2985 = vlaneseq
        %v2986 = vshrl.u32 %v2985, 7
        %v2987 = vsub.s32 %v2984, %v2986
        %v2988 = vrot.slane %v2974, %v2987
        %v2989 = vcombine.low %v2933, %v2949
        %v2990 = vcombine.high %v2933, %v2949
        %v2992 = vunpack.c.l.s4 1934713408
        %v2993 = vunpack.c.0.s8 %v2992
        %v2994 = vlaneseq
        %v2995 = vshrl.u32 %v2994, 7
        %v2996 = vsub.s32 %v2993, %v2995
        %v2997 = vrot.slane %v2989, %v2996
        %v2999 = vunpack.c.l.s4 1934713408
        %v3000 = vunpack.c.0.s8 %v2999
        %v3001 = vlaneseq
        %v3002 = vshrl.u32 %v3001, 7
        %v3003 = vsub.s32 %v3000, %v3002
        %v3004 = vrot.slane %v2990, %v3003
        %v3005 = vcombine.low %v2940, %v2956
        %v3006 = vcombine.high %v2940, %v2956
        %v3008 = vunpack.c.l.s4 1934713408
        %v3009 = vunpack.c.0.s8 %v3008
        %v3010 = vlaneseq
        %v3011 = vshrl.u32 %v3010, 7
        %v3012 = vsub.s32 %v3009, %v3011
        %v3013 = vrot.slane %v3005, %v3012
        %v3015 = vunpack.c.l.s4 1934713408
        %v3016 = vunpack.c.0.s8 %v3015
        %v3017 = vlaneseq
        %v3018 = vshrl.u32 %v3017, 7
        %v3019 = vsub.s32 %v3016, %v3018
        %v3020 = vrot.slane %v3006, %v3019
        %v3021 = vcombine.low %v2965, %v2981
        %v3022 = vcombine.high %v2965, %v2981
        %v3024 = vunpack.c.l.s4 1934713408
        %v3025 = vunpack.c.0.s8 %v3024
        %v3026 = vlaneseq
        %v3027 = vshrl.u32 %v3026, 7
        %v3028 = vsub.s32 %v3025, %v3027
        %v3029 = vrot.slane %v3021, %v3028
        %v3031 = vunpack.c.l.s4 1934713408
        %v3032 = vunpack.c.0.s8 %v3031
        %v3033 = vlaneseq
        %v3034 = vshrl.u32 %v3033, 7
        %v3035 = vsub.s32 %v3032, %v3034
        %v3036 = vrot.slane %v3022, %v3035
        %v3037 = vcombine.low %v2972, %v2988
        %v3038 = vcombine.high %v2972, %v2988
        %v3040 = vunpack.c.l.s4 1934713408
        %v3041 = vunpack.c.0.s8 %v3040
        %v3042 = vlaneseq
        %v3043 = vshrl.u32 %v3042, 7
        %v3044 = vsub.s32 %v3041, %v3043
        %v3045 = vrot.slane %v3037, %v3044
        %v3047 = vunpack.c.l.s4 1934713408
        %v3048 = vunpack.c.0.s8 %v3047
        %v3049 = vlaneseq
        %v3050 = vshrl.u32 %v3049, 7
        %v3051 = vsub.s32 %v3048, %v3050
        %v3052 = vrot.slane %v3038, %v3051
        %v3053 = vcombine.low %v2997, %v3029
        %v3054 = vcombine.high %v2997, %v3029
        %v3055 = vcombine.low %v3004, %v3036
        %v3056 = vcombine.high %v3004, %v3036
        %v3057 = vcombine.low %v3013, %v3045
        %v3058 = vcombine.high %v3013, %v3045
        %v3059 = vcombine.low %v3020, %v3052
        %v3060 = vcombine.high %v3020, %v3052
        %v3061 = vcombine.low %v2645, %v2647
        %v3062 = vcombine.high %v2645, %v2647
        %v3064 = vunpack.c.l.s4 1983009808
        %v3065 = vunpack.c.0.s8 %v3064
        %v3066 = vlaneseq
        %v3067 = vshrl.u32 %v3066, 7
        %v3068 = vsub.s32 %v3065, %v3067
        %v3069 = vrot.slane %v3061, %v3068
        %v3071 = vunpack.c.l.s4 1983009808
        %v3072 = vunpack.c.0.s8 %v3071
        %v3073 = vlaneseq
        %v3074 = vshrl.u32 %v3073, 7
        %v3075 = vsub.s32 %v3072, %v3074
        %v3076 = vrot.slane %v3062, %v3075
        %v3077 = vcombine.low %v2646, %v2648
        %v3078 = vcombine.high %v2646, %v2648
        %v3080 = vunpack.c.l.s4 1983009808
        %v3081 = vunpack.c.0.s8 %v3080
        %v3082 = vlaneseq
        %v3083 = vshrl.u32 %v3082, 7
        %v3084 = vsub.s32 %v3081, %v3083
        %v3085 = vrot.slane %v3077, %v3084
        %v3087 = vunpack.c.l.s4 1983009808
        %v3088 = vunpack.c.0.s8 %v3087
        %v3089 = vlaneseq
        %v3090 = vshrl.u32 %v3089, 7
        %v3091 = vsub.s32 %v3088, %v3090
        %v3092 = vrot.slane %v3078, %v3091
        %v3093 = vcombine.low %v2649, %v2651
        %v3094 = vcombine.high %v2649, %v2651
        %v3096 = vunpack.c.l.s4 1983009808
        %v3097 = vunpack.c.0.s8 %v3096
        %v3098 = vlaneseq
        %v3099 = vshrl.u32 %v3098, 7
        %v3100 = vsub.s32 %v3097, %v3099
        %v3101 = vrot.slane %v3093, %v3100
        %v3103 = vunpack.c.l.s4 1983009808
        %v3104 = vunpack.c.0.s8 %v3103
        %v3105 = vlaneseq
        %v3106 = vshrl.u32 %v3105, 7
        %v3107 = vsub.s32 %v3104, %v3106
        %v3108 = vrot.slane %v3094, %v3107
        %v3109 = vcombine.low %v2650, %v2652
        %v3110 = vcombine.high %v2650, %v2652
        %v3112 = vunpack.c.l.s4 1983009808
        %v3113 = vunpack.c.0.s8 %v3112
        %v3114 = vlaneseq
        %v3115 = vshrl.u32 %v3114, 7
        %v3116 = vsub.s32 %v3113, %v3115
        %v3117 = vrot.slane %v3109, %v3116
        %v3119 = vunpack.c.l.s4 1983009808
        %v3120 = vunpack.c.0.s8 %v3119
        %v3121 = vlaneseq
        %v3122 = vshrl.u32 %v3121, 7
        %v3123 = vsub.s32 %v3120, %v3122
        %v3124 = vrot.slane %v3110, %v3123
        %v3125 = vcombine.low %v3069, %v3085
        %v3126 = vcombine.high %v3069, %v3085
        %v3128 = vunpack.c.l.s4 1934713408
        %v3129 = vunpack.c.0.s8 %v3128
        %v3130 = vlaneseq
        %v3131 = vshrl.u32 %v3130, 7
        %v3132 = vsub.s32 %v3129, %v3131
        %v3133 = vrot.slane %v3125, %v3132
        %v3135 = vunpack.c.l.s4 1934713408
        %v3136 = vunpack.c.0.s8 %v3135
        %v3137 = vlaneseq
        %v3138 = vshrl.u32 %v3137, 7
        %v3139 = vsub.s32 %v3136, %v3138
        %v3140 = vrot.slane %v3126, %v3139
        %v3141 = vcombine.low %v3076, %v3092
        %v3142 = vcombine.high %v3076, %v3092
        %v3144 = vunpack.c.l.s4 1934713408
        %v3145 = vunpack.c.0.s8 %v3144
        %v3146 = vlaneseq
        %v3147 = vshrl.u32 %v3146, 7
        %v3148 = vsub.s32 %v3145, %v3147
        %v3149 = vrot.slane %v3141, %v3148
        %v3151 = vunpack.c.l.s4 1934713408
        %v3152 = vunpack.c.0.s8 %v3151
        %v3153 = vlaneseq
        %v3154 = vshrl.u32 %v3153, 7
        %v3155 = vsub.s32 %v3152, %v3154
        %v3156 = vrot.slane %v3142, %v3155
        %v3157 = vcombine.low %v3101, %v3117
        %v3158 = vcombine.high %v3101, %v3117
        %v3160 = vunpack.c.l.s4 1934713408
        %v3161 = vunpack.c.0.s8 %v3160
        %v3162 = vlaneseq
        %v3163 = vshrl.u32 %v3162, 7
        %v3164 = vsub.s32 %v3161, %v3163
        %v3165 = vrot.slane %v3157, %v3164
        %v3167 = vunpack.c.l.s4 1934713408
        %v3168 = vunpack.c.0.s8 %v3167
        %v3169 = vlaneseq
        %v3170 = vshrl.u32 %v3169, 7
        %v3171 = vsub.s32 %v3168, %v3170
        %v3172 = vrot.slane %v3158, %v3171
        %v3173 = vcombine.low %v3108, %v3124
        %v3174 = vcombine.high %v3108, %v3124
        %v3176 = vunpack.c.l.s4 1934713408
        %v3177 = vunpack.c.0.s8 %v3176
        %v3178 = vlaneseq
        %v3179 = vshrl.u32 %v3178, 7
        %v3180 = vsub.s32 %v3177, %v3179
        %v3181 = vrot.slane %v3173, %v3180
        %v3183 = vunpack.c.l.s4 1934713408
        %v3184 = vunpack.c.0.s8 %v3183
        %v3185 = vlaneseq
        %v3186 = vshrl.u32 %v3185, 7
        %v3187 = vsub.s32 %v3184, %v3186
        %v3188 = vrot.slane %v3174, %v3187
        %v3189 = vcombine.low %v3133, %v3165
        %v3190 = vcombine.high %v3133, %v3165
        %v3191 = vcombine.low %v3140, %v3172
        %v3192 = vcombine.high %v3140, %v3172
        %v3193 = vcombine.low %v3149, %v3181
        %v3194 = vcombine.high %v3149, %v3181
        %v3195 = vcombine.low %v3156, %v3188
        %v3196 = vcombine.high %v3156, %v3188
        %v3197 = vcombine.low %v2917, %v2919
        %v3198 = vcombine.high %v2917, %v2919
        %v3200 = vunpack.c.l.s4 1983009808
        %v3201 = vunpack.c.0.s8 %v3200
        %v3202 = vlaneseq
        %v3203 = vshrl.u32 %v3202, 7
        %v3204 = vsub.s32 %v3201, %v3203
        %v3205 = vrot.slane %v3197, %v3204
        %v3207 = vunpack.c.l.s4 1983009808
        %v3208 = vunpack.c.0.s8 %v3207
        %v3209 = vlaneseq
        %v3210 = vshrl.u32 %v3209, 7
        %v3211 = vsub.s32 %v3208, %v3210
        %v3212 = vrot.slane %v3198, %v3211
        %v3213 = vcombine.low %v2918, %v2920
        %v3214 = vcombine.high %v2918, %v2920
        %v3216 = vunpack.c.l.s4 1983009808
        %v3217 = vunpack.c.0.s8 %v3216
        %v3218 = vlaneseq
        %v3219 = vshrl.u32 %v3218, 7
        %v3220 = vsub.s32 %v3217, %v3219
        %v3221 = vrot.slane %v3213, %v3220
        %v3223 = vunpack.c.l.s4 1983009808
        %v3224 = vunpack.c.0.s8 %v3223
        %v3225 = vlaneseq
        %v3226 = vshrl.u32 %v3225, 7
        %v3227 = vsub.s32 %v3224, %v3226
        %v3228 = vrot.slane %v3214, %v3227
        %v3229 = vcombine.low %v2921, %v2923
        %v3230 = vcombine.high %v2921, %v2923
        %v3232 = vunpack.c.l.s4 1983009808
        %v3233 = vunpack.c.0.s8 %v3232
        %v3234 = vlaneseq
        %v3235 = vshrl.u32 %v3234, 7
        %v3236 = vsub.s32 %v3233, %v3235
        %v3237 = vrot.slane %v3229, %v3236
        %v3239 = vunpack.c.l.s4 1983009808
        %v3240 = vunpack.c.0.s8 %v3239
        %v3241 = vlaneseq
        %v3242 = vshrl.u32 %v3241, 7
        %v3243 = vsub.s32 %v3240, %v3242
        %v3244 = vrot.slane %v3230, %v3243
        %v3245 = vcombine.low %v2922, %v2924
        %v3246 = vcombine.high %v2922, %v2924
        %v3248 = vunpack.c.l.s4 1983009808
        %v3249 = vunpack.c.0.s8 %v3248
        %v3250 = vlaneseq
        %v3251 = vshrl.u32 %v3250, 7
        %v3252 = vsub.s32 %v3249, %v3251
        %v3253 = vrot.slane %v3245, %v3252
        %v3255 = vunpack.c.l.s4 1983009808
        %v3256 = vunpack.c.0.s8 %v3255
        %v3257 = vlaneseq
        %v3258 = vshrl.u32 %v3257, 7
        %v3259 = vsub.s32 %v3256, %v3258
        %v3260 = vrot.slane %v3246, %v3259
        %v3261 = vcombine.low %v3205, %v3221
        %v3262 = vcombine.high %v3205, %v3221
        %v3264 = vunpack.c.l.s4 1934713408
        %v3265 = vunpack.c.0.s8 %v3264
        %v3266 = vlaneseq
        %v3267 = vshrl.u32 %v3266, 7
        %v3268 = vsub.s32 %v3265, %v3267
        %v3269 = vrot.slane %v3261, %v3268
        %v3271 = vunpack.c.l.s4 1934713408
        %v3272 = vunpack.c.0.s8 %v3271
        %v3273 = vlaneseq
        %v3274 = vshrl.u32 %v3273, 7
        %v3275 = vsub.s32 %v3272, %v3274
        %v3276 = vrot.slane %v3262, %v3275
        %v3277 = vcombine.low %v3212, %v3228
        %v3278 = vcombine.high %v3212, %v3228
        %v3280 = vunpack.c.l.s4 1934713408
        %v3281 = vunpack.c.0.s8 %v3280
        %v3282 = vlaneseq
        %v3283 = vshrl.u32 %v3282, 7
        %v3284 = vsub.s32 %v3281, %v3283
        %v3285 = vrot.slane %v3277, %v3284
        %v3287 = vunpack.c.l.s4 1934713408
        %v3288 = vunpack.c.0.s8 %v3287
        %v3289 = vlaneseq
        %v3290 = vshrl.u32 %v3289, 7
        %v3291 = vsub.s32 %v3288, %v3290
        %v3292 = vrot.slane %v3278, %v3291
        %v3293 = vcombine.low %v3237, %v3253
        %v3294 = vcombine.high %v3237, %v3253
        %v3296 = vunpack.c.l.s4 1934713408
        %v3297 = vunpack.c.0.s8 %v3296
        %v3298 = vlaneseq
        %v3299 = vshrl.u32 %v3298, 7
        %v3300 = vsub.s32 %v3297, %v3299
        %v3301 = vrot.slane %v3293, %v3300
        %v3303 = vunpack.c.l.s4 1934713408
        %v3304 = vunpack.c.0.s8 %v3303
        %v3305 = vlaneseq
        %v3306 = vshrl.u32 %v3305, 7
        %v3307 = vsub.s32 %v3304, %v3306
        %v3308 = vrot.slane %v3294, %v3307
        %v3309 = vcombine.low %v3244, %v3260
        %v3310 = vcombine.high %v3244, %v3260
        %v3312 = vunpack.c.l.s4 1934713408
        %v3313 = vunpack.c.0.s8 %v3312
        %v3314 = vlaneseq
        %v3315 = vshrl.u32 %v3314, 7
        %v3316 = vsub.s32 %v3313, %v3315
        %v3317 = vrot.slane %v3309, %v3316
        %v3319 = vunpack.c.l.s4 1934713408
        %v3320 = vunpack.c.0.s8 %v3319
        %v3321 = vlaneseq
        %v3322 = vshrl.u32 %v3321, 7
        %v3323 = vsub.s32 %v3320, %v3322
        %v3324 = vrot.slane %v3310, %v3323
        %v3325 = vcombine.low %v3269, %v3301
        %v3326 = vcombine.high %v3269, %v3301
        %v3327 = vcombine.low %v3276, %v3308
        %v3328 = vcombine.high %v3276, %v3308
        %v3329 = vcombine.low %v3285, %v3317
        %v3330 = vcombine.high %v3285, %v3317
        %v3331 = vcombine.low %v3292, %v3324
        %v3332 = vcombine.high %v3292, %v3324
        %v3333 = vcombine.low %v2781, %v2783
        %v3334 = vcombine.high %v2781, %v2783
        %v3336 = vunpack.c.l.s4 1983009808
        %v3337 = vunpack.c.0.s8 %v3336
        %v3338 = vlaneseq
        %v3339 = vshrl.u32 %v3338, 7
        %v3340 = vsub.s32 %v3337, %v3339
        %v3341 = vrot.slane %v3333, %v3340
        %v3343 = vunpack.c.l.s4 1983009808
        %v3344 = vunpack.c.0.s8 %v3343
        %v3345 = vlaneseq
        %v3346 = vshrl.u32 %v3345, 7
        %v3347 = vsub.s32 %v3344, %v3346
        %v3348 = vrot.slane %v3334, %v3347
        %v3349 = vcombine.low %v2782, %v2784
        %v3350 = vcombine.high %v2782, %v2784
        %v3352 = vunpack.c.l.s4 1983009808
        %v3353 = vunpack.c.0.s8 %v3352
        %v3354 = vlaneseq
        %v3355 = vshrl.u32 %v3354, 7
        %v3356 = vsub.s32 %v3353, %v3355
        %v3357 = vrot.slane %v3349, %v3356
        %v3359 = vunpack.c.l.s4 1983009808
        %v3360 = vunpack.c.0.s8 %v3359
        %v3361 = vlaneseq
        %v3362 = vshrl.u32 %v3361, 7
        %v3363 = vsub.s32 %v3360, %v3362
        %v3364 = vrot.slane %v3350, %v3363
        %v3365 = vcombine.low %v2785, %v2787
        %v3366 = vcombine.high %v2785, %v2787
        %v3368 = vunpack.c.l.s4 1983009808
        %v3369 = vunpack.c.0.s8 %v3368
        %v3370 = vlaneseq
        %v3371 = vshrl.u32 %v3370, 7
        %v3372 = vsub.s32 %v3369, %v3371
        %v3373 = vrot.slane %v3365, %v3372
        %v3375 = vunpack.c.l.s4 1983009808
        %v3376 = vunpack.c.0.s8 %v3375
        %v3377 = vlaneseq
        %v3378 = vshrl.u32 %v3377, 7
        %v3379 = vsub.s32 %v3376, %v3378
        %v3380 = vrot.slane %v3366, %v3379
        %v3381 = vcombine.low %v2786, %v2788
        %v3382 = vcombine.high %v2786, %v2788
        %v3384 = vunpack.c.l.s4 1983009808
        %v3385 = vunpack.c.0.s8 %v3384
        %v3386 = vlaneseq
        %v3387 = vshrl.u32 %v3386, 7
        %v3388 = vsub.s32 %v3385, %v3387
        %v3389 = vrot.slane %v3381, %v3388
        %v3391 = vunpack.c.l.s4 1983009808
        %v3392 = vunpack.c.0.s8 %v3391
        %v3393 = vlaneseq
        %v3394 = vshrl.u32 %v3393, 7
        %v3395 = vsub.s32 %v3392, %v3394
        %v3396 = vrot.slane %v3382, %v3395
        %v3397 = vcombine.low %v3341, %v3357
        %v3398 = vcombine.high %v3341, %v3357
        %v3400 = vunpack.c.l.s4 1934713408
        %v3401 = vunpack.c.0.s8 %v3400
        %v3402 = vlaneseq
        %v3403 = vshrl.u32 %v3402, 7
        %v3404 = vsub.s32 %v3401, %v3403
        %v3405 = vrot.slane %v3397, %v3404
        %v3407 = vunpack.c.l.s4 1934713408
        %v3408 = vunpack.c.0.s8 %v3407
        %v3409 = vlaneseq
        %v3410 = vshrl.u32 %v3409, 7
        %v3411 = vsub.s32 %v3408, %v3410
        %v3412 = vrot.slane %v3398, %v3411
        %v3413 = vcombine.low %v3348, %v3364
        %v3414 = vcombine.high %v3348, %v3364
        %v3416 = vunpack.c.l.s4 1934713408
        %v3417 = vunpack.c.0.s8 %v3416
        %v3418 = vlaneseq
        %v3419 = vshrl.u32 %v3418, 7
        %v3420 = vsub.s32 %v3417, %v3419
        %v3421 = vrot.slane %v3413, %v3420
        %v3423 = vunpack.c.l.s4 1934713408
        %v3424 = vunpack.c.0.s8 %v3423
        %v3425 = vlaneseq
        %v3426 = vshrl.u32 %v3425, 7
        %v3427 = vsub.s32 %v3424, %v3426
        %v3428 = vrot.slane %v3414, %v3427
        %v3429 = vcombine.low %v3373, %v3389
        %v3430 = vcombine.high %v3373, %v3389
        %v3432 = vunpack.c.l.s4 1934713408
        %v3433 = vunpack.c.0.s8 %v3432
        %v3434 = vlaneseq
        %v3435 = vshrl.u32 %v3434, 7
        %v3436 = vsub.s32 %v3433, %v3435
        %v3437 = vrot.slane %v3429, %v3436
        %v3439 = vunpack.c.l.s4 1934713408
        %v3440 = vunpack.c.0.s8 %v3439
        %v3441 = vlaneseq
        %v3442 = vshrl.u32 %v3441, 7
        %v3443 = vsub.s32 %v3440, %v3442
        %v3444 = vrot.slane %v3430, %v3443
        %v3445 = vcombine.low %v3380, %v3396
        %v3446 = vcombine.high %v3380, %v3396
        %v3448 = vunpack.c.l.s4 1934713408
        %v3449 = vunpack.c.0.s8 %v3448
        %v3450 = vlaneseq
        %v3451 = vshrl.u32 %v3450, 7
        %v3452 = vsub.s32 %v3449, %v3451
        %v3453 = vrot.slane %v3445, %v3452
        %v3455 = vunpack.c.l.s4 1934713408
        %v3456 = vunpack.c.0.s8 %v3455
        %v3457 = vlaneseq
        %v3458 = vshrl.u32 %v3457, 7
        %v3459 = vsub.s32 %v3456, %v3458
        %v3460 = vrot.slane %v3446, %v3459
        %v3461 = vcombine.low %v3405, %v3437
        %v3462 = vcombine.high %v3405, %v3437
        %v3463 = vcombine.low %v3412, %v3444
        %v3464 = vcombine.high %v3412, %v3444
        %v3465 = vcombine.low %v3421, %v3453
        %v3466 = vcombine.high %v3421, %v3453
        %v3467 = vcombine.low %v3428, %v3460
        %v3468 = vcombine.high %v3428, %v3460
        %v3469 = vcombine.low %v3053, %v3055
        %v3470 = vcombine.high %v3053, %v3055
        %v3472 = vunpack.c.l.s4 1983009808
        %v3473 = vunpack.c.0.s8 %v3472
        %v3474 = vlaneseq
        %v3475 = vshrl.u32 %v3474, 7
        %v3476 = vsub.s32 %v3473, %v3475
        %v3477 = vrot.slane %v3469, %v3476
        %v3479 = vunpack.c.l.s4 1983009808
        %v3480 = vunpack.c.0.s8 %v3479
        %v3481 = vlaneseq
        %v3482 = vshrl.u32 %v3481, 7
        %v3483 = vsub.s32 %v3480, %v3482
        %v3484 = vrot.slane %v3470, %v3483
        %v3485 = vcombine.low %v3054, %v3056
        %v3486 = vcombine.high %v3054, %v3056
        %v3488 = vunpack.c.l.s4 1983009808
        %v3489 = vunpack.c.0.s8 %v3488
        %v3490 = vlaneseq
        %v3491 = vshrl.u32 %v3490, 7
        %v3492 = vsub.s32 %v3489, %v3491
        %v3493 = vrot.slane %v3485, %v3492
        %v3495 = vunpack.c.l.s4 1983009808
        %v3496 = vunpack.c.0.s8 %v3495
        %v3497 = vlaneseq
        %v3498 = vshrl.u32 %v3497, 7
        %v3499 = vsub.s32 %v3496, %v3498
        %v3500 = vrot.slane %v3486, %v3499
        %v3501 = vcombine.low %v3057, %v3059
        %v3502 = vcombine.high %v3057, %v3059
        %v3504 = vunpack.c.l.s4 1983009808
        %v3505 = vunpack.c.0.s8 %v3504
        %v3506 = vlaneseq
        %v3507 = vshrl.u32 %v3506, 7
        %v3508 = vsub.s32 %v3505, %v3507
        %v3509 = vrot.slane %v3501, %v3508
        %v3511 = vunpack.c.l.s4 1983009808
        %v3512 = vunpack.c.0.s8 %v3511
        %v3513 = vlaneseq
        %v3514 = vshrl.u32 %v3513, 7
        %v3515 = vsub.s32 %v3512, %v3514
        %v3516 = vrot.slane %v3502, %v3515
        %v3517 = vcombine.low %v3058, %v3060
        %v3518 = vcombine.high %v3058, %v3060
        %v3520 = vunpack.c.l.s4 1983009808
        %v3521 = vunpack.c.0.s8 %v3520
        %v3522 = vlaneseq
        %v3523 = vshrl.u32 %v3522, 7
        %v3524 = vsub.s32 %v3521, %v3523
        %v3525 = vrot.slane %v3517, %v3524
        %v3527 = vunpack.c.l.s4 1983009808
        %v3528 = vunpack.c.0.s8 %v3527
        %v3529 = vlaneseq
        %v3530 = vshrl.u32 %v3529, 7
        %v3531 = vsub.s32 %v3528, %v3530
        %v3532 = vrot.slane %v3518, %v3531
        %v3533 = vcombine.low %v3477, %v3493
        %v3534 = vcombine.high %v3477, %v3493
        %v3536 = vunpack.c.l.s4 1934713408
        %v3537 = vunpack.c.0.s8 %v3536
        %v3538 = vlaneseq
        %v3539 = vshrl.u32 %v3538, 7
        %v3540 = vsub.s32 %v3537, %v3539
        %v3541 = vrot.slane %v3533, %v3540
        %v3543 = vunpack.c.l.s4 1934713408
        %v3544 = vunpack.c.0.s8 %v3543
        %v3545 = vlaneseq
        %v3546 = vshrl.u32 %v3545, 7
        %v3547 = vsub.s32 %v3544, %v3546
        %v3548 = vrot.slane %v3534, %v3547
        %v3549 = vcombine.low %v3484, %v3500
        %v3550 = vcombine.high %v3484, %v3500
        %v3552 = vunpack.c.l.s4 1934713408
        %v3553 = vunpack.c.0.s8 %v3552
        %v3554 = vlaneseq
        %v3555 = vshrl.u32 %v3554, 7
        %v3556 = vsub.s32 %v3553, %v3555
        %v3557 = vrot.slane %v3549, %v3556
        %v3559 = vunpack.c.l.s4 1934713408
        %v3560 = vunpack.c.0.s8 %v3559
        %v3561 = vlaneseq
        %v3562 = vshrl.u32 %v3561, 7
        %v3563 = vsub.s32 %v3560, %v3562
        %v3564 = vrot.slane %v3550, %v3563
        %v3565 = vcombine.low %v3509, %v3525
        %v3566 = vcombine.high %v3509, %v3525
        %v3568 = vunpack.c.l.s4 1934713408
        %v3569 = vunpack.c.0.s8 %v3568
        %v3570 = vlaneseq
        %v3571 = vshrl.u32 %v3570, 7
        %v3572 = vsub.s32 %v3569, %v3571
        %v3573 = vrot.slane %v3565, %v3572
        %v3575 = vunpack.c.l.s4 1934713408
        %v3576 = vunpack.c.0.s8 %v3575
        %v3577 = vlaneseq
        %v3578 = vshrl.u32 %v3577, 7
        %v3579 = vsub.s32 %v3576, %v3578
        %v3580 = vrot.slane %v3566, %v3579
        %v3581 = vcombine.low %v3516, %v3532
        %v3582 = vcombine.high %v3516, %v3532
        %v3584 = vunpack.c.l.s4 1934713408
        %v3585 = vunpack.c.0.s8 %v3584
        %v3586 = vlaneseq
        %v3587 = vshrl.u32 %v3586, 7
        %v3588 = vsub.s32 %v3585, %v3587
        %v3589 = vrot.slane %v3581, %v3588
        %v3591 = vunpack.c.l.s4 1934713408
        %v3592 = vunpack.c.0.s8 %v3591
        %v3593 = vlaneseq
        %v3594 = vshrl.u32 %v3593, 7
        %v3595 = vsub.s32 %v3592, %v3594
        %v3596 = vrot.slane %v3582, %v3595
        %v3597 = vcombine.low %v3541, %v3573
        %v3598 = vcombine.high %v3541, %v3573
        %v3599 = vcombine.low %v3548, %v3580
        %v3600 = vcombine.high %v3548, %v3580
        %v3601 = vcombine.low %v3557, %v3589
        %v3602 = vcombine.high %v3557, %v3589
        %v3603 = vcombine.low %v3564, %v3596
        %v3604 = vcombine.high %v3564, %v3596
        %3607 = vrot.lane.b32.xlu0 %v3190, 16
        %v3608 = vpop.permute.xlu0 %3607
        %3609 = vrot.lane.b32.xlu0 %v3326, 16
        %v3610 = vpop.permute.xlu0 %3609
        %3615 = vrot.lane.b32.xlu0 %v3191, 32
        %v3616 = vpop.permute.xlu0 %3615
        %3617 = vrot.lane.b32.xlu0 %v3327, 32
        %v3618 = vpop.permute.xlu0 %3617
        %3623 = vrot.lane.b32.xlu0 %v3192, 48
        %v3624 = vpop.permute.xlu0 %3623
        %3625 = vrot.lane.b32.xlu0 %v3328, 48
        %v3626 = vpop.permute.xlu0 %3625
        %3631 = vrot.lane.b32.xlu0 %v3193, 64
        %v3632 = vpop.permute.xlu0 %3631
        %3633 = vrot.lane.b32.xlu0 %v3329, 64
        %v3634 = vpop.permute.xlu0 %3633
        %3639 = vrot.lane.b32.xlu0 %v3194, 80
        %v3640 = vpop.permute.xlu0 %3639
        %3641 = vrot.lane.b32.xlu0 %v3330, 80
        %v3642 = vpop.permute.xlu0 %3641
        %3647 = vrot.lane.b32.xlu0 %v3195, 96
        %v3648 = vpop.permute.xlu0 %3647
        %3649 = vrot.lane.b32.xlu0 %v3331, 96
        %v3650 = vpop.permute.xlu0 %3649
        %3655 = vrot.lane.b32.xlu0 %v3196, 112
        %v3656 = vpop.permute.xlu0 %3655
        %3657 = vrot.lane.b32.xlu0 %v3332, 112
        %v3658 = vpop.permute.xlu0 %3657
        %3663 = vrot.lane.b32.xlu0 %v3462, 16
        %v3664 = vpop.permute.xlu0 %3663
        %3665 = vrot.lane.b32.xlu0 %v3598, 16
        %v3666 = vpop.permute.xlu0 %3665
        %3671 = vrot.lane.b32.xlu0 %v3463, 32
        %v3672 = vpop.permute.xlu0 %3671
        %3673 = vrot.lane.b32.xlu0 %v3599, 32
        %v3674 = vpop.permute.xlu0 %3673
        %3679 = vrot.lane.b32.xlu0 %v3464, 48
        %v3680 = vpop.permute.xlu0 %3679
        %3681 = vrot.lane.b32.xlu0 %v3600, 48
        %v3682 = vpop.permute.xlu0 %3681
        %3687 = vrot.lane.b32.xlu0 %v3465, 64
        %v3688 = vpop.permute.xlu0 %3687
        %3689 = vrot.lane.b32.xlu0 %v3601, 64
        %v3690 = vpop.permute.xlu0 %3689
        %3695 = vrot.lane.b32.xlu0 %v3466, 80
        %v3696 = vpop.permute.xlu0 %3695
        %3697 = vrot.lane.b32.xlu0 %v3602, 80
        %v3698 = vpop.permute.xlu0 %3697
        %3703 = vrot.lane.b32.xlu0 %v3467, 96
        %v3704 = vpop.permute.xlu0 %3703
        %3705 = vrot.lane.b32.xlu0 %v3603, 96
        %v3706 = vpop.permute.xlu0 %3705
        %3711 = vrot.lane.b32.xlu0 %v3468, 112
        %v3712 = vpop.permute.xlu0 %3711
        %3713 = vrot.lane.b32.xlu0 %v3604, 112
        %v3714 = vpop.permute.xlu0 %3713
        %vm3717 = vcmask 130048
        %v3718 = vsel %vm3717, %v3189, %v3608
        %v3719 = vsel %vm3717, %v3325, %v3610
        %vm3720 = vcmask 261120
        %v3721 = vsel %vm3720, %v3718, %v3616
        %v3722 = vsel %vm3720, %v3719, %v3618
        %vm3723 = vcmask 392192
        %v3724 = vsel %vm3723, %v3721, %v3624
        %v3725 = vsel %vm3723, %v3722, %v3626
        %vm3726 = vcmask 523264
        %v3727 = vsel %vm3726, %v3724, %v3632
        %v3728 = vsel %vm3726, %v3725, %v3634
        %vm3729 = vcmask 654336
        %v3730 = vsel %vm3729, %v3727, %v3640
        %v3731 = vsel %vm3729, %v3728, %v3642
        %vm3732 = vcmask 785408
        %v3733 = vsel %vm3732, %v3730, %v3648
        %v3734 = vsel %vm3732, %v3731, %v3650
        %vm3735 = vcmask 916480
        %v3736 = vsel %vm3735, %v3733, %v3656
        %v3737 = vsel %vm3735, %v3734, %v3658
        %v3738 = vsel %vm3717, %v3461, %v3664
        %v3739 = vsel %vm3717, %v3597, %v3666
        %v3740 = vsel %vm3720, %v3738, %v3672
        %v3741 = vsel %vm3720, %v3739, %v3674
        %v3742 = vsel %vm3723, %v3740, %v3680
        %v3743 = vsel %vm3723, %v3741, %v3682
        %v3744 = vsel %vm3726, %v3742, %v3688
        %v3745 = vsel %vm3726, %v3743, %v3690
        %v3746 = vsel %vm3729, %v3744, %v3696
        %v3747 = vsel %vm3729, %v3745, %v3698
        %v3748 = vsel %vm3732, %v3746, %v3704
        %v3749 = vsel %vm3732, %v3747, %v3706
        %v3750 = vsel %vm3735, %v3748, %v3712
        %v3751 = vsel %vm3735, %v3749, %v3714
        %3752 = vst [vmem:[%s307] sm:$0xff] %v3736
        %3753 = vst [vmem:[%s307 + $0x8] sm:$0xff] %v3750
        %3754 = vst [vmem:[%s307 + $0x10] sm:$0xff] %v3737
        %3755 = vst [vmem:[%s307 + $0x18] sm:$0xff] %v3751
        %v3756 = vsel %vm3717, %v2485, -inf
        %3757 = vmax.xlane.f32.xlu0 %v3756
        %v3758 = vpop.xlane.xlu0 %3757
        %v3759 = vsel %vm3717, %v2486, -inf
        %3760 = vmax.xlane.f32.xlu0 %v3759
        %v3761 = vpop.xlane.xlu0 %3760
        %v3762 = vsel %vm3717, %v2487, -inf
        %3763 = vmax.xlane.f32.xlu0 %v3762
        %v3764 = vpop.xlane.xlu0 %3763
        %v3765 = vsel %vm3717, %v2488, -inf
        %3766 = vmax.xlane.f32.xlu0 %v3765
        %v3767 = vpop.xlane.xlu0 %3766
        %v3768 = vsel %vm3717, %v2489, -inf
        %3769 = vmax.xlane.f32.xlu0 %v3768
        %v3770 = vpop.xlane.xlu0 %3769
        %v3771 = vsel %vm3717, %v2490, -inf
        %3772 = vmax.xlane.f32.xlu0 %v3771
        %v3773 = vpop.xlane.xlu0 %3772
        %v3774 = vsel %vm3717, %v2491, -inf
        %3775 = vmax.xlane.f32.xlu0 %v3774
        %v3776 = vpop.xlane.xlu0 %3775
        %v3777 = vsel %vm3717, %v2492, -inf
        %3778 = vmax.xlane.f32.xlu0 %v3777
        %v3779 = vpop.xlane.xlu0 %3778
        %v3780 = vsel %vm3717, %v2493, -inf
        %3781 = vmax.xlane.f32.xlu0 %v3780
        %v3782 = vpop.xlane.xlu0 %3781
        %v3783 = vsel %vm3717, %v2494, -inf
        %3784 = vmax.xlane.f32.xlu0 %v3783
        %v3785 = vpop.xlane.xlu0 %3784
        %v3786 = vsel %vm3717, %v2495, -inf
        %3787 = vmax.xlane.f32.xlu0 %v3786
        %v3788 = vpop.xlane.xlu0 %3787
        %v3789 = vsel %vm3717, %v2496, -inf
        %3790 = vmax.xlane.f32.xlu0 %v3789
        %v3791 = vpop.xlane.xlu0 %3790
        %v3792 = vsel %vm3717, %v2497, -inf
        %3793 = vmax.xlane.f32.xlu0 %v3792
        %v3794 = vpop.xlane.xlu0 %3793
        %v3795 = vsel %vm3717, %v2498, -inf
        %3796 = vmax.xlane.f32.xlu0 %v3795
        %v3797 = vpop.xlane.xlu0 %3796
        %v3798 = vsel %vm3717, %v2499, -inf
        %3799 = vmax.xlane.f32.xlu0 %v3798
        %v3800 = vpop.xlane.xlu0 %3799
        %v3801 = vsel %vm3717, %v2500, -inf
        %3802 = vmax.xlane.f32.xlu0 %v3801
        %v3803 = vpop.xlane.xlu0 %3802
        %v3804 = vsel %vm3717, %v2501, -inf
        %3805 = vmax.xlane.f32.xlu0 %v3804
        %v3806 = vpop.xlane.xlu0 %3805
        %v3807 = vsel %vm3717, %v2502, -inf
        %3808 = vmax.xlane.f32.xlu0 %v3807
        %v3809 = vpop.xlane.xlu0 %3808
        %v3810 = vsel %vm3717, %v2503, -inf
        %3811 = vmax.xlane.f32.xlu0 %v3810
        %v3812 = vpop.xlane.xlu0 %3811
        %v3813 = vsel %vm3717, %v2504, -inf
        %3814 = vmax.xlane.f32.xlu0 %v3813
        %v3815 = vpop.xlane.xlu0 %3814
        %v3816 = vsel %vm3717, %v2505, -inf
        %3817 = vmax.xlane.f32.xlu0 %v3816
        %v3818 = vpop.xlane.xlu0 %3817
        %v3819 = vsel %vm3717, %v2506, -inf
        %3820 = vmax.xlane.f32.xlu0 %v3819
        %v3821 = vpop.xlane.xlu0 %3820
        %v3822 = vsel %vm3717, %v2507, -inf
        %3823 = vmax.xlane.f32.xlu0 %v3822
        %v3824 = vpop.xlane.xlu0 %3823
        %v3825 = vsel %vm3717, %v2508, -inf
        %3826 = vmax.xlane.f32.xlu0 %v3825
        %v3827 = vpop.xlane.xlu0 %3826
        %v3828 = vsel %vm3717, %v2509, -inf
        %3829 = vmax.xlane.f32.xlu0 %v3828
        %v3830 = vpop.xlane.xlu0 %3829
        %v3831 = vsel %vm3717, %v2510, -inf
        %3832 = vmax.xlane.f32.xlu0 %v3831
        %v3833 = vpop.xlane.xlu0 %3832
        %v3834 = vsel %vm3717, %v2511, -inf
        %3835 = vmax.xlane.f32.xlu0 %v3834
        %v3836 = vpop.xlane.xlu0 %3835
        %v3837 = vsel %vm3717, %v2512, -inf
        %3838 = vmax.xlane.f32.xlu0 %v3837
        %v3839 = vpop.xlane.xlu0 %3838
        %v3840 = vsel %vm3717, %v2513, -inf
        %3841 = vmax.xlane.f32.xlu0 %v3840
        %v3842 = vpop.xlane.xlu0 %3841
        %v3843 = vsel %vm3717, %v2514, -inf
        %3844 = vmax.xlane.f32.xlu0 %v3843
        %v3845 = vpop.xlane.xlu0 %3844
        %v3846 = vsel %vm3717, %v2515, -inf
        %3847 = vmax.xlane.f32.xlu0 %v3846
        %v3848 = vpop.xlane.xlu0 %3847
        %v3849 = vsel %vm3717, %v2516, -inf
        %3850 = vmax.xlane.f32.xlu0 %v3849
        %v3851 = vpop.xlane.xlu0 %3850
        %v3852 = vsub.f32 %v2485, %v3758
        %v3853 = vsub.f32 %v2486, %v3761
        %v3854 = vsub.f32 %v2487, %v3764
        %v3855 = vsub.f32 %v2488, %v3767
        %v3856 = vsub.f32 %v2489, %v3770
        %v3857 = vsub.f32 %v2490, %v3773
        %v3858 = vsub.f32 %v2491, %v3776
        %v3859 = vsub.f32 %v2492, %v3779
        %v3860 = vsub.f32 %v2493, %v3782
        %v3861 = vsub.f32 %v2494, %v3785
        %v3862 = vsub.f32 %v2495, %v3788
        %v3863 = vsub.f32 %v2496, %v3791
        %v3864 = vsub.f32 %v2497, %v3794
        %v3865 = vsub.f32 %v2498, %v3797
        %v3866 = vsub.f32 %v2499, %v3800
        %v3867 = vsub.f32 %v2500, %v3803
        %v3868 = vsub.f32 %v2501, %v3806
        %v3869 = vsub.f32 %v2502, %v3809
        %v3870 = vsub.f32 %v2503, %v3812
        %v3871 = vsub.f32 %v2504, %v3815
        %v3872 = vsub.f32 %v2505, %v3818
        %v3873 = vsub.f32 %v2506, %v3821
        %v3874 = vsub.f32 %v2507, %v3824
        %v3875 = vsub.f32 %v2508, %v3827
        %v3876 = vsub.f32 %v2509, %v3830
        %v3877 = vsub.f32 %v2510, %v3833
        %v3878 = vsub.f32 %v2511, %v3836
        %v3879 = vsub.f32 %v2512, %v3839
        %v3880 = vsub.f32 %v2513, %v3842
        %v3881 = vsub.f32 %v2514, %v3845
        %v3882 = vsub.f32 %v2515, %v3848
        %v3883 = vsub.f32 %v2516, %v3851
        %v3884 = vmul.f32 %v3852, 1.442695
        %v3885 = vpow.pop %v3884
        %v3886 = vmul.f32 %v3853, 1.442695
        %v3887 = vpow.pop %v3886
        %v3888 = vmul.f32 %v3854, 1.442695
        %v3889 = vpow.pop %v3888
        %v3890 = vmul.f32 %v3855, 1.442695
        %v3891 = vpow.pop %v3890
        %v3892 = vmul.f32 %v3856, 1.442695
        %v3893 = vpow.pop %v3892
        %v3894 = vmul.f32 %v3857, 1.442695
        %v3895 = vpow.pop %v3894
        %v3896 = vmul.f32 %v3858, 1.442695
        %v3897 = vpow.pop %v3896
        %v3898 = vmul.f32 %v3859, 1.442695
        %v3899 = vpow.pop %v3898
        %v3900 = vmul.f32 %v3860, 1.442695
        %v3901 = vpow.pop %v3900
        %v3902 = vmul.f32 %v3861, 1.442695
        %v3903 = vpow.pop %v3902
        %v3904 = vmul.f32 %v3862, 1.442695
        %v3905 = vpow.pop %v3904
        %v3906 = vmul.f32 %v3863, 1.442695
        %v3907 = vpow.pop %v3906
        %v3908 = vmul.f32 %v3864, 1.442695
        %v3909 = vpow.pop %v3908
        %v3910 = vmul.f32 %v3865, 1.442695
        %v3911 = vpow.pop %v3910
        %v3912 = vmul.f32 %v3866, 1.442695
        %v3913 = vpow.pop %v3912
        %v3914 = vmul.f32 %v3867, 1.442695
        %v3915 = vpow.pop %v3914
        %v3916 = vmul.f32 %v3868, 1.442695
        %v3917 = vpow.pop %v3916
        %v3918 = vmul.f32 %v3869, 1.442695
        %v3919 = vpow.pop %v3918
        %v3920 = vmul.f32 %v3870, 1.442695
        %v3921 = vpow.pop %v3920
        %v3922 = vmul.f32 %v3871, 1.442695
        %v3923 = vpow.pop %v3922
        %v3924 = vmul.f32 %v3872, 1.442695
        %v3925 = vpow.pop %v3924
        %v3926 = vmul.f32 %v3873, 1.442695
        %v3927 = vpow.pop %v3926
        %v3928 = vmul.f32 %v3874, 1.442695
        %v3929 = vpow.pop %v3928
        %v3930 = vmul.f32 %v3875, 1.442695
        %v3931 = vpow.pop %v3930
        %v3932 = vmul.f32 %v3876, 1.442695
        %v3933 = vpow.pop %v3932
        %v3934 = vmul.f32 %v3877, 1.442695
        %v3935 = vpow.pop %v3934
        %v3936 = vmul.f32 %v3878, 1.442695
        %v3937 = vpow.pop %v3936
        %v3938 = vmul.f32 %v3879, 1.442695
        %v3939 = vpow.pop %v3938
        %v3940 = vmul.f32 %v3880, 1.442695
        %v3941 = vpow.pop %v3940
        %v3942 = vmul.f32 %v3881, 1.442695
        %v3943 = vpow.pop %v3942
        %v3944 = vmul.f32 %v3882, 1.442695
        %v3945 = vpow.pop %v3944
        %v3946 = vmul.f32 %v3883, 1.442695
        %v3947 = vpow.pop %v3946
        %v3948 = vsel %vm3717, %v3885, 0.0
        %3949 = vadd.xlane.f32.xlu0 %v3948
        %v3950 = vpop.xlane.xlu0 %3949
        %v3951 = vsel %vm3717, %v3887, 0.0
        %3952 = vadd.xlane.f32.xlu0 %v3951
        %v3953 = vpop.xlane.xlu0 %3952
        %v3954 = vsel %vm3717, %v3889, 0.0
        %3955 = vadd.xlane.f32.xlu0 %v3954
        %v3956 = vpop.xlane.xlu0 %3955
        %v3957 = vsel %vm3717, %v3891, 0.0
        %3958 = vadd.xlane.f32.xlu0 %v3957
        %v3959 = vpop.xlane.xlu0 %3958
        %v3960 = vsel %vm3717, %v3893, 0.0
        %3961 = vadd.xlane.f32.xlu0 %v3960
        %v3962 = vpop.xlane.xlu0 %3961
        %v3963 = vsel %vm3717, %v3895, 0.0
        %3964 = vadd.xlane.f32.xlu0 %v3963
        %v3965 = vpop.xlane.xlu0 %3964
        %v3966 = vsel %vm3717, %v3897, 0.0
        %3967 = vadd.xlane.f32.xlu0 %v3966
        %v3968 = vpop.xlane.xlu0 %3967
        %v3969 = vsel %vm3717, %v3899, 0.0
        %3970 = vadd.xlane.f32.xlu0 %v3969
        %v3971 = vpop.xlane.xlu0 %3970
        %v3972 = vsel %vm3717, %v3901, 0.0
        %3973 = vadd.xlane.f32.xlu0 %v3972
        %v3974 = vpop.xlane.xlu0 %3973
        %v3975 = vsel %vm3717, %v3903, 0.0
        %3976 = vadd.xlane.f32.xlu0 %v3975
        %v3977 = vpop.xlane.xlu0 %3976
        %v3978 = vsel %vm3717, %v3905, 0.0
        %3979 = vadd.xlane.f32.xlu0 %v3978
        %v3980 = vpop.xlane.xlu0 %3979
        %v3981 = vsel %vm3717, %v3907, 0.0
        %3982 = vadd.xlane.f32.xlu0 %v3981
        %v3983 = vpop.xlane.xlu0 %3982
        %v3984 = vsel %vm3717, %v3909, 0.0
        %3985 = vadd.xlane.f32.xlu0 %v3984
        %v3986 = vpop.xlane.xlu0 %3985
        %v3987 = vsel %vm3717, %v3911, 0.0
        %3988 = vadd.xlane.f32.xlu0 %v3987
        %v3989 = vpop.xlane.xlu0 %3988
        %v3990 = vsel %vm3717, %v3913, 0.0
        %3991 = vadd.xlane.f32.xlu0 %v3990
        %v3992 = vpop.xlane.xlu0 %3991
        %v3993 = vsel %vm3717, %v3915, 0.0
        %3994 = vadd.xlane.f32.xlu0 %v3993
        %v3995 = vpop.xlane.xlu0 %3994
        %v3996 = vsel %vm3717, %v3917, 0.0
        %3997 = vadd.xlane.f32.xlu0 %v3996
        %v3998 = vpop.xlane.xlu0 %3997
        %v3999 = vsel %vm3717, %v3919, 0.0
        %4000 = vadd.xlane.f32.xlu0 %v3999
        %v4001 = vpop.xlane.xlu0 %4000
        %v4002 = vsel %vm3717, %v3921, 0.0
        %4003 = vadd.xlane.f32.xlu0 %v4002
        %v4004 = vpop.xlane.xlu0 %4003
        %v4005 = vsel %vm3717, %v3923, 0.0
        %4006 = vadd.xlane.f32.xlu0 %v4005
        %v4007 = vpop.xlane.xlu0 %4006
        %v4008 = vsel %vm3717, %v3925, 0.0
        %4009 = vadd.xlane.f32.xlu0 %v4008
        %v4010 = vpop.xlane.xlu0 %4009
        %v4011 = vsel %vm3717, %v3927, 0.0
        %4012 = vadd.xlane.f32.xlu0 %v4011
        %v4013 = vpop.xlane.xlu0 %4012
        %v4014 = vsel %vm3717, %v3929, 0.0
        %4015 = vadd.xlane.f32.xlu0 %v4014
        %v4016 = vpop.xlane.xlu0 %4015
        %v4017 = vsel %vm3717, %v3931, 0.0
        %4018 = vadd.xlane.f32.xlu0 %v4017
        %v4019 = vpop.xlane.xlu0 %4018
        %v4020 = vsel %vm3717, %v3933, 0.0
        %4021 = vadd.xlane.f32.xlu0 %v4020
        %v4022 = vpop.xlane.xlu0 %4021
        %v4023 = vsel %vm3717, %v3935, 0.0
        %4024 = vadd.xlane.f32.xlu0 %v4023
        %v4025 = vpop.xlane.xlu0 %4024
        %v4026 = vsel %vm3717, %v3937, 0.0
        %4027 = vadd.xlane.f32.xlu0 %v4026
        %v4028 = vpop.xlane.xlu0 %4027
        %v4029 = vsel %vm3717, %v3939, 0.0
        %4030 = vadd.xlane.f32.xlu0 %v4029
        %v4031 = vpop.xlane.xlu0 %4030
        %v4032 = vsel %vm3717, %v3941, 0.0
        %4033 = vadd.xlane.f32.xlu0 %v4032
        %v4034 = vpop.xlane.xlu0 %4033
        %v4035 = vsel %vm3717, %v3943, 0.0
        %4036 = vadd.xlane.f32.xlu0 %v4035
        %v4037 = vpop.xlane.xlu0 %4036
        %v4038 = vsel %vm3717, %v3945, 0.0
        %4039 = vadd.xlane.f32.xlu0 %v4038
        %v4040 = vpop.xlane.xlu0 %4039
        %v4041 = vsel %vm3717, %v3947, 0.0
        %4042 = vadd.xlane.f32.xlu0 %v4041
        %v4043 = vpop.xlane.xlu0 %4042
        %v4044 = vrcp.pop %v3950
        %v4045 = vrcp.pop %v3953
        %v4046 = vrcp.pop %v3956
        %v4047 = vrcp.pop %v3959
        %v4048 = vrcp.pop %v3962
        %v4049 = vrcp.pop %v3965
        %v4050 = vrcp.pop %v3968
        %v4051 = vrcp.pop %v3971
        %v4052 = vrcp.pop %v3974
        %v4053 = vrcp.pop %v3977
        %v4054 = vrcp.pop %v3980
        %v4055 = vrcp.pop %v3983
        %v4056 = vrcp.pop %v3986
        %v4057 = vrcp.pop %v3989
        %v4058 = vrcp.pop %v3992
        %v4059 = vrcp.pop %v3995
        %v4060 = vrcp.pop %v3998
        %v4061 = vrcp.pop %v4001
        %v4062 = vrcp.pop %v4004
        %v4063 = vrcp.pop %v4007
        %v4064 = vrcp.pop %v4010
        %v4065 = vrcp.pop %v4013
        %v4066 = vrcp.pop %v4016
        %v4067 = vrcp.pop %v4019
        %v4068 = vrcp.pop %v4022
        %v4069 = vrcp.pop %v4025
        %v4070 = vrcp.pop %v4028
        %v4071 = vrcp.pop %v4031
        %v4072 = vrcp.pop %v4034
        %v4073 = vrcp.pop %v4037
        %v4074 = vrcp.pop %v4040
        %v4075 = vrcp.pop %v4043
        %v4076 = vmul.f32 %v3950, %v4044
        %v4077 = vmul.f32 %v3953, %v4045
        %v4078 = vmul.f32 %v3956, %v4046
        %v4079 = vmul.f32 %v3959, %v4047
        %v4080 = vmul.f32 %v3962, %v4048
        %v4081 = vmul.f32 %v3965, %v4049
        %v4082 = vmul.f32 %v3968, %v4050
        %v4083 = vmul.f32 %v3971, %v4051
        %v4084 = vmul.f32 %v3974, %v4052
        %v4085 = vmul.f32 %v3977, %v4053
        %v4086 = vmul.f32 %v3980, %v4054
        %v4087 = vmul.f32 %v3983, %v4055
        %v4088 = vmul.f32 %v3986, %v4056
        %v4089 = vmul.f32 %v3989, %v4057
        %v4090 = vmul.f32 %v3992, %v4058
        %v4091 = vmul.f32 %v3995, %v4059
        %v4092 = vmul.f32 %v3998, %v4060
        %v4093 = vmul.f32 %v4001, %v4061
        %v4094 = vmul.f32 %v4004, %v4062
        %v4095 = vmul.f32 %v4007, %v4063
        %v4096 = vmul.f32 %v4010, %v4064
        %v4097 = vmul.f32 %v4013, %v4065
        %v4098 = vmul.f32 %v4016, %v4066
        %v4099 = vmul.f32 %v4019, %v4067
        %v4100 = vmul.f32 %v4022, %v4068
        %v4101 = vmul.f32 %v4025, %v4069
        %v4102 = vmul.f32 %v4028, %v4070
        %v4103 = vmul.f32 %v4031, %v4071
        %v4104 = vmul.f32 %v4034, %v4072
        %v4105 = vmul.f32 %v4037, %v4073
        %v4106 = vmul.f32 %v4040, %v4074
        %v4107 = vmul.f32 %v4043, %v4075
        %v4140 = vlaneseq
        %v4141 = vand.u32 %v4140, 127
        %v4142 = vlaneseq
        %v4143 = vshrl.u32 %v4142, 7
        %v4144 = vsub.s32 %v4141, %v4143
        %v4145 = vrot.slane %v4076, %v4144
        %v4146 = vadd.s32 %v4141, 4294967288
        %v4147 = vlaneseq
        %v4148 = vshrl.u32 %v4147, 7
        %v4149 = vsub.s32 %v4146, %v4148
        %v4150 = vrot.slane %v4077, %v4149
        %vm4151 = vcmask 130112
        %v4152 = vsel %vm4151, %v4150, %v4145
        %v4153 = vlaneseq
        %v4154 = vshrl.u32 %v4153, 7
        %v4155 = vsub.s32 %v4141, %v4154
        %v4156 = vrot.slane %v4078, %v4155
        %v4157 = vlaneseq
        %v4158 = vshrl.u32 %v4157, 7
        %v4159 = vsub.s32 %v4146, %v4158
        %v4160 = vrot.slane %v4079, %v4159
        %v4161 = vsel %vm4151, %v4160, %v4156
        %v4162 = vlaneseq
        %v4163 = vshrl.u32 %v4162, 7
        %v4164 = vsub.s32 %v4141, %v4163
        %v4165 = vrot.slane %v4080, %v4164
        %v4166 = vlaneseq
        %v4167 = vshrl.u32 %v4166, 7
        %v4168 = vsub.s32 %v4146, %v4167
        %v4169 = vrot.slane %v4081, %v4168
        %v4170 = vsel %vm4151, %v4169, %v4165
        %v4171 = vlaneseq
        %v4172 = vshrl.u32 %v4171, 7
        %v4173 = vsub.s32 %v4141, %v4172
        %v4174 = vrot.slane %v4082, %v4173
        %v4175 = vlaneseq
        %v4176 = vshrl.u32 %v4175, 7
        %v4177 = vsub.s32 %v4146, %v4176
        %v4178 = vrot.slane %v4083, %v4177
        %v4179 = vsel %vm4151, %v4178, %v4174
        %v4180 = vlaneseq
        %v4181 = vshrl.u32 %v4180, 7
        %v4182 = vsub.s32 %v4141, %v4181
        %v4183 = vrot.slane %v4084, %v4182
        %v4184 = vlaneseq
        %v4185 = vshrl.u32 %v4184, 7
        %v4186 = vsub.s32 %v4146, %v4185
        %v4187 = vrot.slane %v4085, %v4186
        %v4188 = vsel %vm4151, %v4187, %v4183
        %v4189 = vlaneseq
        %v4190 = vshrl.u32 %v4189, 7
        %v4191 = vsub.s32 %v4141, %v4190
        %v4192 = vrot.slane %v4086, %v4191
        %v4193 = vlaneseq
        %v4194 = vshrl.u32 %v4193, 7
        %v4195 = vsub.s32 %v4146, %v4194
        %v4196 = vrot.slane %v4087, %v4195
        %v4197 = vsel %vm4151, %v4196, %v4192
        %v4198 = vlaneseq
        %v4199 = vshrl.u32 %v4198, 7
        %v4200 = vsub.s32 %v4141, %v4199
        %v4201 = vrot.slane %v4088, %v4200
        %v4202 = vlaneseq
        %v4203 = vshrl.u32 %v4202, 7
        %v4204 = vsub.s32 %v4146, %v4203
        %v4205 = vrot.slane %v4089, %v4204
        %v4206 = vsel %vm4151, %v4205, %v4201
        %v4207 = vlaneseq
        %v4208 = vshrl.u32 %v4207, 7
        %v4209 = vsub.s32 %v4141, %v4208
        %v4210 = vrot.slane %v4090, %v4209
        %v4211 = vlaneseq
        %v4212 = vshrl.u32 %v4211, 7
        %v4213 = vsub.s32 %v4146, %v4212
        %v4214 = vrot.slane %v4091, %v4213
        %v4215 = vsel %vm4151, %v4214, %v4210
        %v4216 = vlaneseq
        %v4217 = vshrl.u32 %v4216, 7
        %v4218 = vsub.s32 %v4141, %v4217
        %v4219 = vrot.slane %v4092, %v4218
        %v4220 = vlaneseq
        %v4221 = vshrl.u32 %v4220, 7
        %v4222 = vsub.s32 %v4146, %v4221
        %v4223 = vrot.slane %v4093, %v4222
        %v4224 = vsel %vm4151, %v4223, %v4219
        %v4225 = vlaneseq
        %v4226 = vshrl.u32 %v4225, 7
        %v4227 = vsub.s32 %v4141, %v4226
        %v4228 = vrot.slane %v4094, %v4227
        %v4229 = vlaneseq
        %v4230 = vshrl.u32 %v4229, 7
        %v4231 = vsub.s32 %v4146, %v4230
        %v4232 = vrot.slane %v4095, %v4231
        %v4233 = vsel %vm4151, %v4232, %v4228
        %v4234 = vlaneseq
        %v4235 = vshrl.u32 %v4234, 7
        %v4236 = vsub.s32 %v4141, %v4235
        %v4237 = vrot.slane %v4096, %v4236
        %v4238 = vlaneseq
        %v4239 = vshrl.u32 %v4238, 7
        %v4240 = vsub.s32 %v4146, %v4239
        %v4241 = vrot.slane %v4097, %v4240
        %v4242 = vsel %vm4151, %v4241, %v4237
        %v4243 = vlaneseq
        %v4244 = vshrl.u32 %v4243, 7
        %v4245 = vsub.s32 %v4141, %v4244
        %v4246 = vrot.slane %v4098, %v4245
        %v4247 = vlaneseq
        %v4248 = vshrl.u32 %v4247, 7
        %v4249 = vsub.s32 %v4146, %v4248
        %v4250 = vrot.slane %v4099, %v4249
        %v4251 = vsel %vm4151, %v4250, %v4246
        %v4252 = vlaneseq
        %v4253 = vshrl.u32 %v4252, 7
        %v4254 = vsub.s32 %v4141, %v4253
        %v4255 = vrot.slane %v4100, %v4254
        %v4256 = vlaneseq
        %v4257 = vshrl.u32 %v4256, 7
        %v4258 = vsub.s32 %v4146, %v4257
        %v4259 = vrot.slane %v4101, %v4258
        %v4260 = vsel %vm4151, %v4259, %v4255
        %v4261 = vlaneseq
        %v4262 = vshrl.u32 %v4261, 7
        %v4263 = vsub.s32 %v4141, %v4262
        %v4264 = vrot.slane %v4102, %v4263
        %v4265 = vlaneseq
        %v4266 = vshrl.u32 %v4265, 7
        %v4267 = vsub.s32 %v4146, %v4266
        %v4268 = vrot.slane %v4103, %v4267
        %v4269 = vsel %vm4151, %v4268, %v4264
        %v4270 = vlaneseq
        %v4271 = vshrl.u32 %v4270, 7
        %v4272 = vsub.s32 %v4141, %v4271
        %v4273 = vrot.slane %v4104, %v4272
        %v4274 = vlaneseq
        %v4275 = vshrl.u32 %v4274, 7
        %v4276 = vsub.s32 %v4146, %v4275
        %v4277 = vrot.slane %v4105, %v4276
        %v4278 = vsel %vm4151, %v4277, %v4273
        %v4279 = vlaneseq
        %v4280 = vshrl.u32 %v4279, 7
        %v4281 = vsub.s32 %v4141, %v4280
        %v4282 = vrot.slane %v4106, %v4281
        %v4283 = vlaneseq
        %v4284 = vshrl.u32 %v4283, 7
        %v4285 = vsub.s32 %v4146, %v4284
        %v4286 = vrot.slane %v4107, %v4285
        %v4287 = vsel %vm4151, %v4286, %v4282
        %vm4288 = vcmask 1041409
        %v4289 = vsel %vm4288, %v4161, %v4152
        %vm4290 = vcmask 1042434
        %v4291 = vsel %vm4290, %v4170, %v4289
        %vm4292 = vcmask 1043459
        %v4293 = vsel %vm4292, %v4179, %v4291
        %vm4294 = vcmask 1044484
        %v4295 = vsel %vm4294, %v4188, %v4293
        %vm4296 = vcmask 1045509
        %v4297 = vsel %vm4296, %v4197, %v4295
        %vm4298 = vcmask 1046534
        %v4299 = vsel %vm4298, %v4206, %v4297
        %vm4300 = vcmask 1047559
        %v4301 = vsel %vm4300, %v4215, %v4299
        %v4302 = vsel %vm4288, %v4233, %v4224
        %v4303 = vsel %vm4290, %v4242, %v4302
        %v4304 = vsel %vm4292, %v4251, %v4303
        %v4305 = vsel %vm4294, %v4260, %v4304
        %v4306 = vsel %vm4296, %v4269, %v4305
        %v4307 = vsel %vm4298, %v4278, %v4306
        %v4308 = vsel %vm4300, %v4287, %v4307
        %4311 = vst.msk [vmem:[%s321] sm:$0xff] %vm3717, %v4301
        %4312 = vst.msk [vmem:[%s321 + $0x8] sm:$0xff] %vm3717, %v4308
        %s4313 = smul.u32 2, %s28
        %p4314 = scmp.lt.s32.totalorder %s26, 1
        %s4315 = scalar_select %p4314, %s26, 1
        %p4316 = scmp.lt.s32.totalorder %s27, 1
        %s4317 = scalar_select %p4316, %s27, 1
        %p4318 = scmp.lt.s32.totalorder %s4313, 1
        %s4319 = scalar_select %p4318, %s4313, 1
        %s4320 = smul.addr %s4317, 4
        %s4321 = sadd.s32 %s4319, %s4320
        %s4322 = smul.addr %s4315, 8
        %s4323 = sadd.s32 %s4321, %s4322
        %s4324 = smul.addr %s4323, 8
        %s4325 = scalar_lea.vmem %s2, %s4324
        %s4326 = smul.u32 2, %s28
        %p4327 = scmp.lt.s32.totalorder %s26, 1
        %s4328 = scalar_select %p4327, %s26, 1
        %p4329 = scmp.lt.s32.totalorder %s27, 1
        %s4330 = scalar_select %p4329, %s27, 1
        %p4331 = scmp.lt.s32.totalorder %s4326, 1
        %s4332 = scalar_select %p4331, %s4326, 1
        %s4333 = smul.addr %s4330, 2
        %s4334 = sadd.s32 %s4332, %s4333
        %s4335 = smul.addr %s4328, 4
        %s4336 = sadd.s32 %s4334, %s4335
        %s4337 = smul.addr %s4336, 8
        %s4338 = scalar_lea.vmem %s3, %s4337
        // Predicated region
        $region37: #{a_call__.1} parent=27 // pred_check
          %p4339 = pneg %p122
        $region38: #{a_call__.1} parent=27 // pred_check_branch
          %4341 = sbr.rel (%p4339) target = $region40
        $region39: #{a_call__.1} parent=27 // pred_region
          %s4342 = smul.u32 2, %s28
        $region40: #{a_call__.1} parent=27 // pred_fallthru
          _
        // Predicated region
        $region41: #{a_call__.1} parent=27 // pred_check
          %p4343 = pneg %p152
        $region42: #{a_call__.1} parent=27 // pred_check_branch
          %4345 = sbr.rel (%p4343) target = $region44
        $region43: #{a_call__.1} parent=27 // pred_region
          %s4346 = smul.u32 2, %s28
        $region44: #{a_call__.1} parent=27 // pred_fallthru
          _
      $region28: #{a_call__.1} parent=5 // pred_fallthru
        _
      %p4347 = scmp.le.s32.totalorder 2, %s16
      // Predicated region
      $region45: #{a_call__.1} parent=5 // pred_check
        %p4348 = pneg %p4347
      $region46: #{a_call__.1} parent=5 // pred_check_branch
        %4350 = sbr.rel (%p4348) target = $region48
      $region47: #{a_call__.1} parent=5 // pred_region
        %s4351 = ssub.s32 %s16, 2
        // Predicated region
        $region49: #{a_call__.1} parent=47 // pred_check
          %p4352 = pneg %p128
        $region50: #{a_call__.1} parent=47 // pred_check_branch
          %4354 = sbr.rel (%p4352) target = $region52
        $region51: #{a_call__.1} parent=47 // pred_region
          %s4355 = smul.u32 2, %s31
          %p4356 = scmp.lt.s32.totalorder %s29, 1
          %s4357 = scalar_select %p4356, %s29, 1
          %p4358 = scmp.lt.s32.totalorder %s30, 1
          %s4359 = scalar_select %p4358, %s30, 1
          %p4360 = scmp.lt.s32.totalorder %s4355, 1
          %s4361 = scalar_select %p4360, %s4355, 1
          %s4362 = smul.addr %s4359, 4
          %s4363 = sadd.s32 %s4361, %s4362
          %s4364 = smul.addr %s4357, 8
          %s4365 = sadd.s32 %s4363, %s4364
          %s4366 = smul.addr %s4365, 8
          %s4367 = scalar_lea.vmem %s2, %s4366
        $region52: #{a_call__.1} parent=47 // pred_fallthru
          _
        // Predicated region
        $region53: #{a_call__.1} parent=47 // pred_check
          %p4368 = pneg %p158
        $region54: #{a_call__.1} parent=47 // pred_check_branch
          %4370 = sbr.rel (%p4368) target = $region56
        $region55: #{a_call__.1} parent=47 // pred_region
          %s4371 = smul.u32 2, %s31
          %p4372 = scmp.lt.s32.totalorder %s29, 1
          %s4373 = scalar_select %p4372, %s29, 1
          %p4374 = scmp.lt.s32.totalorder %s30, 1
          %s4375 = scalar_select %p4374, %s30, 1
          %p4376 = scmp.lt.s32.totalorder %s4371, 1
          %s4377 = scalar_select %p4376, %s4371, 1
          %s4378 = smul.addr %s4375, 2
          %s4379 = sadd.s32 %s4377, %s4378
          %s4380 = smul.addr %s4373, 4
          %s4381 = sadd.s32 %s4379, %s4380
          %s4382 = smul.addr %s4381, 8
          %s4383 = scalar_lea.vmem %s3, %s4382
        $region56: #{a_call__.1} parent=47 // pred_fallthru
          _
      $region48: #{a_call__.1} parent=5 // pred_fallthru
        _
    $region6: #{a_call__.1} parent=1 // loop_footer
      %s20 = sadd.s32 1, %s16
    $region7: #{a_call__.1} parent=1 // loop_footer_branch
      %15 = sbr.rel target = $region3
    $region8: #{a_call__.1} parent=1 // loop_exit
      _
    %4384 = vsyncpa [#allocation3], 1
    %s4385 = scalar_lea.sflag [#allocation3], 1
    %4386 = vsyncpa %s4385, 1
    %4387 = vsyncpa [#allocation5], 1
    %s4388 = scalar_lea.sflag [#allocation5], 1
    %4389 = vsyncpa %s4388, 1

</llo_original>
